<compile_context>
chip_gen: v7x
topology: tpu7x:2x2x1
jax: 0.10.0
libtpu: 0.0.40
codegen_flags: <defaults>
</compile_context>

<pallas_src>
import functools

import jax
import jax.numpy as jnp
from jax import lax
from jax.experimental import pallas as pl
from jax.experimental.pallas import tpu as pltpu

CNN_HID = 32       # first conv out channels
CNN_OUT = 64       # second conv / residual out channels
NUM_LAYERS = 3     # LSTM layers (module default)
SCALAR_SIZE = 9    # module requires scalar_features last dim == 9


# ------------------------- fused CNN + LSTM + FC kernel ----------------------
def _fused_kernel(x_ref, scal_ref,
                  w1r_ref, b1r_ref, w2_ref, b2_ref,
                  wih0c_ref, wih0s_ref, bl0_ref, whh0_ref,
                  wih1_ref, whh1_ref, bl1_ref,
                  wih2_ref, whh2_ref, bl2_ref,
                  wfc_ref, bfc_ref,
                  out_ref,
                  *, seq_len, price_levels, b_tile):
    S, P, BT = seq_len, price_levels, b_tile
    N = S * BT * P                          # conv rows of this tile, ordered (t, b, pos)
    H = whh0_ref.shape[0]

    # ---------------- CNN over all (t, b) samples of this batch tile ----------
    x = x_ref[...]                                          # (N, C)

    row_pos = lax.broadcasted_iota(jnp.int32, (N, 1), 0) % P
    first_row = row_pos == 0
    last_row = row_pos == (P - 1)

    def neighbors(h):
        # 3-tap neighbourhood with per-sample zero padding; cyclic rolls with
        # NON-NEGATIVE shifts, cross-sample / array-wrap rows masked to zero.
        h_prev = jnp.where(first_row, 0.0, pltpu.roll(h, shift=1, axis=0))
        h_next = jnp.where(last_row, 0.0, pltpu.roll(h, shift=N - 1, axis=0))
        return h_prev, h_next

    xp, xn = neighbors(x)
    x3 = jnp.concatenate([xp, x, xn], axis=1)               # (N, 3*C)
    # conv1 (k=3) and the residual 1x1 conv fused into ONE matmul:
    #   lanes [:32]  = Conv1d(C->32) pre-activation
    #   lanes [32:96] = x @ wr + br   (wr lives in the centre-tap rows of w1r)
    o1 = (jnp.dot(x3, w1r_ref[...], preferred_element_type=jnp.float32)
          + b1r_ref[...])                                   # (N, 96)
    h1 = jnp.maximum(o1[:, :CNN_HID], 0.0)                  # ReLU, (N, 32)

    hp, hn = neighbors(h1)
    x3b = jnp.concatenate([hp, h1, hn], axis=1)             # (N, 96)
    h2 = jnp.maximum(
        jnp.dot(x3b, w2_ref[...], preferred_element_type=jnp.float32) + b2_ref[...],
        0.0)                                                # (N, 64)

    # AdaptiveMaxPool1d(1) per (t, b) sample; rows stay time-major (t, b)
    pool1 = jnp.max(o1.reshape(S * BT, P, CNN_HID + CNN_OUT), axis=1)
    pool2 = jnp.max(h2.reshape(S * BT, P, CNN_OUT), axis=1)
    cnn_out = pool2 + pool1[:, CNN_HID:]                    # (S*BT, 64)

    # ---------------- LSTM (time-major, fully unrolled) + FC ------------------
    scal = scal_ref[...]                                    # (S*BT, 9), time-major
    # layer-0 input projection for ALL timesteps, split so the awkward 73-wide
    # [cnn_out | scalars] concat is never materialized
    proj = (jnp.dot(cnn_out, wih0c_ref[...], preferred_element_type=jnp.float32)
            + jnp.dot(scal, wih0s_ref[...], preferred_element_type=jnp.float32)
            + bl0_ref[...])                                 # (S*BT, 4H)

    # Gate columns are permuted wrapper-side to [i, f, o, g] so ONE tanh EUP push
    # covers all four gates:  sigmoid(x) = 0.5*tanh(0.5*x) + 0.5  on lanes [:3H],
    # plain tanh on the candidate-gate lanes [3H:].
    lane = lax.broadcasted_iota(jnp.int32, (1, 4 * H), 1)
    sig_lane = lane < 3 * H
    g_scale = jnp.where(sig_lane, 0.5, 1.0).astype(jnp.float32)   # pre & post scale
    g_shift = jnp.where(sig_lane, 0.5, 0.0).astype(jnp.float32)   # post shift

    whh_refs = (whh0_ref, whh1_ref, whh2_ref)
    wih_refs = (None, wih1_ref, wih2_ref)
    bl_refs = (None, bl1_ref, bl2_ref)

    h = None
    for layer in range(NUM_LAYERS):
        whh = whh_refs[layer][...]                          # hoisted out of time loop
        h = jnp.zeros((BT, H), jnp.float32)
        c = jnp.zeros((BT, H), jnp.float32)
        hs = []
        for t in range(S):                                  # fully unrolled serial chain
            gates = (proj[t * BT:(t + 1) * BT, :]
                     + jnp.dot(h, whh, preferred_element_type=jnp.float32))  # (BT, 4H)
            act = jnp.tanh(gates * g_scale) * g_scale + g_shift
            i_g = act[:, 0 * H:1 * H]
            f_g = act[:, 1 * H:2 * H]
            o_g = act[:, 2 * H:3 * H]
            g_g = act[:, 3 * H:4 * H]
            c = f_g * c + i_g * g_g
            h = o_g * jnp.tanh(c)
            hs.append(h)
        if layer + 1 < NUM_LAYERS:
            # batched input projection for the next layer from the full hidden
            # sequence, kept entirely in values (no VMEM scratch round-trip).
            # TODO(synk): train-mode inter-layer dropout would mask hseq here;
            # eval mode == identity.
            hseq = jnp.concatenate(hs, axis=0)              # (S*BT, H), time-major
            proj = (jnp.dot(hseq, wih_refs[layer + 1][...],
                            preferred_element_type=jnp.float32)
                    + bl_refs[layer + 1][...])

    # lstm_out[:, -1, :] -> Dropout (identity in eval) -> Linear
    out_ref[0] = (jnp.dot(h, wfc_ref[...], preferred_element_type=jnp.float32)
                  + bfc_ref[...])


# ------------------------------ weight prep ----------------------------------
def _prep_weights(params, channels):
    """Flatten/fuse conv weights and permute LSTM gate columns [i,f,g,o]->[i,f,o,g]."""
    H = params["whh"][0].shape[0]

    def perm_gates(w):
        return jnp.concatenate(
            [w[..., :2 * H], w[..., 3 * H:4 * H], w[..., 2 * H:3 * H]], axis=-1)

    C = channels
    w1f = params["w1"].reshape(3 * C, CNN_HID)
    # residual 1x1 conv folded into the centre-tap rows of the fused conv1 weight
    wr_blk = jnp.zeros((3 * C, CNN_OUT), jnp.float32).at[C:2 * C].set(params["wr"])
    w1r = jnp.concatenate([w1f, wr_blk], axis=1)                    # (3C, 96)
    b1r = jnp.concatenate([params["b1"], params["br"]], axis=1)     # (1, 96)
    w2f = params["w2"].reshape(3 * CNN_HID, CNN_OUT)

    wih0 = perm_gates(params["wih"][0])
    return [w1r, b1r, w2f, params["b2"],
            wih0[:CNN_OUT], wih0[CNN_OUT:], perm_gates(params["bl"][0]),
            perm_gates(params["whh"][0]),
            perm_gates(params["wih"][1]), perm_gates(params["whh"][1]),
            perm_gates(params["bl"][1]),
            perm_gates(params["wih"][2]), perm_gates(params["whh"][2]),
            perm_gates(params["bl"][2]),
            params["wfc"], params["bfc"]]


# ------------------------------ full forward ---------------------------------
@functools.partial(jax.jit, static_argnames=("b_tile",))
def cnn_lstm_forward(order_footprint, scalar_features, params, b_tile=None):
    B, S, P, C = order_footprint.shape
    if scalar_features.shape[-1] != SCALAR_SIZE:
        raise ValueError(
            f"Expected scalar_features with last dim 9, got {scalar_features.shape[-1]}")
    assert len(params["wih"]) == NUM_LAYERS == 3
    O = params["bfc"].shape[-1]

    # Batch tile per grid step.  Default: the whole batch in ONE grid step (best
    # on v5e/v6e single-TensorCore chips).  On v7x pass b_tile=ceil(B/2) so the
    # "parallel" grid axis gives each of the 2 TensorCores half the batch.
    if b_tile is None:
        b_tile = B
    nt = -(-B // b_tile)
    b_pad = nt * b_tile
    if b_pad != B:
        order_footprint = jnp.pad(order_footprint,
                                  ((0, b_pad - B), (0, 0), (0, 0), (0, 0)))
        scalar_features = jnp.pad(scalar_features, ((0, b_pad - B), (0, 0), (0, 0)))

    # torch `.view(B*S, channels, price_levels)` is a pure reshape: the trailing
    # (P, C) block is reinterpreted as (C, P).  Reproduce that exactly, then lay
    # rows out (tile, t, b_in_tile, conv_pos) so every grid step gets one
    # contiguous, already time-major slab (no in-kernel transpose / gather).
    x = order_footprint.reshape(b_pad, S, C, P)
    x = x.reshape(nt, b_tile, S, C, P).transpose(0, 2, 1, 4, 3)     # (nt,S,BT,P,C)
    x_rows = x.reshape(nt * S * b_tile * P, C)

    scal = scalar_features.reshape(nt, b_tile, S, SCALAR_SIZE).transpose(0, 2, 1, 3)
    scal_rows = scal.reshape(nt * S * b_tile, SCALAR_SIZE)

    weights = _prep_weights(params, C)

    def w_spec(a):
        nd = a.ndim
        return pl.BlockSpec(a.shape, lambda g, nd=nd: (0,) * nd)

    out = pl.pallas_call(
        functools.partial(_fused_kernel, seq_len=S, price_levels=P, b_tile=b_tile),
        out_shape=jax.ShapeDtypeStruct((nt, b_tile, O), jnp.float32),
        grid=(nt,),
        in_specs=[pl.BlockSpec((S * b_tile * P, C), lambda g: (g, 0)),
                  pl.BlockSpec((S * b_tile, SCALAR_SIZE), lambda g: (g, 0))]
                 + [w_spec(w) for w in weights],
        out_specs=pl.BlockSpec((1, b_tile, O), lambda g: (g, 0, 0)),
        compiler_params=pltpu.CompilerParams(dimension_semantics=("parallel",)),
    )(x_rows, scal_rows, *weights)
    return out.reshape(b_pad, O)[:B]


# ------------------------------ parameters -----------------------------------
def init_params(key, channels, scalar_size, hidden, num_layers, out_size):
    keys = iter(jax.random.split(key, 32))

    def u(k, shape, fan_in):
        s = float(fan_in) ** -0.5
        return jax.random.uniform(k, shape, jnp.float32, -s, s)

    p = {}
    p["w1"] = u(next(keys), (3, channels, CNN_HID), 3 * channels)
    p["b1"] = u(next(keys), (1, CNN_HID), 3 * channels)
    p["w2"] = u(next(keys), (3, CNN_HID, CNN_OUT), 3 * CNN_HID)
    p["b2"] = u(next(keys), (1, CNN_OUT), 3 * CNN_HID)
    p["wr"] = u(next(keys), (channels, CNN_OUT), channels)
    p["br"] = u(next(keys), (1, CNN_OUT), channels)
    d_in = CNN_OUT + scalar_size
    wih, whh, bl = [], [], []
    for l in range(num_layers):
        in_l = d_in if l == 0 else hidden
        wih.append(u(next(keys), (in_l, 4 * hidden), hidden))
        whh.append(u(next(keys), (hidden, 4 * hidden), hidden))
        # b_ih + b_hh folded together (sum both when porting real torch weights)
        bl.append(u(next(keys), (1, 4 * hidden), hidden))
    p["wih"], p["whh"], p["bl"] = wih, whh, bl
    p["wfc"] = u(next(keys), (hidden, out_size), hidden)
    p["bfc"] = u(next(keys), (1, out_size), hidden)
    return p


# ------------------------- pure-JAX reference --------------------------------
def reference_forward(order_footprint, scalar_features, params):
    B, S, P, C = order_footprint.shape
    x = jnp.transpose(order_footprint.reshape(B * S, C, P), (0, 2, 1))   # (N, P, C)

    def conv3(h, w, b):
        L = h.shape[1]
        hp = jnp.pad(h, ((0, 0), (1, 1), (0, 0)))
        acc = b[None]
        for k in range(3):
            acc = acc + jnp.einsum("nlc,cf->nlf", hp[:, k:k + L, :], w[k])
        return acc

    h1 = jax.nn.relu(conv3(x, params["w1"], params["b1"]))
    h2 = jax.nn.relu(conv3(h1, params["w2"], params["b2"]))
    main = jnp.max(h2, axis=1)
    res = jnp.max(jnp.einsum("nlc,cf->nlf", x, params["wr"]) + params["br"][None], axis=1)
    cnn_out = (main + res).reshape(B, S, CNN_OUT)

    lstm_in = jnp.concatenate([cnn_out, scalar_features], axis=2)
    H = params["whh"][0].shape[0]
    h = [jnp.zeros((B, H)) for _ in range(NUM_LAYERS)]
    c = [jnp.zeros((B, H)) for _ in range(NUM_LAYERS)]
    for t in range(lstm_in.shape[1]):
        inp_t = lstm_in[:, t, :]
        for l in range(NUM_LAYERS):
            gates = inp_t @ params["wih"][l] + h[l] @ params["whh"][l] + params["bl"][l]
            i_g = jax.nn.sigmoid(gates[:, :H])
            f_g = jax.nn.sigmoid(gates[:, H:2 * H])
            g_g = jnp.tanh(gates[:, 2 * H:3 * H])
            o_g = jax.nn.sigmoid(gates[:, 3 * H:])
            c[l] = f_g * c[l] + i_g * g_g
            h[l] = o_g * jnp.tanh(c[l])
            inp_t = h[l]
    return h[-1] @ params["wfc"] + params["bfc"]


# ----------------------------------- main -------------------------------------
if __name__ == "__main__":
    key = jax.random.PRNGKey(0)
    kx, ks, kp = jax.random.split(key, 3)

    B, S, P, C = 2, 8, 16, 4          # batch, seq, price_levels, channels
    hidden, out_size = 32, 30

    order_footprint = jax.random.normal(kx, (B, S, P, C), jnp.float32)
    scalar_features = jax.random.normal(ks, (B, S, SCALAR_SIZE), jnp.float32)
    params = init_params(kp, C, SCALAR_SIZE, hidden, NUM_LAYERS, out_size)

    out = jax.block_until_ready(cnn_lstm_forward(order_footprint, scalar_features, params))
    ref = reference_forward(order_footprint, scalar_features, params)

    assert out.shape == (B, out_size), out.shape
    max_err = float(jnp.max(jnp.abs(out - ref)))
    assert max_err < 2e-3, f"max abs err {max_err}"
    print("KERNEL_OK")
</pallas_src>

<mosaic_0001>
module attributes {stable_mosaic.version = 11 : i64} {
  func.func @_fused_kernel(%arg0: i32, %arg1: memref<256x4xf32, #tpu.memory_space<vmem>>, %arg2: memref<16x9xf32, #tpu.memory_space<vmem>>, %arg3: memref<12x96xf32, #tpu.memory_space<vmem>>, %arg4: memref<1x96xf32, #tpu.memory_space<vmem>>, %arg5: memref<96x64xf32, #tpu.memory_space<vmem>>, %arg6: memref<1x64xf32, #tpu.memory_space<vmem>>, %arg7: memref<64x128xf32, #tpu.memory_space<vmem>>, %arg8: memref<9x128xf32, #tpu.memory_space<vmem>>, %arg9: memref<1x128xf32, #tpu.memory_space<vmem>>, %arg10: memref<32x128xf32, #tpu.memory_space<vmem>>, %arg11: memref<32x128xf32, #tpu.memory_space<vmem>>, %arg12: memref<32x128xf32, #tpu.memory_space<vmem>>, %arg13: memref<1x128xf32, #tpu.memory_space<vmem>>, %arg14: memref<32x128xf32, #tpu.memory_space<vmem>>, %arg15: memref<32x128xf32, #tpu.memory_space<vmem>>, %arg16: memref<1x128xf32, #tpu.memory_space<vmem>>, %arg17: memref<32x30xf32, #tpu.memory_space<vmem>>, %arg18: memref<1x30xf32, #tpu.memory_space<vmem>>, %arg19: memref<1x2x30xf32, #tpu.memory_space<vmem>>) attributes {dimension_semantics = [#tpu.dimension_semantics<parallel>], iteration_bounds = array<i64: 1>, scalar_prefetch = 0 : i64, scratch_operands = 0 : i64, tpu.core_type = #tpu.core_type<tc>, window_params = [{transform_indices = @transform_0, window_bounds = array<i64: 256, 4>}, {transform_indices = @transform_1, window_bounds = array<i64: 16, 9>}, {pipeline_mode = #tpu.pipeline_mode<synchronous>, transform_indices = @transform_2, window_bounds = array<i64: 12, 96>}, {pipeline_mode = #tpu.pipeline_mode<synchronous>, transform_indices = @transform_3, window_bounds = array<i64: 1, 96>}, {pipeline_mode = #tpu.pipeline_mode<synchronous>, transform_indices = @transform_4, window_bounds = array<i64: 96, 64>}, {pipeline_mode = #tpu.pipeline_mode<synchronous>, transform_indices = @transform_5, window_bounds = array<i64: 1, 64>}, {pipeline_mode = #tpu.pipeline_mode<synchronous>, transform_indices = @transform_6, window_bounds = array<i64: 64, 128>}, {pipeline_mode = #tpu.pipeline_mode<synchronous>, transform_indices = @transform_7, window_bounds = array<i64: 9, 128>}, {pipeline_mode = #tpu.pipeline_mode<synchronous>, transform_indices = @transform_8, window_bounds = array<i64: 1, 128>}, {pipeline_mode = #tpu.pipeline_mode<synchronous>, transform_indices = @transform_9, window_bounds = array<i64: 32, 128>}, {pipeline_mode = #tpu.pipeline_mode<synchronous>, transform_indices = @transform_10, window_bounds = array<i64: 32, 128>}, {pipeline_mode = #tpu.pipeline_mode<synchronous>, transform_indices = @transform_11, window_bounds = array<i64: 32, 128>}, {pipeline_mode = #tpu.pipeline_mode<synchronous>, transform_indices = @transform_12, window_bounds = array<i64: 1, 128>}, {pipeline_mode = #tpu.pipeline_mode<synchronous>, transform_indices = @transform_13, window_bounds = array<i64: 32, 128>}, {pipeline_mode = #tpu.pipeline_mode<synchronous>, transform_indices = @transform_14, window_bounds = array<i64: 32, 128>}, {pipeline_mode = #tpu.pipeline_mode<synchronous>, transform_indices = @transform_15, window_bounds = array<i64: 1, 128>}, {pipeline_mode = #tpu.pipeline_mode<synchronous>, transform_indices = @transform_16, window_bounds = array<i64: 32, 30>}, {pipeline_mode = #tpu.pipeline_mode<synchronous>, transform_indices = @transform_17, window_bounds = array<i64: 1, 30>}, {transform_indices = @transform_18, window_bounds = array<i64: 1, 2, 30>}]} {
    %c0 = arith.constant 0 : index
    %c0_0 = arith.constant 0 : index
    %0 = vector.load %arg1[%c0, %c0_0] : memref<256x4xf32, #tpu.memory_space<vmem>>, vector<256x4xf32>
    %1 = tpu.iota {dimensions = array<i32: 0>} : vector<256x1xi32>
    %c16_i32 = arith.constant 16 : i32
    %c0_i32 = arith.constant 0 : i32
    %2 = arith.cmpi eq, %c16_i32, %c0_i32 : i32
    %c1_i32 = arith.constant 1 : i32
    %3 = arith.select %2, %c1_i32, %c16_i32 : i32
    %4 = vector.broadcast %3 : i32 to vector<256x1xi32>
    %5 = arith.remsi %1, %4 : vector<256x1xi32>
    %c0_i32_1 = arith.constant 0 : i32
    %6 = vector.broadcast %c0_i32_1 : i32 to vector<256x1xi32>
    %7 = arith.cmpi ne, %5, %6 : vector<256x1xi32>
    %c0_i32_2 = arith.constant 0 : i32
    %8 = vector.broadcast %c0_i32_2 : i32 to vector<256x1xi32>
    %9 = arith.cmpi slt, %5, %8 : vector<256x1xi32>
    %c0_i32_3 = arith.constant 0 : i32
    %10 = arith.cmpi slt, %3, %c0_i32_3 : i32
    %11 = vector.broadcast %10 : i1 to vector<256x1xi1>
    %12 = vector.broadcast %11 : vector<256x1xi1> to vector<256x1xi1>
    %13 = arith.xori %9, %12 : vector<256x1xi1>
    %14 = arith.andi %13, %7 : vector<256x1xi1>
    %15 = vector.broadcast %3 : i32 to vector<256x1xi32>
    %16 = arith.addi %5, %15 : vector<256x1xi32>
    %17 = arith.select %14, %16, %5 : vector<256x1xi1>, vector<256x1xi32>
    %c0_i32_4 = arith.constant 0 : i32
    %18 = vector.broadcast %c0_i32_4 : i32 to vector<256x1xi32>
    %19 = arith.cmpi eq, %17, %18 : vector<256x1xi32>
    %c15_i32 = arith.constant 15 : i32
    %20 = vector.broadcast %c15_i32 : i32 to vector<256x1xi32>
    %21 = arith.cmpi eq, %17, %20 : vector<256x1xi32>
    %c1_i32_5 = arith.constant 1 : i32
    %22 = tpu.dynamic_rotate %0 by %c1_i32_5 dim 0 : vector<256x4xf32>, i32 -> vector<256x4xf32>
    %cst = arith.constant 0.000000e+00 : f32
    %23 = vector.shape_cast %19 : vector<256x1xi1> to vector<256x1xi1>
    %24 = vector.broadcast %23 : vector<256x1xi1> to vector<256x4xi1>
    %25 = vector.broadcast %cst : f32 to vector<256x4xf32>
    %26 = arith.select %24, %25, %22 : vector<256x4xi1>, vector<256x4xf32>
    %c255_i32 = arith.constant 255 : i32
    %27 = tpu.dynamic_rotate %0 by %c255_i32 dim 0 : vector<256x4xf32>, i32 -> vector<256x4xf32>
    %cst_6 = arith.constant 0.000000e+00 : f32
    %28 = vector.shape_cast %21 : vector<256x1xi1> to vector<256x1xi1>
    %29 = vector.broadcast %28 : vector<256x1xi1> to vector<256x4xi1>
    %30 = vector.broadcast %cst_6 : f32 to vector<256x4xf32>
    %31 = arith.select %29, %30, %27 : vector<256x4xi1>, vector<256x4xf32>
    %32 = tpu.concatenate %26, %0, %31 in 1 : vector<256x4xf32>, vector<256x4xf32>, vector<256x4xf32> -> vector<256x12xf32>
    %c0_7 = arith.constant 0 : index
    %c0_8 = arith.constant 0 : index
    %33 = vector.load %arg3[%c0_7, %c0_8] : memref<12x96xf32, #tpu.memory_space<vmem>>, vector<12x96xf32>
    %cst_9 = arith.constant dense<0.000000e+00> : vector<256x96xf32>
    %34 = tpu.matmul %32, %33, %cst_9 {dimension_numbers = #tpu.dot_dimension_numbers<[1], [0], [0], [1], [0, 0, 1, 1], [], []>} : vector<256x12xf32>, vector<12x96xf32>, vector<256x96xf32> -> vector<256x96xf32>
    %c0_10 = arith.constant 0 : index
    %c0_11 = arith.constant 0 : index
    %35 = vector.load %arg4[%c0_10, %c0_11] : memref<1x96xf32, #tpu.memory_space<vmem>>, vector<1x96xf32>
    %36 = vector.broadcast %35 : vector<1x96xf32> to vector<256x96xf32>
    %37 = arith.addf %34, %36 : vector<256x96xf32>
    %38 = vector.extract_strided_slice %37 {offsets = [0, 0], sizes = [256, 32], strides = [1, 1]} : vector<256x96xf32> to vector<256x32xf32>
    %cst_12 = arith.constant 0.000000e+00 : f32
    %39 = vector.broadcast %cst_12 : f32 to vector<256x32xf32>
    %40 = arith.maximumf %38, %39 : vector<256x32xf32>
    %c1_i32_13 = arith.constant 1 : i32
    %41 = tpu.dynamic_rotate %40 by %c1_i32_13 dim 0 : vector<256x32xf32>, i32 -> vector<256x32xf32>
    %cst_14 = arith.constant 0.000000e+00 : f32
    %42 = vector.shape_cast %19 : vector<256x1xi1> to vector<256x1xi1>
    %43 = vector.broadcast %42 : vector<256x1xi1> to vector<256x32xi1>
    %44 = vector.broadcast %cst_14 : f32 to vector<256x32xf32>
    %45 = arith.select %43, %44, %41 : vector<256x32xi1>, vector<256x32xf32>
    %c255_i32_15 = arith.constant 255 : i32
    %46 = tpu.dynamic_rotate %40 by %c255_i32_15 dim 0 : vector<256x32xf32>, i32 -> vector<256x32xf32>
    %cst_16 = arith.constant 0.000000e+00 : f32
    %47 = vector.shape_cast %21 : vector<256x1xi1> to vector<256x1xi1>
    %48 = vector.broadcast %47 : vector<256x1xi1> to vector<256x32xi1>
    %49 = vector.broadcast %cst_16 : f32 to vector<256x32xf32>
    %50 = arith.select %48, %49, %46 : vector<256x32xi1>, vector<256x32xf32>
    %51 = tpu.concatenate %45, %40, %50 in 1 : vector<256x32xf32>, vector<256x32xf32>, vector<256x32xf32> -> vector<256x96xf32>
    %c0_17 = arith.constant 0 : index
    %c0_18 = arith.constant 0 : index
    %52 = vector.load %arg5[%c0_17, %c0_18] : memref<96x64xf32, #tpu.memory_space<vmem>>, vector<96x64xf32>
    %cst_19 = arith.constant dense<0.000000e+00> : vector<256x64xf32>
    %53 = tpu.matmul %51, %52, %cst_19 {dimension_numbers = #tpu.dot_dimension_numbers<[1], [0], [0], [1], [0, 0, 1, 1], [], []>} : vector<256x96xf32>, vector<96x64xf32>, vector<256x64xf32> -> vector<256x64xf32>
    %c0_20 = arith.constant 0 : index
    %c0_21 = arith.constant 0 : index
    %54 = vector.load %arg6[%c0_20, %c0_21] : memref<1x64xf32, #tpu.memory_space<vmem>>, vector<1x64xf32>
    %55 = vector.broadcast %54 : vector<1x64xf32> to vector<256x64xf32>
    %56 = arith.addf %53, %55 : vector<256x64xf32>
    %cst_22 = arith.constant 0.000000e+00 : f32
    %57 = vector.broadcast %cst_22 : f32 to vector<256x64xf32>
    %58 = arith.maximumf %56, %57 : vector<256x64xf32>
    %59 = vector.shape_cast %37 : vector<256x96xf32> to vector<16x16x96xf32>
    %cst_23 = arith.constant dense<0xFF800000> : vector<16x96xf32>
    %60 = vector.multi_reduction <maximumf>, %59, %cst_23 [1] : vector<16x16x96xf32> to vector<16x96xf32>
    %61 = vector.shape_cast %58 : vector<256x64xf32> to vector<16x16x64xf32>
    %cst_24 = arith.constant dense<0xFF800000> : vector<16x64xf32>
    %62 = vector.multi_reduction <maximumf>, %61, %cst_24 [1] : vector<16x16x64xf32> to vector<16x64xf32>
    %63 = vector.extract_strided_slice %60 {offsets = [0, 32], sizes = [16, 64], strides = [1, 1]} : vector<16x96xf32> to vector<16x64xf32>
    %64 = arith.addf %62, %63 : vector<16x64xf32>
    %c0_25 = arith.constant 0 : index
    %c0_26 = arith.constant 0 : index
    %65 = vector.load %arg2[%c0_25, %c0_26] : memref<16x9xf32, #tpu.memory_space<vmem>>, vector<16x9xf32>
    %c0_27 = arith.constant 0 : index
    %c0_28 = arith.constant 0 : index
    %66 = vector.load %arg7[%c0_27, %c0_28] : memref<64x128xf32, #tpu.memory_space<vmem>>, vector<64x128xf32>
    %cst_29 = arith.constant dense<0.000000e+00> : vector<16x128xf32>
    %67 = tpu.matmul %64, %66, %cst_29 {dimension_numbers = #tpu.dot_dimension_numbers<[1], [0], [0], [1], [0, 0, 1, 1], [], []>} : vector<16x64xf32>, vector<64x128xf32>, vector<16x128xf32> -> vector<16x128xf32>
    %c0_30 = arith.constant 0 : index
    %c0_31 = arith.constant 0 : index
    %68 = vector.load %arg8[%c0_30, %c0_31] : memref<9x128xf32, #tpu.memory_space<vmem>>, vector<9x128xf32>
    %cst_32 = arith.constant dense<0.000000e+00> : vector<16x128xf32>
    %69 = tpu.matmul %65, %68, %cst_32 {dimension_numbers = #tpu.dot_dimension_numbers<[1], [0], [0], [1], [0, 0, 1, 1], [], []>} : vector<16x9xf32>, vector<9x128xf32>, vector<16x128xf32> -> vector<16x128xf32>
    %70 = arith.addf %67, %69 : vector<16x128xf32>
    %c0_33 = arith.constant 0 : index
    %c0_34 = arith.constant 0 : index
    %71 = vector.load %arg9[%c0_33, %c0_34] : memref<1x128xf32, #tpu.memory_space<vmem>>, vector<1x128xf32>
    %72 = vector.broadcast %71 : vector<1x128xf32> to vector<16x128xf32>
    %73 = arith.addf %70, %72 : vector<16x128xf32>
    %74 = tpu.iota {dimensions = array<i32: 1>} : vector<1x128xi32>
    %c96_i32 = arith.constant 96 : i32
    %75 = vector.broadcast %c96_i32 : i32 to vector<1x128xi32>
    %76 = arith.cmpi slt, %74, %75 : vector<1x128xi32>
    %cst_35 = arith.constant 5.000000e-01 : f32
    %cst_36 = arith.constant 1.000000e+00 : f32
    %77 = vector.broadcast %cst_35 : f32 to vector<1x128xf32>
    %78 = vector.broadcast %cst_36 : f32 to vector<1x128xf32>
    %79 = arith.select %76, %77, %78 : vector<1x128xi1>, vector<1x128xf32>
    %cst_37 = arith.constant 5.000000e-01 : f32
    %cst_38 = arith.constant 0.000000e+00 : f32
    %80 = vector.broadcast %cst_37 : f32 to vector<1x128xf32>
    %81 = vector.broadcast %cst_38 : f32 to vector<1x128xf32>
    %82 = arith.select %76, %80, %81 : vector<1x128xi1>, vector<1x128xf32>
    %c0_39 = arith.constant 0 : index
    %c0_40 = arith.constant 0 : index
    %83 = vector.load %arg10[%c0_39, %c0_40] : memref<32x128xf32, #tpu.memory_space<vmem>>, vector<32x128xf32>
    %cst_41 = arith.constant 0.000000e+00 : f32
    %84 = vector.broadcast %cst_41 : f32 to vector<2x32xf32>
    %cst_42 = arith.constant 0.000000e+00 : f32
    %85 = vector.broadcast %cst_42 : f32 to vector<2x32xf32>
    %86 = vector.extract_strided_slice %73 {offsets = [0, 0], sizes = [2, 128], strides = [1, 1]} : vector<16x128xf32> to vector<2x128xf32>
    %cst_43 = arith.constant dense<0.000000e+00> : vector<2x128xf32>
    %87 = tpu.matmul %84, %83, %cst_43 {dimension_numbers = #tpu.dot_dimension_numbers<[1], [0], [0], [1], [0, 0, 1, 1], [], []>} : vector<2x32xf32>, vector<32x128xf32>, vector<2x128xf32> -> vector<2x128xf32>
    %88 = arith.addf %86, %87 : vector<2x128xf32>
    %89 = vector.broadcast %79 : vector<1x128xf32> to vector<2x128xf32>
    %90 = arith.mulf %88, %89 : vector<2x128xf32>
    %91 = math.tanh %90 : vector<2x128xf32>
    %92 = vector.broadcast %79 : vector<1x128xf32> to vector<2x128xf32>
    %93 = arith.mulf %91, %92 : vector<2x128xf32>
    %94 = vector.broadcast %82 : vector<1x128xf32> to vector<2x128xf32>
    %95 = arith.addf %93, %94 : vector<2x128xf32>
    %96 = vector.extract_strided_slice %95 {offsets = [0, 0], sizes = [2, 32], strides = [1, 1]} : vector<2x128xf32> to vector<2x32xf32>
    %97 = vector.extract_strided_slice %95 {offsets = [0, 32], sizes = [2, 32], strides = [1, 1]} : vector<2x128xf32> to vector<2x32xf32>
    %98 = vector.extract_strided_slice %95 {offsets = [0, 64], sizes = [2, 32], strides = [1, 1]} : vector<2x128xf32> to vector<2x32xf32>
    %99 = vector.extract_strided_slice %95 {offsets = [0, 96], sizes = [2, 32], strides = [1, 1]} : vector<2x128xf32> to vector<2x32xf32>
    %100 = arith.mulf %97, %85 : vector<2x32xf32>
    %101 = arith.mulf %96, %99 : vector<2x32xf32>
    %102 = arith.addf %100, %101 : vector<2x32xf32>
    %103 = math.tanh %102 : vector<2x32xf32>
    %104 = arith.mulf %98, %103 : vector<2x32xf32>
    %105 = vector.extract_strided_slice %73 {offsets = [2, 0], sizes = [2, 128], strides = [1, 1]} : vector<16x128xf32> to vector<2x128xf32>
    %cst_44 = arith.constant dense<0.000000e+00> : vector<2x128xf32>
    %106 = tpu.matmul %104, %83, %cst_44 {dimension_numbers = #tpu.dot_dimension_numbers<[1], [0], [0], [1], [0, 0, 1, 1], [], []>} : vector<2x32xf32>, vector<32x128xf32>, vector<2x128xf32> -> vector<2x128xf32>
    %107 = arith.addf %105, %106 : vector<2x128xf32>
    %108 = vector.broadcast %79 : vector<1x128xf32> to vector<2x128xf32>
    %109 = arith.mulf %107, %108 : vector<2x128xf32>
    %110 = math.tanh %109 : vector<2x128xf32>
    %111 = vector.broadcast %79 : vector<1x128xf32> to vector<2x128xf32>
    %112 = arith.mulf %110, %111 : vector<2x128xf32>
    %113 = vector.broadcast %82 : vector<1x128xf32> to vector<2x128xf32>
    %114 = arith.addf %112, %113 : vector<2x128xf32>
    %115 = vector.extract_strided_slice %114 {offsets = [0, 0], sizes = [2, 32], strides = [1, 1]} : vector<2x128xf32> to vector<2x32xf32>
    %116 = vector.extract_strided_slice %114 {offsets = [0, 32], sizes = [2, 32], strides = [1, 1]} : vector<2x128xf32> to vector<2x32xf32>
    %117 = vector.extract_strided_slice %114 {offsets = [0, 64], sizes = [2, 32], strides = [1, 1]} : vector<2x128xf32> to vector<2x32xf32>
    %118 = vector.extract_strided_slice %114 {offsets = [0, 96], sizes = [2, 32], strides = [1, 1]} : vector<2x128xf32> to vector<2x32xf32>
    %119 = arith.mulf %116, %102 : vector<2x32xf32>
    %120 = arith.mulf %115, %118 : vector<2x32xf32>
    %121 = arith.addf %119, %120 : vector<2x32xf32>
    %122 = math.tanh %121 : vector<2x32xf32>
    %123 = arith.mulf %117, %122 : vector<2x32xf32>
    %124 = vector.extract_strided_slice %73 {offsets = [4, 0], sizes = [2, 128], strides = [1, 1]} : vector<16x128xf32> to vector<2x128xf32>
    %cst_45 = arith.constant dense<0.000000e+00> : vector<2x128xf32>
    %125 = tpu.matmul %123, %83, %cst_45 {dimension_numbers = #tpu.dot_dimension_numbers<[1], [0], [0], [1], [0, 0, 1, 1], [], []>} : vector<2x32xf32>, vector<32x128xf32>, vector<2x128xf32> -> vector<2x128xf32>
    %126 = arith.addf %124, %125 : vector<2x128xf32>
    %127 = vector.broadcast %79 : vector<1x128xf32> to vector<2x128xf32>
    %128 = arith.mulf %126, %127 : vector<2x128xf32>
    %129 = math.tanh %128 : vector<2x128xf32>
    %130 = vector.broadcast %79 : vector<1x128xf32> to vector<2x128xf32>
    %131 = arith.mulf %129, %130 : vector<2x128xf32>
    %132 = vector.broadcast %82 : vector<1x128xf32> to vector<2x128xf32>
    %133 = arith.addf %131, %132 : vector<2x128xf32>
    %134 = vector.extract_strided_slice %133 {offsets = [0, 0], sizes = [2, 32], strides = [1, 1]} : vector<2x128xf32> to vector<2x32xf32>
    %135 = vector.extract_strided_slice %133 {offsets = [0, 32], sizes = [2, 32], strides = [1, 1]} : vector<2x128xf32> to vector<2x32xf32>
    %136 = vector.extract_strided_slice %133 {offsets = [0, 64], sizes = [2, 32], strides = [1, 1]} : vector<2x128xf32> to vector<2x32xf32>
    %137 = vector.extract_strided_slice %133 {offsets = [0, 96], sizes = [2, 32], strides = [1, 1]} : vector<2x128xf32> to vector<2x32xf32>
    %138 = arith.mulf %135, %121 : vector<2x32xf32>
    %139 = arith.mulf %134, %137 : vector<2x32xf32>
    %140 = arith.addf %138, %139 : vector<2x32xf32>
    %141 = math.tanh %140 : vector<2x32xf32>
    %142 = arith.mulf %136, %141 : vector<2x32xf32>
    %143 = vector.extract_strided_slice %73 {offsets = [6, 0], sizes = [2, 128], strides = [1, 1]} : vector<16x128xf32> to vector<2x128xf32>
    %cst_46 = arith.constant dense<0.000000e+00> : vector<2x128xf32>
    %144 = tpu.matmul %142, %83, %cst_46 {dimension_numbers = #tpu.dot_dimension_numbers<[1], [0], [0], [1], [0, 0, 1, 1], [], []>} : vector<2x32xf32>, vector<32x128xf32>, vector<2x128xf32> -> vector<2x128xf32>
    %145 = arith.addf %143, %144 : vector<2x128xf32>
    %146 = vector.broadcast %79 : vector<1x128xf32> to vector<2x128xf32>
    %147 = arith.mulf %145, %146 : vector<2x128xf32>
    %148 = math.tanh %147 : vector<2x128xf32>
    %149 = vector.broadcast %79 : vector<1x128xf32> to vector<2x128xf32>
    %150 = arith.mulf %148, %149 : vector<2x128xf32>
    %151 = vector.broadcast %82 : vector<1x128xf32> to vector<2x128xf32>
    %152 = arith.addf %150, %151 : vector<2x128xf32>
    %153 = vector.extract_strided_slice %152 {offsets = [0, 0], sizes = [2, 32], strides = [1, 1]} : vector<2x128xf32> to vector<2x32xf32>
    %154 = vector.extract_strided_slice %152 {offsets = [0, 32], sizes = [2, 32], strides = [1, 1]} : vector<2x128xf32> to vector<2x32xf32>
    %155 = vector.extract_strided_slice %152 {offsets = [0, 64], sizes = [2, 32], strides = [1, 1]} : vector<2x128xf32> to vector<2x32xf32>
    %156 = vector.extract_strided_slice %152 {offsets = [0, 96], sizes = [2, 32], strides = [1, 1]} : vector<2x128xf32> to vector<2x32xf32>
    %157 = arith.mulf %154, %140 : vector<2x32xf32>
    %158 = arith.mulf %153, %156 : vector<2x32xf32>
    %159 = arith.addf %157, %158 : vector<2x32xf32>
    %160 = math.tanh %159 : vector<2x32xf32>
    %161 = arith.mulf %155, %160 : vector<2x32xf32>
    %162 = vector.extract_strided_slice %73 {offsets = [8, 0], sizes = [2, 128], strides = [1, 1]} : vector<16x128xf32> to vector<2x128xf32>
    %cst_47 = arith.constant dense<0.000000e+00> : vector<2x128xf32>
    %163 = tpu.matmul %161, %83, %cst_47 {dimension_numbers = #tpu.dot_dimension_numbers<[1], [0], [0], [1], [0, 0, 1, 1], [], []>} : vector<2x32xf32>, vector<32x128xf32>, vector<2x128xf32> -> vector<2x128xf32>
    %164 = arith.addf %162, %163 : vector<2x128xf32>
    %165 = vector.broadcast %79 : vector<1x128xf32> to vector<2x128xf32>
    %166 = arith.mulf %164, %165 : vector<2x128xf32>
    %167 = math.tanh %166 : vector<2x128xf32>
    %168 = vector.broadcast %79 : vector<1x128xf32> to vector<2x128xf32>
    %169 = arith.mulf %167, %168 : vector<2x128xf32>
    %170 = vector.broadcast %82 : vector<1x128xf32> to vector<2x128xf32>
    %171 = arith.addf %169, %170 : vector<2x128xf32>
    %172 = vector.extract_strided_slice %171 {offsets = [0, 0], sizes = [2, 32], strides = [1, 1]} : vector<2x128xf32> to vector<2x32xf32>
    %173 = vector.extract_strided_slice %171 {offsets = [0, 32], sizes = [2, 32], strides = [1, 1]} : vector<2x128xf32> to vector<2x32xf32>
    %174 = vector.extract_strided_slice %171 {offsets = [0, 64], sizes = [2, 32], strides = [1, 1]} : vector<2x128xf32> to vector<2x32xf32>
    %175 = vector.extract_strided_slice %171 {offsets = [0, 96], sizes = [2, 32], strides = [1, 1]} : vector<2x128xf32> to vector<2x32xf32>
    %176 = arith.mulf %173, %159 : vector<2x32xf32>
    %177 = arith.mulf %172, %175 : vector<2x32xf32>
    %178 = arith.addf %176, %177 : vector<2x32xf32>
    %179 = math.tanh %178 : vector<2x32xf32>
    %180 = arith.mulf %174, %179 : vector<2x32xf32>
    %181 = vector.extract_strided_slice %73 {offsets = [10, 0], sizes = [2, 128], strides = [1, 1]} : vector<16x128xf32> to vector<2x128xf32>
    %cst_48 = arith.constant dense<0.000000e+00> : vector<2x128xf32>
    %182 = tpu.matmul %180, %83, %cst_48 {dimension_numbers = #tpu.dot_dimension_numbers<[1], [0], [0], [1], [0, 0, 1, 1], [], []>} : vector<2x32xf32>, vector<32x128xf32>, vector<2x128xf32> -> vector<2x128xf32>
    %183 = arith.addf %181, %182 : vector<2x128xf32>
    %184 = vector.broadcast %79 : vector<1x128xf32> to vector<2x128xf32>
    %185 = arith.mulf %183, %184 : vector<2x128xf32>
    %186 = math.tanh %185 : vector<2x128xf32>
    %187 = vector.broadcast %79 : vector<1x128xf32> to vector<2x128xf32>
    %188 = arith.mulf %186, %187 : vector<2x128xf32>
    %189 = vector.broadcast %82 : vector<1x128xf32> to vector<2x128xf32>
    %190 = arith.addf %188, %189 : vector<2x128xf32>
    %191 = vector.extract_strided_slice %190 {offsets = [0, 0], sizes = [2, 32], strides = [1, 1]} : vector<2x128xf32> to vector<2x32xf32>
    %192 = vector.extract_strided_slice %190 {offsets = [0, 32], sizes = [2, 32], strides = [1, 1]} : vector<2x128xf32> to vector<2x32xf32>
    %193 = vector.extract_strided_slice %190 {offsets = [0, 64], sizes = [2, 32], strides = [1, 1]} : vector<2x128xf32> to vector<2x32xf32>
    %194 = vector.extract_strided_slice %190 {offsets = [0, 96], sizes = [2, 32], strides = [1, 1]} : vector<2x128xf32> to vector<2x32xf32>
    %195 = arith.mulf %192, %178 : vector<2x32xf32>
    %196 = arith.mulf %191, %194 : vector<2x32xf32>
    %197 = arith.addf %195, %196 : vector<2x32xf32>
    %198 = math.tanh %197 : vector<2x32xf32>
    %199 = arith.mulf %193, %198 : vector<2x32xf32>
    %200 = vector.extract_strided_slice %73 {offsets = [12, 0], sizes = [2, 128], strides = [1, 1]} : vector<16x128xf32> to vector<2x128xf32>
    %cst_49 = arith.constant dense<0.000000e+00> : vector<2x128xf32>
    %201 = tpu.matmul %199, %83, %cst_49 {dimension_numbers = #tpu.dot_dimension_numbers<[1], [0], [0], [1], [0, 0, 1, 1], [], []>} : vector<2x32xf32>, vector<32x128xf32>, vector<2x128xf32> -> vector<2x128xf32>
    %202 = arith.addf %200, %201 : vector<2x128xf32>
    %203 = vector.broadcast %79 : vector<1x128xf32> to vector<2x128xf32>
    %204 = arith.mulf %202, %203 : vector<2x128xf32>
    %205 = math.tanh %204 : vector<2x128xf32>
    %206 = vector.broadcast %79 : vector<1x128xf32> to vector<2x128xf32>
    %207 = arith.mulf %205, %206 : vector<2x128xf32>
    %208 = vector.broadcast %82 : vector<1x128xf32> to vector<2x128xf32>
    %209 = arith.addf %207, %208 : vector<2x128xf32>
    %210 = vector.extract_strided_slice %209 {offsets = [0, 0], sizes = [2, 32], strides = [1, 1]} : vector<2x128xf32> to vector<2x32xf32>
    %211 = vector.extract_strided_slice %209 {offsets = [0, 32], sizes = [2, 32], strides = [1, 1]} : vector<2x128xf32> to vector<2x32xf32>
    %212 = vector.extract_strided_slice %209 {offsets = [0, 64], sizes = [2, 32], strides = [1, 1]} : vector<2x128xf32> to vector<2x32xf32>
    %213 = vector.extract_strided_slice %209 {offsets = [0, 96], sizes = [2, 32], strides = [1, 1]} : vector<2x128xf32> to vector<2x32xf32>
    %214 = arith.mulf %211, %197 : vector<2x32xf32>
    %215 = arith.mulf %210, %213 : vector<2x32xf32>
    %216 = arith.addf %214, %215 : vector<2x32xf32>
    %217 = math.tanh %216 : vector<2x32xf32>
    %218 = arith.mulf %212, %217 : vector<2x32xf32>
    %219 = vector.extract_strided_slice %73 {offsets = [14, 0], sizes = [2, 128], strides = [1, 1]} : vector<16x128xf32> to vector<2x128xf32>
    %cst_50 = arith.constant dense<0.000000e+00> : vector<2x128xf32>
    %220 = tpu.matmul %218, %83, %cst_50 {dimension_numbers = #tpu.dot_dimension_numbers<[1], [0], [0], [1], [0, 0, 1, 1], [], []>} : vector<2x32xf32>, vector<32x128xf32>, vector<2x128xf32> -> vector<2x128xf32>
    %221 = arith.addf %219, %220 : vector<2x128xf32>
    %222 = vector.broadcast %79 : vector<1x128xf32> to vector<2x128xf32>
    %223 = arith.mulf %221, %222 : vector<2x128xf32>
    %224 = math.tanh %223 : vector<2x128xf32>
    %225 = vector.broadcast %79 : vector<1x128xf32> to vector<2x128xf32>
    %226 = arith.mulf %224, %225 : vector<2x128xf32>
    %227 = vector.broadcast %82 : vector<1x128xf32> to vector<2x128xf32>
    %228 = arith.addf %226, %227 : vector<2x128xf32>
    %229 = vector.extract_strided_slice %228 {offsets = [0, 0], sizes = [2, 32], strides = [1, 1]} : vector<2x128xf32> to vector<2x32xf32>
    %230 = vector.extract_strided_slice %228 {offsets = [0, 32], sizes = [2, 32], strides = [1, 1]} : vector<2x128xf32> to vector<2x32xf32>
    %231 = vector.extract_strided_slice %228 {offsets = [0, 64], sizes = [2, 32], strides = [1, 1]} : vector<2x128xf32> to vector<2x32xf32>
    %232 = vector.extract_strided_slice %228 {offsets = [0, 96], sizes = [2, 32], strides = [1, 1]} : vector<2x128xf32> to vector<2x32xf32>
    %233 = arith.mulf %230, %216 : vector<2x32xf32>
    %234 = arith.mulf %229, %232 : vector<2x32xf32>
    %235 = arith.addf %233, %234 : vector<2x32xf32>
    %236 = math.tanh %235 : vector<2x32xf32>
    %237 = arith.mulf %231, %236 : vector<2x32xf32>
    %238 = tpu.concatenate %104, %123, %142, %161, %180, %199, %218, %237 in 0 : vector<2x32xf32>, vector<2x32xf32>, vector<2x32xf32>, vector<2x32xf32>, vector<2x32xf32>, vector<2x32xf32>, vector<2x32xf32>, vector<2x32xf32> -> vector<16x32xf32>
    %c0_51 = arith.constant 0 : index
    %c0_52 = arith.constant 0 : index
    %239 = vector.load %arg11[%c0_51, %c0_52] : memref<32x128xf32, #tpu.memory_space<vmem>>, vector<32x128xf32>
    %cst_53 = arith.constant dense<0.000000e+00> : vector<16x128xf32>
    %240 = tpu.matmul %238, %239, %cst_53 {dimension_numbers = #tpu.dot_dimension_numbers<[1], [0], [0], [1], [0, 0, 1, 1], [], []>} : vector<16x32xf32>, vector<32x128xf32>, vector<16x128xf32> -> vector<16x128xf32>
    %c0_54 = arith.constant 0 : index
    %c0_55 = arith.constant 0 : index
    %241 = vector.load %arg13[%c0_54, %c0_55] : memref<1x128xf32, #tpu.memory_space<vmem>>, vector<1x128xf32>
    %242 = vector.broadcast %241 : vector<1x128xf32> to vector<16x128xf32>
    %243 = arith.addf %240, %242 : vector<16x128xf32>
    %c0_56 = arith.constant 0 : index
    %c0_57 = arith.constant 0 : index
    %244 = vector.load %arg12[%c0_56, %c0_57] : memref<32x128xf32, #tpu.memory_space<vmem>>, vector<32x128xf32>
    %cst_58 = arith.constant 0.000000e+00 : f32
    %245 = vector.broadcast %cst_58 : f32 to vector<2x32xf32>
    %cst_59 = arith.constant 0.000000e+00 : f32
    %246 = vector.broadcast %cst_59 : f32 to vector<2x32xf32>
    %247 = vector.extract_strided_slice %243 {offsets = [0, 0], sizes = [2, 128], strides = [1, 1]} : vector<16x128xf32> to vector<2x128xf32>
    %cst_60 = arith.constant dense<0.000000e+00> : vector<2x128xf32>
    %248 = tpu.matmul %245, %244, %cst_60 {dimension_numbers = #tpu.dot_dimension_numbers<[1], [0], [0], [1], [0, 0, 1, 1], [], []>} : vector<2x32xf32>, vector<32x128xf32>, vector<2x128xf32> -> vector<2x128xf32>
    %249 = arith.addf %247, %248 : vector<2x128xf32>
    %250 = vector.broadcast %79 : vector<1x128xf32> to vector<2x128xf32>
    %251 = arith.mulf %249, %250 : vector<2x128xf32>
    %252 = math.tanh %251 : vector<2x128xf32>
    %253 = vector.broadcast %79 : vector<1x128xf32> to vector<2x128xf32>
    %254 = arith.mulf %252, %253 : vector<2x128xf32>
    %255 = vector.broadcast %82 : vector<1x128xf32> to vector<2x128xf32>
    %256 = arith.addf %254, %255 : vector<2x128xf32>
    %257 = vector.extract_strided_slice %256 {offsets = [0, 0], sizes = [2, 32], strides = [1, 1]} : vector<2x128xf32> to vector<2x32xf32>
    %258 = vector.extract_strided_slice %256 {offsets = [0, 32], sizes = [2, 32], strides = [1, 1]} : vector<2x128xf32> to vector<2x32xf32>
    %259 = vector.extract_strided_slice %256 {offsets = [0, 64], sizes = [2, 32], strides = [1, 1]} : vector<2x128xf32> to vector<2x32xf32>
    %260 = vector.extract_strided_slice %256 {offsets = [0, 96], sizes = [2, 32], strides = [1, 1]} : vector<2x128xf32> to vector<2x32xf32>
    %261 = arith.mulf %258, %246 : vector<2x32xf32>
    %262 = arith.mulf %257, %260 : vector<2x32xf32>
    %263 = arith.addf %261, %262 : vector<2x32xf32>
    %264 = math.tanh %263 : vector<2x32xf32>
    %265 = arith.mulf %259, %264 : vector<2x32xf32>
    %266 = vector.extract_strided_slice %243 {offsets = [2, 0], sizes = [2, 128], strides = [1, 1]} : vector<16x128xf32> to vector<2x128xf32>
    %cst_61 = arith.constant dense<0.000000e+00> : vector<2x128xf32>
    %267 = tpu.matmul %265, %244, %cst_61 {dimension_numbers = #tpu.dot_dimension_numbers<[1], [0], [0], [1], [0, 0, 1, 1], [], []>} : vector<2x32xf32>, vector<32x128xf32>, vector<2x128xf32> -> vector<2x128xf32>
    %268 = arith.addf %266, %267 : vector<2x128xf32>
    %269 = vector.broadcast %79 : vector<1x128xf32> to vector<2x128xf32>
    %270 = arith.mulf %268, %269 : vector<2x128xf32>
    %271 = math.tanh %270 : vector<2x128xf32>
    %272 = vector.broadcast %79 : vector<1x128xf32> to vector<2x128xf32>
    %273 = arith.mulf %271, %272 : vector<2x128xf32>
    %274 = vector.broadcast %82 : vector<1x128xf32> to vector<2x128xf32>
    %275 = arith.addf %273, %274 : vector<2x128xf32>
    %276 = vector.extract_strided_slice %275 {offsets = [0, 0], sizes = [2, 32], strides = [1, 1]} : vector<2x128xf32> to vector<2x32xf32>
    %277 = vector.extract_strided_slice %275 {offsets = [0, 32], sizes = [2, 32], strides = [1, 1]} : vector<2x128xf32> to vector<2x32xf32>
    %278 = vector.extract_strided_slice %275 {offsets = [0, 64], sizes = [2, 32], strides = [1, 1]} : vector<2x128xf32> to vector<2x32xf32>
    %279 = vector.extract_strided_slice %275 {offsets = [0, 96], sizes = [2, 32], strides = [1, 1]} : vector<2x128xf32> to vector<2x32xf32>
    %280 = arith.mulf %277, %263 : vector<2x32xf32>
    %281 = arith.mulf %276, %279 : vector<2x32xf32>
    %282 = arith.addf %280, %281 : vector<2x32xf32>
    %283 = math.tanh %282 : vector<2x32xf32>
    %284 = arith.mulf %278, %283 : vector<2x32xf32>
    %285 = vector.extract_strided_slice %243 {offsets = [4, 0], sizes = [2, 128], strides = [1, 1]} : vector<16x128xf32> to vector<2x128xf32>
    %cst_62 = arith.constant dense<0.000000e+00> : vector<2x128xf32>
    %286 = tpu.matmul %284, %244, %cst_62 {dimension_numbers = #tpu.dot_dimension_numbers<[1], [0], [0], [1], [0, 0, 1, 1], [], []>} : vector<2x32xf32>, vector<32x128xf32>, vector<2x128xf32> -> vector<2x128xf32>
    %287 = arith.addf %285, %286 : vector<2x128xf32>
    %288 = vector.broadcast %79 : vector<1x128xf32> to vector<2x128xf32>
    %289 = arith.mulf %287, %288 : vector<2x128xf32>
    %290 = math.tanh %289 : vector<2x128xf32>
    %291 = vector.broadcast %79 : vector<1x128xf32> to vector<2x128xf32>
    %292 = arith.mulf %290, %291 : vector<2x128xf32>
    %293 = vector.broadcast %82 : vector<1x128xf32> to vector<2x128xf32>
    %294 = arith.addf %292, %293 : vector<2x128xf32>
    %295 = vector.extract_strided_slice %294 {offsets = [0, 0], sizes = [2, 32], strides = [1, 1]} : vector<2x128xf32> to vector<2x32xf32>
    %296 = vector.extract_strided_slice %294 {offsets = [0, 32], sizes = [2, 32], strides = [1, 1]} : vector<2x128xf32> to vector<2x32xf32>
    %297 = vector.extract_strided_slice %294 {offsets = [0, 64], sizes = [2, 32], strides = [1, 1]} : vector<2x128xf32> to vector<2x32xf32>
    %298 = vector.extract_strided_slice %294 {offsets = [0, 96], sizes = [2, 32], strides = [1, 1]} : vector<2x128xf32> to vector<2x32xf32>
    %299 = arith.mulf %296, %282 : vector<2x32xf32>
    %300 = arith.mulf %295, %298 : vector<2x32xf32>
    %301 = arith.addf %299, %300 : vector<2x32xf32>
    %302 = math.tanh %301 : vector<2x32xf32>
    %303 = arith.mulf %297, %302 : vector<2x32xf32>
    %304 = vector.extract_strided_slice %243 {offsets = [6, 0], sizes = [2, 128], strides = [1, 1]} : vector<16x128xf32> to vector<2x128xf32>
    %cst_63 = arith.constant dense<0.000000e+00> : vector<2x128xf32>
    %305 = tpu.matmul %303, %244, %cst_63 {dimension_numbers = #tpu.dot_dimension_numbers<[1], [0], [0], [1], [0, 0, 1, 1], [], []>} : vector<2x32xf32>, vector<32x128xf32>, vector<2x128xf32> -> vector<2x128xf32>
    %306 = arith.addf %304, %305 : vector<2x128xf32>
    %307 = vector.broadcast %79 : vector<1x128xf32> to vector<2x128xf32>
    %308 = arith.mulf %306, %307 : vector<2x128xf32>
    %309 = math.tanh %308 : vector<2x128xf32>
    %310 = vector.broadcast %79 : vector<1x128xf32> to vector<2x128xf32>
    %311 = arith.mulf %309, %310 : vector<2x128xf32>
    %312 = vector.broadcast %82 : vector<1x128xf32> to vector<2x128xf32>
    %313 = arith.addf %311, %312 : vector<2x128xf32>
    %314 = vector.extract_strided_slice %313 {offsets = [0, 0], sizes = [2, 32], strides = [1, 1]} : vector<2x128xf32> to vector<2x32xf32>
    %315 = vector.extract_strided_slice %313 {offsets = [0, 32], sizes = [2, 32], strides = [1, 1]} : vector<2x128xf32> to vector<2x32xf32>
    %316 = vector.extract_strided_slice %313 {offsets = [0, 64], sizes = [2, 32], strides = [1, 1]} : vector<2x128xf32> to vector<2x32xf32>
    %317 = vector.extract_strided_slice %313 {offsets = [0, 96], sizes = [2, 32], strides = [1, 1]} : vector<2x128xf32> to vector<2x32xf32>
    %318 = arith.mulf %315, %301 : vector<2x32xf32>
    %319 = arith.mulf %314, %317 : vector<2x32xf32>
    %320 = arith.addf %318, %319 : vector<2x32xf32>
    %321 = math.tanh %320 : vector<2x32xf32>
    %322 = arith.mulf %316, %321 : vector<2x32xf32>
    %323 = vector.extract_strided_slice %243 {offsets = [8, 0], sizes = [2, 128], strides = [1, 1]} : vector<16x128xf32> to vector<2x128xf32>
    %cst_64 = arith.constant dense<0.000000e+00> : vector<2x128xf32>
    %324 = tpu.matmul %322, %244, %cst_64 {dimension_numbers = #tpu.dot_dimension_numbers<[1], [0], [0], [1], [0, 0, 1, 1], [], []>} : vector<2x32xf32>, vector<32x128xf32>, vector<2x128xf32> -> vector<2x128xf32>
    %325 = arith.addf %323, %324 : vector<2x128xf32>
    %326 = vector.broadcast %79 : vector<1x128xf32> to vector<2x128xf32>
    %327 = arith.mulf %325, %326 : vector<2x128xf32>
    %328 = math.tanh %327 : vector<2x128xf32>
    %329 = vector.broadcast %79 : vector<1x128xf32> to vector<2x128xf32>
    %330 = arith.mulf %328, %329 : vector<2x128xf32>
    %331 = vector.broadcast %82 : vector<1x128xf32> to vector<2x128xf32>
    %332 = arith.addf %330, %331 : vector<2x128xf32>
    %333 = vector.extract_strided_slice %332 {offsets = [0, 0], sizes = [2, 32], strides = [1, 1]} : vector<2x128xf32> to vector<2x32xf32>
    %334 = vector.extract_strided_slice %332 {offsets = [0, 32], sizes = [2, 32], strides = [1, 1]} : vector<2x128xf32> to vector<2x32xf32>
    %335 = vector.extract_strided_slice %332 {offsets = [0, 64], sizes = [2, 32], strides = [1, 1]} : vector<2x128xf32> to vector<2x32xf32>
    %336 = vector.extract_strided_slice %332 {offsets = [0, 96], sizes = [2, 32], strides = [1, 1]} : vector<2x128xf32> to vector<2x32xf32>
    %337 = arith.mulf %334, %320 : vector<2x32xf32>
    %338 = arith.mulf %333, %336 : vector<2x32xf32>
    %339 = arith.addf %337, %338 : vector<2x32xf32>
    %340 = math.tanh %339 : vector<2x32xf32>
    %341 = arith.mulf %335, %340 : vector<2x32xf32>
    %342 = vector.extract_strided_slice %243 {offsets = [10, 0], sizes = [2, 128], strides = [1, 1]} : vector<16x128xf32> to vector<2x128xf32>
    %cst_65 = arith.constant dense<0.000000e+00> : vector<2x128xf32>
    %343 = tpu.matmul %341, %244, %cst_65 {dimension_numbers = #tpu.dot_dimension_numbers<[1], [0], [0], [1], [0, 0, 1, 1], [], []>} : vector<2x32xf32>, vector<32x128xf32>, vector<2x128xf32> -> vector<2x128xf32>
    %344 = arith.addf %342, %343 : vector<2x128xf32>
    %345 = vector.broadcast %79 : vector<1x128xf32> to vector<2x128xf32>
    %346 = arith.mulf %344, %345 : vector<2x128xf32>
    %347 = math.tanh %346 : vector<2x128xf32>
    %348 = vector.broadcast %79 : vector<1x128xf32> to vector<2x128xf32>
    %349 = arith.mulf %347, %348 : vector<2x128xf32>
    %350 = vector.broadcast %82 : vector<1x128xf32> to vector<2x128xf32>
    %351 = arith.addf %349, %350 : vector<2x128xf32>
    %352 = vector.extract_strided_slice %351 {offsets = [0, 0], sizes = [2, 32], strides = [1, 1]} : vector<2x128xf32> to vector<2x32xf32>
    %353 = vector.extract_strided_slice %351 {offsets = [0, 32], sizes = [2, 32], strides = [1, 1]} : vector<2x128xf32> to vector<2x32xf32>
    %354 = vector.extract_strided_slice %351 {offsets = [0, 64], sizes = [2, 32], strides = [1, 1]} : vector<2x128xf32> to vector<2x32xf32>
    %355 = vector.extract_strided_slice %351 {offsets = [0, 96], sizes = [2, 32], strides = [1, 1]} : vector<2x128xf32> to vector<2x32xf32>
    %356 = arith.mulf %353, %339 : vector<2x32xf32>
    %357 = arith.mulf %352, %355 : vector<2x32xf32>
    %358 = arith.addf %356, %357 : vector<2x32xf32>
    %359 = math.tanh %358 : vector<2x32xf32>
    %360 = arith.mulf %354, %359 : vector<2x32xf32>
    %361 = vector.extract_strided_slice %243 {offsets = [12, 0], sizes = [2, 128], strides = [1, 1]} : vector<16x128xf32> to vector<2x128xf32>
    %cst_66 = arith.constant dense<0.000000e+00> : vector<2x128xf32>
    %362 = tpu.matmul %360, %244, %cst_66 {dimension_numbers = #tpu.dot_dimension_numbers<[1], [0], [0], [1], [0, 0, 1, 1], [], []>} : vector<2x32xf32>, vector<32x128xf32>, vector<2x128xf32> -> vector<2x128xf32>
    %363 = arith.addf %361, %362 : vector<2x128xf32>
    %364 = vector.broadcast %79 : vector<1x128xf32> to vector<2x128xf32>
    %365 = arith.mulf %363, %364 : vector<2x128xf32>
    %366 = math.tanh %365 : vector<2x128xf32>
    %367 = vector.broadcast %79 : vector<1x128xf32> to vector<2x128xf32>
    %368 = arith.mulf %366, %367 : vector<2x128xf32>
    %369 = vector.broadcast %82 : vector<1x128xf32> to vector<2x128xf32>
    %370 = arith.addf %368, %369 : vector<2x128xf32>
    %371 = vector.extract_strided_slice %370 {offsets = [0, 0], sizes = [2, 32], strides = [1, 1]} : vector<2x128xf32> to vector<2x32xf32>
    %372 = vector.extract_strided_slice %370 {offsets = [0, 32], sizes = [2, 32], strides = [1, 1]} : vector<2x128xf32> to vector<2x32xf32>
    %373 = vector.extract_strided_slice %370 {offsets = [0, 64], sizes = [2, 32], strides = [1, 1]} : vector<2x128xf32> to vector<2x32xf32>
    %374 = vector.extract_strided_slice %370 {offsets = [0, 96], sizes = [2, 32], strides = [1, 1]} : vector<2x128xf32> to vector<2x32xf32>
    %375 = arith.mulf %372, %358 : vector<2x32xf32>
    %376 = arith.mulf %371, %374 : vector<2x32xf32>
    %377 = arith.addf %375, %376 : vector<2x32xf32>
    %378 = math.tanh %377 : vector<2x32xf32>
    %379 = arith.mulf %373, %378 : vector<2x32xf32>
    %380 = vector.extract_strided_slice %243 {offsets = [14, 0], sizes = [2, 128], strides = [1, 1]} : vector<16x128xf32> to vector<2x128xf32>
    %cst_67 = arith.constant dense<0.000000e+00> : vector<2x128xf32>
    %381 = tpu.matmul %379, %244, %cst_67 {dimension_numbers = #tpu.dot_dimension_numbers<[1], [0], [0], [1], [0, 0, 1, 1], [], []>} : vector<2x32xf32>, vector<32x128xf32>, vector<2x128xf32> -> vector<2x128xf32>
    %382 = arith.addf %380, %381 : vector<2x128xf32>
    %383 = vector.broadcast %79 : vector<1x128xf32> to vector<2x128xf32>
    %384 = arith.mulf %382, %383 : vector<2x128xf32>
    %385 = math.tanh %384 : vector<2x128xf32>
    %386 = vector.broadcast %79 : vector<1x128xf32> to vector<2x128xf32>
    %387 = arith.mulf %385, %386 : vector<2x128xf32>
    %388 = vector.broadcast %82 : vector<1x128xf32> to vector<2x128xf32>
    %389 = arith.addf %387, %388 : vector<2x128xf32>
    %390 = vector.extract_strided_slice %389 {offsets = [0, 0], sizes = [2, 32], strides = [1, 1]} : vector<2x128xf32> to vector<2x32xf32>
    %391 = vector.extract_strided_slice %389 {offsets = [0, 32], sizes = [2, 32], strides = [1, 1]} : vector<2x128xf32> to vector<2x32xf32>
    %392 = vector.extract_strided_slice %389 {offsets = [0, 64], sizes = [2, 32], strides = [1, 1]} : vector<2x128xf32> to vector<2x32xf32>
    %393 = vector.extract_strided_slice %389 {offsets = [0, 96], sizes = [2, 32], strides = [1, 1]} : vector<2x128xf32> to vector<2x32xf32>
    %394 = arith.mulf %391, %377 : vector<2x32xf32>
    %395 = arith.mulf %390, %393 : vector<2x32xf32>
    %396 = arith.addf %394, %395 : vector<2x32xf32>
    %397 = math.tanh %396 : vector<2x32xf32>
    %398 = arith.mulf %392, %397 : vector<2x32xf32>
    %399 = tpu.concatenate %265, %284, %303, %322, %341, %360, %379, %398 in 0 : vector<2x32xf32>, vector<2x32xf32>, vector<2x32xf32>, vector<2x32xf32>, vector<2x32xf32>, vector<2x32xf32>, vector<2x32xf32>, vector<2x32xf32> -> vector<16x32xf32>
    %c0_68 = arith.constant 0 : index
    %c0_69 = arith.constant 0 : index
    %400 = vector.load %arg14[%c0_68, %c0_69] : memref<32x128xf32, #tpu.memory_space<vmem>>, vector<32x128xf32>
    %cst_70 = arith.constant dense<0.000000e+00> : vector<16x128xf32>
    %401 = tpu.matmul %399, %400, %cst_70 {dimension_numbers = #tpu.dot_dimension_numbers<[1], [0], [0], [1], [0, 0, 1, 1], [], []>} : vector<16x32xf32>, vector<32x128xf32>, vector<16x128xf32> -> vector<16x128xf32>
    %c0_71 = arith.constant 0 : index
    %c0_72 = arith.constant 0 : index
    %402 = vector.load %arg16[%c0_71, %c0_72] : memref<1x128xf32, #tpu.memory_space<vmem>>, vector<1x128xf32>
    %403 = vector.broadcast %402 : vector<1x128xf32> to vector<16x128xf32>
    %404 = arith.addf %401, %403 : vector<16x128xf32>
    %c0_73 = arith.constant 0 : index
    %c0_74 = arith.constant 0 : index
    %405 = vector.load %arg15[%c0_73, %c0_74] : memref<32x128xf32, #tpu.memory_space<vmem>>, vector<32x128xf32>
    %cst_75 = arith.constant 0.000000e+00 : f32
    %406 = vector.broadcast %cst_75 : f32 to vector<2x32xf32>
    %cst_76 = arith.constant 0.000000e+00 : f32
    %407 = vector.broadcast %cst_76 : f32 to vector<2x32xf32>
    %408 = vector.extract_strided_slice %404 {offsets = [0, 0], sizes = [2, 128], strides = [1, 1]} : vector<16x128xf32> to vector<2x128xf32>
    %cst_77 = arith.constant dense<0.000000e+00> : vector<2x128xf32>
    %409 = tpu.matmul %406, %405, %cst_77 {dimension_numbers = #tpu.dot_dimension_numbers<[1], [0], [0], [1], [0, 0, 1, 1], [], []>} : vector<2x32xf32>, vector<32x128xf32>, vector<2x128xf32> -> vector<2x128xf32>
    %410 = arith.addf %408, %409 : vector<2x128xf32>
    %411 = vector.broadcast %79 : vector<1x128xf32> to vector<2x128xf32>
    %412 = arith.mulf %410, %411 : vector<2x128xf32>
    %413 = math.tanh %412 : vector<2x128xf32>
    %414 = vector.broadcast %79 : vector<1x128xf32> to vector<2x128xf32>
    %415 = arith.mulf %413, %414 : vector<2x128xf32>
    %416 = vector.broadcast %82 : vector<1x128xf32> to vector<2x128xf32>
    %417 = arith.addf %415, %416 : vector<2x128xf32>
    %418 = vector.extract_strided_slice %417 {offsets = [0, 0], sizes = [2, 32], strides = [1, 1]} : vector<2x128xf32> to vector<2x32xf32>
    %419 = vector.extract_strided_slice %417 {offsets = [0, 32], sizes = [2, 32], strides = [1, 1]} : vector<2x128xf32> to vector<2x32xf32>
    %420 = vector.extract_strided_slice %417 {offsets = [0, 64], sizes = [2, 32], strides = [1, 1]} : vector<2x128xf32> to vector<2x32xf32>
    %421 = vector.extract_strided_slice %417 {offsets = [0, 96], sizes = [2, 32], strides = [1, 1]} : vector<2x128xf32> to vector<2x32xf32>
    %422 = arith.mulf %419, %407 : vector<2x32xf32>
    %423 = arith.mulf %418, %421 : vector<2x32xf32>
    %424 = arith.addf %422, %423 : vector<2x32xf32>
    %425 = math.tanh %424 : vector<2x32xf32>
    %426 = arith.mulf %420, %425 : vector<2x32xf32>
    %427 = vector.extract_strided_slice %404 {offsets = [2, 0], sizes = [2, 128], strides = [1, 1]} : vector<16x128xf32> to vector<2x128xf32>
    %cst_78 = arith.constant dense<0.000000e+00> : vector<2x128xf32>
    %428 = tpu.matmul %426, %405, %cst_78 {dimension_numbers = #tpu.dot_dimension_numbers<[1], [0], [0], [1], [0, 0, 1, 1], [], []>} : vector<2x32xf32>, vector<32x128xf32>, vector<2x128xf32> -> vector<2x128xf32>
    %429 = arith.addf %427, %428 : vector<2x128xf32>
    %430 = vector.broadcast %79 : vector<1x128xf32> to vector<2x128xf32>
    %431 = arith.mulf %429, %430 : vector<2x128xf32>
    %432 = math.tanh %431 : vector<2x128xf32>
    %433 = vector.broadcast %79 : vector<1x128xf32> to vector<2x128xf32>
    %434 = arith.mulf %432, %433 : vector<2x128xf32>
    %435 = vector.broadcast %82 : vector<1x128xf32> to vector<2x128xf32>
    %436 = arith.addf %434, %435 : vector<2x128xf32>
    %437 = vector.extract_strided_slice %436 {offsets = [0, 0], sizes = [2, 32], strides = [1, 1]} : vector<2x128xf32> to vector<2x32xf32>
    %438 = vector.extract_strided_slice %436 {offsets = [0, 32], sizes = [2, 32], strides = [1, 1]} : vector<2x128xf32> to vector<2x32xf32>
    %439 = vector.extract_strided_slice %436 {offsets = [0, 64], sizes = [2, 32], strides = [1, 1]} : vector<2x128xf32> to vector<2x32xf32>
    %440 = vector.extract_strided_slice %436 {offsets = [0, 96], sizes = [2, 32], strides = [1, 1]} : vector<2x128xf32> to vector<2x32xf32>
    %441 = arith.mulf %438, %424 : vector<2x32xf32>
    %442 = arith.mulf %437, %440 : vector<2x32xf32>
    %443 = arith.addf %441, %442 : vector<2x32xf32>
    %444 = math.tanh %443 : vector<2x32xf32>
    %445 = arith.mulf %439, %444 : vector<2x32xf32>
    %446 = vector.extract_strided_slice %404 {offsets = [4, 0], sizes = [2, 128], strides = [1, 1]} : vector<16x128xf32> to vector<2x128xf32>
    %cst_79 = arith.constant dense<0.000000e+00> : vector<2x128xf32>
    %447 = tpu.matmul %445, %405, %cst_79 {dimension_numbers = #tpu.dot_dimension_numbers<[1], [0], [0], [1], [0, 0, 1, 1], [], []>} : vector<2x32xf32>, vector<32x128xf32>, vector<2x128xf32> -> vector<2x128xf32>
    %448 = arith.addf %446, %447 : vector<2x128xf32>
    %449 = vector.broadcast %79 : vector<1x128xf32> to vector<2x128xf32>
    %450 = arith.mulf %448, %449 : vector<2x128xf32>
    %451 = math.tanh %450 : vector<2x128xf32>
    %452 = vector.broadcast %79 : vector<1x128xf32> to vector<2x128xf32>
    %453 = arith.mulf %451, %452 : vector<2x128xf32>
    %454 = vector.broadcast %82 : vector<1x128xf32> to vector<2x128xf32>
    %455 = arith.addf %453, %454 : vector<2x128xf32>
    %456 = vector.extract_strided_slice %455 {offsets = [0, 0], sizes = [2, 32], strides = [1, 1]} : vector<2x128xf32> to vector<2x32xf32>
    %457 = vector.extract_strided_slice %455 {offsets = [0, 32], sizes = [2, 32], strides = [1, 1]} : vector<2x128xf32> to vector<2x32xf32>
    %458 = vector.extract_strided_slice %455 {offsets = [0, 64], sizes = [2, 32], strides = [1, 1]} : vector<2x128xf32> to vector<2x32xf32>
    %459 = vector.extract_strided_slice %455 {offsets = [0, 96], sizes = [2, 32], strides = [1, 1]} : vector<2x128xf32> to vector<2x32xf32>
    %460 = arith.mulf %457, %443 : vector<2x32xf32>
    %461 = arith.mulf %456, %459 : vector<2x32xf32>
    %462 = arith.addf %460, %461 : vector<2x32xf32>
    %463 = math.tanh %462 : vector<2x32xf32>
    %464 = arith.mulf %458, %463 : vector<2x32xf32>
    %465 = vector.extract_strided_slice %404 {offsets = [6, 0], sizes = [2, 128], strides = [1, 1]} : vector<16x128xf32> to vector<2x128xf32>
    %cst_80 = arith.constant dense<0.000000e+00> : vector<2x128xf32>
    %466 = tpu.matmul %464, %405, %cst_80 {dimension_numbers = #tpu.dot_dimension_numbers<[1], [0], [0], [1], [0, 0, 1, 1], [], []>} : vector<2x32xf32>, vector<32x128xf32>, vector<2x128xf32> -> vector<2x128xf32>
    %467 = arith.addf %465, %466 : vector<2x128xf32>
    %468 = vector.broadcast %79 : vector<1x128xf32> to vector<2x128xf32>
    %469 = arith.mulf %467, %468 : vector<2x128xf32>
    %470 = math.tanh %469 : vector<2x128xf32>
    %471 = vector.broadcast %79 : vector<1x128xf32> to vector<2x128xf32>
    %472 = arith.mulf %470, %471 : vector<2x128xf32>
    %473 = vector.broadcast %82 : vector<1x128xf32> to vector<2x128xf32>
    %474 = arith.addf %472, %473 : vector<2x128xf32>
    %475 = vector.extract_strided_slice %474 {offsets = [0, 0], sizes = [2, 32], strides = [1, 1]} : vector<2x128xf32> to vector<2x32xf32>
    %476 = vector.extract_strided_slice %474 {offsets = [0, 32], sizes = [2, 32], strides = [1, 1]} : vector<2x128xf32> to vector<2x32xf32>
    %477 = vector.extract_strided_slice %474 {offsets = [0, 64], sizes = [2, 32], strides = [1, 1]} : vector<2x128xf32> to vector<2x32xf32>
    %478 = vector.extract_strided_slice %474 {offsets = [0, 96], sizes = [2, 32], strides = [1, 1]} : vector<2x128xf32> to vector<2x32xf32>
    %479 = arith.mulf %476, %462 : vector<2x32xf32>
    %480 = arith.mulf %475, %478 : vector<2x32xf32>
    %481 = arith.addf %479, %480 : vector<2x32xf32>
    %482 = math.tanh %481 : vector<2x32xf32>
    %483 = arith.mulf %477, %482 : vector<2x32xf32>
    %484 = vector.extract_strided_slice %404 {offsets = [8, 0], sizes = [2, 128], strides = [1, 1]} : vector<16x128xf32> to vector<2x128xf32>
    %cst_81 = arith.constant dense<0.000000e+00> : vector<2x128xf32>
    %485 = tpu.matmul %483, %405, %cst_81 {dimension_numbers = #tpu.dot_dimension_numbers<[1], [0], [0], [1], [0, 0, 1, 1], [], []>} : vector<2x32xf32>, vector<32x128xf32>, vector<2x128xf32> -> vector<2x128xf32>
    %486 = arith.addf %484, %485 : vector<2x128xf32>
    %487 = vector.broadcast %79 : vector<1x128xf32> to vector<2x128xf32>
    %488 = arith.mulf %486, %487 : vector<2x128xf32>
    %489 = math.tanh %488 : vector<2x128xf32>
    %490 = vector.broadcast %79 : vector<1x128xf32> to vector<2x128xf32>
    %491 = arith.mulf %489, %490 : vector<2x128xf32>
    %492 = vector.broadcast %82 : vector<1x128xf32> to vector<2x128xf32>
    %493 = arith.addf %491, %492 : vector<2x128xf32>
    %494 = vector.extract_strided_slice %493 {offsets = [0, 0], sizes = [2, 32], strides = [1, 1]} : vector<2x128xf32> to vector<2x32xf32>
    %495 = vector.extract_strided_slice %493 {offsets = [0, 32], sizes = [2, 32], strides = [1, 1]} : vector<2x128xf32> to vector<2x32xf32>
    %496 = vector.extract_strided_slice %493 {offsets = [0, 64], sizes = [2, 32], strides = [1, 1]} : vector<2x128xf32> to vector<2x32xf32>
    %497 = vector.extract_strided_slice %493 {offsets = [0, 96], sizes = [2, 32], strides = [1, 1]} : vector<2x128xf32> to vector<2x32xf32>
    %498 = arith.mulf %495, %481 : vector<2x32xf32>
    %499 = arith.mulf %494, %497 : vector<2x32xf32>
    %500 = arith.addf %498, %499 : vector<2x32xf32>
    %501 = math.tanh %500 : vector<2x32xf32>
    %502 = arith.mulf %496, %501 : vector<2x32xf32>
    %503 = vector.extract_strided_slice %404 {offsets = [10, 0], sizes = [2, 128], strides = [1, 1]} : vector<16x128xf32> to vector<2x128xf32>
    %cst_82 = arith.constant dense<0.000000e+00> : vector<2x128xf32>
    %504 = tpu.matmul %502, %405, %cst_82 {dimension_numbers = #tpu.dot_dimension_numbers<[1], [0], [0], [1], [0, 0, 1, 1], [], []>} : vector<2x32xf32>, vector<32x128xf32>, vector<2x128xf32> -> vector<2x128xf32>
    %505 = arith.addf %503, %504 : vector<2x128xf32>
    %506 = vector.broadcast %79 : vector<1x128xf32> to vector<2x128xf32>
    %507 = arith.mulf %505, %506 : vector<2x128xf32>
    %508 = math.tanh %507 : vector<2x128xf32>
    %509 = vector.broadcast %79 : vector<1x128xf32> to vector<2x128xf32>
    %510 = arith.mulf %508, %509 : vector<2x128xf32>
    %511 = vector.broadcast %82 : vector<1x128xf32> to vector<2x128xf32>
    %512 = arith.addf %510, %511 : vector<2x128xf32>
    %513 = vector.extract_strided_slice %512 {offsets = [0, 0], sizes = [2, 32], strides = [1, 1]} : vector<2x128xf32> to vector<2x32xf32>
    %514 = vector.extract_strided_slice %512 {offsets = [0, 32], sizes = [2, 32], strides = [1, 1]} : vector<2x128xf32> to vector<2x32xf32>
    %515 = vector.extract_strided_slice %512 {offsets = [0, 64], sizes = [2, 32], strides = [1, 1]} : vector<2x128xf32> to vector<2x32xf32>
    %516 = vector.extract_strided_slice %512 {offsets = [0, 96], sizes = [2, 32], strides = [1, 1]} : vector<2x128xf32> to vector<2x32xf32>
    %517 = arith.mulf %514, %500 : vector<2x32xf32>
    %518 = arith.mulf %513, %516 : vector<2x32xf32>
    %519 = arith.addf %517, %518 : vector<2x32xf32>
    %520 = math.tanh %519 : vector<2x32xf32>
    %521 = arith.mulf %515, %520 : vector<2x32xf32>
    %522 = vector.extract_strided_slice %404 {offsets = [12, 0], sizes = [2, 128], strides = [1, 1]} : vector<16x128xf32> to vector<2x128xf32>
    %cst_83 = arith.constant dense<0.000000e+00> : vector<2x128xf32>
    %523 = tpu.matmul %521, %405, %cst_83 {dimension_numbers = #tpu.dot_dimension_numbers<[1], [0], [0], [1], [0, 0, 1, 1], [], []>} : vector<2x32xf32>, vector<32x128xf32>, vector<2x128xf32> -> vector<2x128xf32>
    %524 = arith.addf %522, %523 : vector<2x128xf32>
    %525 = vector.broadcast %79 : vector<1x128xf32> to vector<2x128xf32>
    %526 = arith.mulf %524, %525 : vector<2x128xf32>
    %527 = math.tanh %526 : vector<2x128xf32>
    %528 = vector.broadcast %79 : vector<1x128xf32> to vector<2x128xf32>
    %529 = arith.mulf %527, %528 : vector<2x128xf32>
    %530 = vector.broadcast %82 : vector<1x128xf32> to vector<2x128xf32>
    %531 = arith.addf %529, %530 : vector<2x128xf32>
    %532 = vector.extract_strided_slice %531 {offsets = [0, 0], sizes = [2, 32], strides = [1, 1]} : vector<2x128xf32> to vector<2x32xf32>
    %533 = vector.extract_strided_slice %531 {offsets = [0, 32], sizes = [2, 32], strides = [1, 1]} : vector<2x128xf32> to vector<2x32xf32>
    %534 = vector.extract_strided_slice %531 {offsets = [0, 64], sizes = [2, 32], strides = [1, 1]} : vector<2x128xf32> to vector<2x32xf32>
    %535 = vector.extract_strided_slice %531 {offsets = [0, 96], sizes = [2, 32], strides = [1, 1]} : vector<2x128xf32> to vector<2x32xf32>
    %536 = arith.mulf %533, %519 : vector<2x32xf32>
    %537 = arith.mulf %532, %535 : vector<2x32xf32>
    %538 = arith.addf %536, %537 : vector<2x32xf32>
    %539 = math.tanh %538 : vector<2x32xf32>
    %540 = arith.mulf %534, %539 : vector<2x32xf32>
    %541 = vector.extract_strided_slice %404 {offsets = [14, 0], sizes = [2, 128], strides = [1, 1]} : vector<16x128xf32> to vector<2x128xf32>
    %cst_84 = arith.constant dense<0.000000e+00> : vector<2x128xf32>
    %542 = tpu.matmul %540, %405, %cst_84 {dimension_numbers = #tpu.dot_dimension_numbers<[1], [0], [0], [1], [0, 0, 1, 1], [], []>} : vector<2x32xf32>, vector<32x128xf32>, vector<2x128xf32> -> vector<2x128xf32>
    %543 = arith.addf %541, %542 : vector<2x128xf32>
    %544 = vector.broadcast %79 : vector<1x128xf32> to vector<2x128xf32>
    %545 = arith.mulf %543, %544 : vector<2x128xf32>
    %546 = math.tanh %545 : vector<2x128xf32>
    %547 = vector.broadcast %79 : vector<1x128xf32> to vector<2x128xf32>
    %548 = arith.mulf %546, %547 : vector<2x128xf32>
    %549 = vector.broadcast %82 : vector<1x128xf32> to vector<2x128xf32>
    %550 = arith.addf %548, %549 : vector<2x128xf32>
    %551 = vector.extract_strided_slice %550 {offsets = [0, 0], sizes = [2, 32], strides = [1, 1]} : vector<2x128xf32> to vector<2x32xf32>
    %552 = vector.extract_strided_slice %550 {offsets = [0, 32], sizes = [2, 32], strides = [1, 1]} : vector<2x128xf32> to vector<2x32xf32>
    %553 = vector.extract_strided_slice %550 {offsets = [0, 64], sizes = [2, 32], strides = [1, 1]} : vector<2x128xf32> to vector<2x32xf32>
    %554 = vector.extract_strided_slice %550 {offsets = [0, 96], sizes = [2, 32], strides = [1, 1]} : vector<2x128xf32> to vector<2x32xf32>
    %555 = arith.mulf %552, %538 : vector<2x32xf32>
    %556 = arith.mulf %551, %554 : vector<2x32xf32>
    %557 = arith.addf %555, %556 : vector<2x32xf32>
    %558 = math.tanh %557 : vector<2x32xf32>
    %559 = arith.mulf %553, %558 : vector<2x32xf32>
    %c0_85 = arith.constant 0 : index
    %c0_86 = arith.constant 0 : index
    %560 = vector.load %arg17[%c0_85, %c0_86] : memref<32x30xf32, #tpu.memory_space<vmem>>, vector<32x30xf32>
    %cst_87 = arith.constant dense<0.000000e+00> : vector<2x30xf32>
    %561 = tpu.matmul %559, %560, %cst_87 {dimension_numbers = #tpu.dot_dimension_numbers<[1], [0], [0], [1], [0, 0, 1, 1], [], []>} : vector<2x32xf32>, vector<32x30xf32>, vector<2x30xf32> -> vector<2x30xf32>
    %c0_88 = arith.constant 0 : index
    %c0_89 = arith.constant 0 : index
    %562 = vector.load %arg18[%c0_88, %c0_89] : memref<1x30xf32, #tpu.memory_space<vmem>>, vector<1x30xf32>
    %563 = vector.broadcast %562 : vector<1x30xf32> to vector<2x30xf32>
    %564 = arith.addf %561, %563 : vector<2x30xf32>
    %c0_90 = arith.constant 0 : index
    %c0_91 = arith.constant 0 : index
    %c0_92 = arith.constant 0 : index
    %565 = vector.load %arg19[%c0_90, %c0_91, %c0_92] : memref<1x2x30xf32, #tpu.memory_space<vmem>>, vector<1x2x30xf32>
    %566 = vector.shape_cast %565 : vector<1x2x30xf32> to vector<2x30xf32>
    %567 = vector.shape_cast %564 : vector<2x30xf32> to vector<1x2x30xf32>
    tpu.vector_store %arg19[%c0_90, %c0_91, %c0_92], %567 {strides = array<i32>} : memref<1x2x30xf32, #tpu.memory_space<vmem>>, vector<1x2x30xf32>,
    return
  }
  func.func @transform_0(%arg0: i32) -> (i32, i32) {
    %c0_i32 = arith.constant 0 : i32
    %c0_i32_0 = arith.constant 0 : i32
    return %arg0, %c0_i32 : i32, i32
  }
  func.func @transform_1(%arg0: i32) -> (i32, i32) {
    %c0_i32 = arith.constant 0 : i32
    %c0_i32_0 = arith.constant 0 : i32
    return %arg0, %c0_i32 : i32, i32
  }
  func.func @transform_2(%arg0: i32) -> (i32, i32) {
    %c0_i32 = arith.constant 0 : i32
    %c0_i32_0 = arith.constant 0 : i32
    %c0_i32_1 = arith.constant 0 : i32
    return %c0_i32, %c0_i32_0 : i32, i32
  }
  func.func @transform_3(%arg0: i32) -> (i32, i32) {
    %c0_i32 = arith.constant 0 : i32
    %c0_i32_0 = arith.constant 0 : i32
    %c0_i32_1 = arith.constant 0 : i32
    return %c0_i32, %c0_i32_0 : i32, i32
  }
  func.func @transform_4(%arg0: i32) -> (i32, i32) {
    %c0_i32 = arith.constant 0 : i32
    %c0_i32_0 = arith.constant 0 : i32
    %c0_i32_1 = arith.constant 0 : i32
    return %c0_i32, %c0_i32_0 : i32, i32
  }
  func.func @transform_5(%arg0: i32) -> (i32, i32) {
    %c0_i32 = arith.constant 0 : i32
    %c0_i32_0 = arith.constant 0 : i32
    %c0_i32_1 = arith.constant 0 : i32
    return %c0_i32, %c0_i32_0 : i32, i32
  }
  func.func @transform_6(%arg0: i32) -> (i32, i32) {
    %c0_i32 = arith.constant 0 : i32
    %c0_i32_0 = arith.constant 0 : i32
    %c0_i32_1 = arith.constant 0 : i32
    return %c0_i32, %c0_i32_0 : i32, i32
  }
  func.func @transform_7(%arg0: i32) -> (i32, i32) {
    %c0_i32 = arith.constant 0 : i32
    %c0_i32_0 = arith.constant 0 : i32
    %c0_i32_1 = arith.constant 0 : i32
    return %c0_i32, %c0_i32_0 : i32, i32
  }
  func.func @transform_8(%arg0: i32) -> (i32, i32) {
    %c0_i32 = arith.constant 0 : i32
    %c0_i32_0 = arith.constant 0 : i32
    %c0_i32_1 = arith.constant 0 : i32
    return %c0_i32, %c0_i32_0 : i32, i32
  }
  func.func @transform_9(%arg0: i32) -> (i32, i32) {
    %c0_i32 = arith.constant 0 : i32
    %c0_i32_0 = arith.constant 0 : i32
    %c0_i32_1 = arith.constant 0 : i32
    return %c0_i32, %c0_i32_0 : i32, i32
  }
  func.func @transform_10(%arg0: i32) -> (i32, i32) {
    %c0_i32 = arith.constant 0 : i32
    %c0_i32_0 = arith.constant 0 : i32
    %c0_i32_1 = arith.constant 0 : i32
    return %c0_i32, %c0_i32_0 : i32, i32
  }
  func.func @transform_11(%arg0: i32) -> (i32, i32) {
    %c0_i32 = arith.constant 0 : i32
    %c0_i32_0 = arith.constant 0 : i32
    %c0_i32_1 = arith.constant 0 : i32
    return %c0_i32, %c0_i32_0 : i32, i32
  }
  func.func @transform_12(%arg0: i32) -> (i32, i32) {
    %c0_i32 = arith.constant 0 : i32
    %c0_i32_0 = arith.constant 0 : i32
    %c0_i32_1 = arith.constant 0 : i32
    return %c0_i32, %c0_i32_0 : i32, i32
  }
  func.func @transform_13(%arg0: i32) -> (i32, i32) {
    %c0_i32 = arith.constant 0 : i32
    %c0_i32_0 = arith.constant 0 : i32
    %c0_i32_1 = arith.constant 0 : i32
    return %c0_i32, %c0_i32_0 : i32, i32
  }
  func.func @transform_14(%arg0: i32) -> (i32, i32) {
    %c0_i32 = arith.constant 0 : i32
    %c0_i32_0 = arith.constant 0 : i32
    %c0_i32_1 = arith.constant 0 : i32
    return %c0_i32, %c0_i32_0 : i32, i32
  }
  func.func @transform_15(%arg0: i32) -> (i32, i32) {
    %c0_i32 = arith.constant 0 : i32
    %c0_i32_0 = arith.constant 0 : i32
    %c0_i32_1 = arith.constant 0 : i32
    return %c0_i32, %c0_i32_0 : i32, i32
  }
  func.func @transform_16(%arg0: i32) -> (i32, i32) {
    %c0_i32 = arith.constant 0 : i32
    %c0_i32_0 = arith.constant 0 : i32
    %c0_i32_1 = arith.constant 0 : i32
    return %c0_i32, %c0_i32_0 : i32, i32
  }
  func.func @transform_17(%arg0: i32) -> (i32, i32) {
    %c0_i32 = arith.constant 0 : i32
    %c0_i32_0 = arith.constant 0 : i32
    %c0_i32_1 = arith.constant 0 : i32
    return %c0_i32, %c0_i32_0 : i32, i32
  }
  func.func @transform_18(%arg0: i32) -> (i32, i32, i32) {
    %c0_i32 = arith.constant 0 : i32
    %c0_i32_0 = arith.constant 0 : i32
    %c0_i32_1 = arith.constant 0 : i32
    return %arg0, %c0_i32, %c0_i32_0 : i32, i32, i32
  }
}

</mosaic_0001>

<llo_original>
// kernel: cnn_lstm_forward.1
$region0: #{cnn_lstm_forward.1}
  #allocation0 [shape = 'u32[]', space=smem, size = 0x4, offset = 0x4, fixed_abs, tag = 'smem constant byte address 0x4 - core index']
  #allocation1 [shape = 'u32[144,128]{1,0:T(1,128)}', space=vmem, size = 0x12000, scoped, tag = 'internal scratch']
  %s0 = inlined_call_operand.vmem [shape: f32[256,4], index: 0, kind: input, shape index: {}]
  %s1 = inlined_call_operand.vmem [shape: f32[16,9], index: 1, kind: input, shape index: {}]
  %s2 = inlined_call_operand.vmem [shape: f32[12,96], index: 2, kind: input, shape index: {}]
  %s3 = inlined_call_operand.vmem [shape: f32[1,96], index: 3, kind: input, shape index: {}]
  %s4 = inlined_call_operand.vmem [shape: f32[96,64], index: 4, kind: input, shape index: {}]
  %s5 = inlined_call_operand.vmem [shape: f32[1,64], index: 5, kind: input, shape index: {}]
  %s6 = inlined_call_operand.vmem [shape: f32[64,128], index: 6, kind: input, shape index: {}]
  %s7 = inlined_call_operand.vmem [shape: f32[9,128], index: 7, kind: input, shape index: {}]
  %s8 = inlined_call_operand.vmem [shape: f32[1,128], index: 8, kind: input, shape index: {}]
  %s9 = inlined_call_operand.vmem [shape: f32[32,128], index: 9, kind: input, shape index: {}]
  %s10 = inlined_call_operand.vmem [shape: f32[32,128], index: 10, kind: input, shape index: {}]
  %s11 = inlined_call_operand.vmem [shape: f32[32,128], index: 11, kind: input, shape index: {}]
  %s12 = inlined_call_operand.vmem [shape: f32[1,128], index: 12, kind: input, shape index: {}]
  %s13 = inlined_call_operand.vmem [shape: f32[32,128], index: 13, kind: input, shape index: {}]
  %s14 = inlined_call_operand.vmem [shape: f32[32,128], index: 14, kind: input, shape index: {}]
  %s15 = inlined_call_operand.vmem [shape: f32[1,128], index: 15, kind: input, shape index: {}]
  %s16 = inlined_call_operand.vmem [shape: f32[32,30], index: 16, kind: input, shape index: {}]
  %s17 = inlined_call_operand.vmem [shape: f32[1,30], index: 17, kind: input, shape index: {}]
  %s18 = inlined_call_operand.hbm [shape: f32[1,2,30], index: 18, kind: output, shape index: {}]
  %s19 = sld [smem:[#allocation0]]
  $region82: #{cnn_lstm_forward.1} parent=0
    _
  %s21 = ssub.s32 1, %s19
  %s22 = scalar_select 0, %s21, %s19
  $region1: #{cnn_lstm_forward.1} parent=0
    #allocation2 [shape = 'u8[1024]{0}', space=vmem, size = 0x400, scoped, tag = 'output window, operand 0, single buffered']
    #allocation3 [shape = 's32[1]{0}', space=sflag, size = 0x4, scoped, tag = 'scoped memory for cnn_lstm_forward.1']
    %23 = vsyncpa [#allocation3], 0
    // Predicated region
    $region2: #{cnn_lstm_forward.1} parent=1 // pred_check
      _
    $region3: #{cnn_lstm_forward.1} parent=1 // pred_check_branch
      %25 = sbr.rel (0) target = $region5
    $region4: #{cnn_lstm_forward.1} parent=1 // pred_region
      _
    $region5: #{cnn_lstm_forward.1} parent=1 // pred_fallthru
      _
    // Predicated region
    $region6: #{cnn_lstm_forward.1} parent=1 // pred_check
      _
    $region7: #{cnn_lstm_forward.1} parent=1 // pred_check_branch
      %27 = sbr.rel (0) target = $region9
    $region8: #{cnn_lstm_forward.1} parent=1 // pred_region
      _
    $region9: #{cnn_lstm_forward.1} parent=1 // pred_fallthru
      _
    // Predicated region
    $region10: #{cnn_lstm_forward.1} parent=1 // pred_check
      _
    $region11: #{cnn_lstm_forward.1} parent=1 // pred_check_branch
      %29 = sbr.rel (0) target = $region13
    $region12: #{cnn_lstm_forward.1} parent=1 // pred_region
      _
    $region13: #{cnn_lstm_forward.1} parent=1 // pred_fallthru
      _
    // Predicated region
    $region14: #{cnn_lstm_forward.1} parent=1 // pred_check
      _
    $region15: #{cnn_lstm_forward.1} parent=1 // pred_check_branch
      %31 = sbr.rel (0) target = $region17
    $region16: #{cnn_lstm_forward.1} parent=1 // pred_region
      _
    $region17: #{cnn_lstm_forward.1} parent=1 // pred_fallthru
      _
    // Predicated region
    $region18: #{cnn_lstm_forward.1} parent=1 // pred_check
      _
    $region19: #{cnn_lstm_forward.1} parent=1 // pred_check_branch
      %33 = sbr.rel (0) target = $region21
    $region20: #{cnn_lstm_forward.1} parent=1 // pred_region
      _
    $region21: #{cnn_lstm_forward.1} parent=1 // pred_fallthru
      _
    // Predicated region
    $region22: #{cnn_lstm_forward.1} parent=1 // pred_check
      _
    $region23: #{cnn_lstm_forward.1} parent=1 // pred_check_branch
      %35 = sbr.rel (0) target = $region25
    $region24: #{cnn_lstm_forward.1} parent=1 // pred_region
      _
    $region25: #{cnn_lstm_forward.1} parent=1 // pred_fallthru
      _
    // Predicated region
    $region26: #{cnn_lstm_forward.1} parent=1 // pred_check
      _
    $region27: #{cnn_lstm_forward.1} parent=1 // pred_check_branch
      %37 = sbr.rel (0) target = $region29
    $region28: #{cnn_lstm_forward.1} parent=1 // pred_region
      _
    $region29: #{cnn_lstm_forward.1} parent=1 // pred_fallthru
      _
    // Predicated region
    $region30: #{cnn_lstm_forward.1} parent=1 // pred_check
      _
    $region31: #{cnn_lstm_forward.1} parent=1 // pred_check_branch
      %39 = sbr.rel (0) target = $region33
    $region32: #{cnn_lstm_forward.1} parent=1 // pred_region
      _
    $region33: #{cnn_lstm_forward.1} parent=1 // pred_fallthru
      _
    // Predicated region
    $region34: #{cnn_lstm_forward.1} parent=1 // pred_check
      _
    $region35: #{cnn_lstm_forward.1} parent=1 // pred_check_branch
      %41 = sbr.rel (0) target = $region37
    $region36: #{cnn_lstm_forward.1} parent=1 // pred_region
      _
    $region37: #{cnn_lstm_forward.1} parent=1 // pred_fallthru
      _
    // Predicated region
    $region38: #{cnn_lstm_forward.1} parent=1 // pred_check
      _
    $region39: #{cnn_lstm_forward.1} parent=1 // pred_check_branch
      %43 = sbr.rel (0) target = $region41
    $region40: #{cnn_lstm_forward.1} parent=1 // pred_region
      _
    $region41: #{cnn_lstm_forward.1} parent=1 // pred_fallthru
      _
    // Predicated region
    $region42: #{cnn_lstm_forward.1} parent=1 // pred_check
      _
    $region43: #{cnn_lstm_forward.1} parent=1 // pred_check_branch
      %45 = sbr.rel (0) target = $region45
    $region44: #{cnn_lstm_forward.1} parent=1 // pred_region
      _
    $region45: #{cnn_lstm_forward.1} parent=1 // pred_fallthru
      _
    // Predicated region
    $region46: #{cnn_lstm_forward.1} parent=1 // pred_check
      _
    $region47: #{cnn_lstm_forward.1} parent=1 // pred_check_branch
      %47 = sbr.rel (0) target = $region49
    $region48: #{cnn_lstm_forward.1} parent=1 // pred_region
      _
    $region49: #{cnn_lstm_forward.1} parent=1 // pred_fallthru
      _
    // Predicated region
    $region50: #{cnn_lstm_forward.1} parent=1 // pred_check
      _
    $region51: #{cnn_lstm_forward.1} parent=1 // pred_check_branch
      %49 = sbr.rel (0) target = $region53
    $region52: #{cnn_lstm_forward.1} parent=1 // pred_region
      _
    $region53: #{cnn_lstm_forward.1} parent=1 // pred_fallthru
      _
    // Predicated region
    $region54: #{cnn_lstm_forward.1} parent=1 // pred_check
      _
    $region55: #{cnn_lstm_forward.1} parent=1 // pred_check_branch
      %51 = sbr.rel (0) target = $region57
    $region56: #{cnn_lstm_forward.1} parent=1 // pred_region
      _
    $region57: #{cnn_lstm_forward.1} parent=1 // pred_fallthru
      _
    // Predicated region
    $region58: #{cnn_lstm_forward.1} parent=1 // pred_check
      _
    $region59: #{cnn_lstm_forward.1} parent=1 // pred_check_branch
      %53 = sbr.rel (0) target = $region61
    $region60: #{cnn_lstm_forward.1} parent=1 // pred_region
      _
    $region61: #{cnn_lstm_forward.1} parent=1 // pred_fallthru
      _
    // Predicated region
    $region62: #{cnn_lstm_forward.1} parent=1 // pred_check
      _
    $region63: #{cnn_lstm_forward.1} parent=1 // pred_check_branch
      %55 = sbr.rel (0) target = $region65
    $region64: #{cnn_lstm_forward.1} parent=1 // pred_region
      _
    $region65: #{cnn_lstm_forward.1} parent=1 // pred_fallthru
      _
    // Predicated region
    $region66: #{cnn_lstm_forward.1} parent=1 // pred_check
      _
    $region67: #{cnn_lstm_forward.1} parent=1 // pred_check_branch
      %57 = sbr.rel (0) target = $region69
    $region68: #{cnn_lstm_forward.1} parent=1 // pred_region
      _
    $region69: #{cnn_lstm_forward.1} parent=1 // pred_fallthru
      _
    // Predicated region
    $region70: #{cnn_lstm_forward.1} parent=1 // pred_check
      _
    $region71: #{cnn_lstm_forward.1} parent=1 // pred_check_branch
      %59 = sbr.rel (0) target = $region73
    $region72: #{cnn_lstm_forward.1} parent=1 // pred_region
      _
    $region73: #{cnn_lstm_forward.1} parent=1 // pred_fallthru
      _
    %v60 = vld [vmem:[%s0] sm:$0xff]
    %v61 = vld [vmem:[%s0 + $0x8] sm:$0xff]
    %v62 = vld [vmem:[%s0 + $0x10] sm:$0xff]
    %v63 = vld [vmem:[%s0 + $0x18] sm:$0xff]
    %v64 = vld [vmem:[%s0 + $0x20] sm:$0xff]
    %v65 = vld [vmem:[%s0 + $0x28] sm:$0xff]
    %v66 = vld [vmem:[%s0 + $0x30] sm:$0xff]
    %v67 = vld [vmem:[%s0 + $0x38] sm:$0xff]
    %v68 = vld [vmem:[%s0 + $0x40] sm:$0xff]
    %v69 = vld [vmem:[%s0 + $0x48] sm:$0xff]
    %v70 = vld [vmem:[%s0 + $0x50] sm:$0xff]
    %v71 = vld [vmem:[%s0 + $0x58] sm:$0xff]
    %v72 = vld [vmem:[%s0 + $0x60] sm:$0xff]
    %v73 = vld [vmem:[%s0 + $0x68] sm:$0xff]
    %v74 = vld [vmem:[%s0 + $0x70] sm:$0xff]
    %v75 = vld [vmem:[%s0 + $0x78] sm:$0xff]
    %v76 = vld [vmem:[%s0 + $0x80] sm:$0xff]
    %v77 = vld [vmem:[%s0 + $0x88] sm:$0xff]
    %v78 = vld [vmem:[%s0 + $0x90] sm:$0xff]
    %v79 = vld [vmem:[%s0 + $0x98] sm:$0xff]
    %v80 = vld [vmem:[%s0 + $0xa0] sm:$0xff]
    %v81 = vld [vmem:[%s0 + $0xa8] sm:$0xff]
    %v82 = vld [vmem:[%s0 + $0xb0] sm:$0xff]
    %v83 = vld [vmem:[%s0 + $0xb8] sm:$0xff]
    %v84 = vld [vmem:[%s0 + $0xc0] sm:$0xff]
    %v85 = vld [vmem:[%s0 + $0xc8] sm:$0xff]
    %v86 = vld [vmem:[%s0 + $0xd0] sm:$0xff]
    %v87 = vld [vmem:[%s0 + $0xd8] sm:$0xff]
    %v88 = vld [vmem:[%s0 + $0xe0] sm:$0xff]
    %v89 = vld [vmem:[%s0 + $0xe8] sm:$0xff]
    %v90 = vld [vmem:[%s0 + $0xf0] sm:$0xff]
    %v91 = vld [vmem:[%s0 + $0xf8] sm:$0xff]
    %v92 = vlaneseq
    %v93 = vshrl.u32 %v92, 7
    %v94 = vadd.s32 %v93, 8
    %v95 = vadd.s32 %v93, 16
    %v96 = vadd.s32 %v93, 24
    %v97 = vadd.s32 %v93, 32
    %v98 = vadd.s32 %v93, 40
    %v99 = vadd.s32 %v93, 48
    %v100 = vadd.s32 %v93, 56
    %v101 = vadd.s32 %v93, 64
    %v102 = vadd.s32 %v93, 72
    %v103 = vadd.s32 %v93, 80
    %v104 = vadd.s32 %v93, 88
    %v105 = vadd.s32 %v93, 96
    %v106 = vadd.s32 %v93, 104
    %v107 = vadd.s32 %v93, 112
    %v108 = vadd.s32 %v93, 120
    %v109 = vadd.s32 %v93, 128
    %v110 = vadd.s32 %v93, 136
    %v111 = vadd.s32 %v93, 144
    %v112 = vadd.s32 %v93, 152
    %v113 = vadd.s32 %v93, 160
    %v114 = vadd.s32 %v93, 168
    %v115 = vadd.s32 %v93, 176
    %v116 = vadd.s32 %v93, 184
    %v117 = vadd.s32 %v93, 192
    %v118 = vadd.s32 %v93, 200
    %v119 = vadd.s32 %v93, 208
    %v120 = vadd.s32 %v93, 216
    %v121 = vadd.s32 %v93, 224
    %v122 = vadd.s32 %v93, 232
    %v123 = vadd.s32 %v93, 240
    %v124 = vadd.s32 %v93, 248
    %vm125 = vcmp.lt.s32.totalorder %v93, 0
    %v126 = vsub.s32 0, %v93
    %v127 = vsel %vm125, %v126, %v93
    %v128 = vshrl.u32 %v127, 4
    %v129 = vand.u32 %v127, 15
    %v130 = vsub.s32 0, %v129
    %v131 = vsel %vm125, %v130, %v129
    %vm132 = vcmp.lt.s32.totalorder %v94, 0
    %v133 = vsub.s32 0, %v94
    %v134 = vsel %vm132, %v133, %v94
    %v135 = vshrl.u32 %v134, 4
    %v136 = vand.u32 %v134, 15
    %v137 = vsub.s32 0, %v136
    %v138 = vsel %vm132, %v137, %v136
    %vm139 = vcmp.lt.s32.totalorder %v95, 0
    %v140 = vsub.s32 0, %v95
    %v141 = vsel %vm139, %v140, %v95
    %v142 = vshrl.u32 %v141, 4
    %v143 = vand.u32 %v141, 15
    %v144 = vsub.s32 0, %v143
    %v145 = vsel %vm139, %v144, %v143
    %vm146 = vcmp.lt.s32.totalorder %v96, 0
    %v147 = vsub.s32 0, %v96
    %v148 = vsel %vm146, %v147, %v96
    %v149 = vshrl.u32 %v148, 4
    %v150 = vand.u32 %v148, 15
    %v151 = vsub.s32 0, %v150
    %v152 = vsel %vm146, %v151, %v150
    %vm153 = vcmp.lt.s32.totalorder %v97, 0
    %v154 = vsub.s32 0, %v97
    %v155 = vsel %vm153, %v154, %v97
    %v156 = vshrl.u32 %v155, 4
    %v157 = vand.u32 %v155, 15
    %v158 = vsub.s32 0, %v157
    %v159 = vsel %vm153, %v158, %v157
    %vm160 = vcmp.lt.s32.totalorder %v98, 0
    %v161 = vsub.s32 0, %v98
    %v162 = vsel %vm160, %v161, %v98
    %v163 = vshrl.u32 %v162, 4
    %v164 = vand.u32 %v162, 15
    %v165 = vsub.s32 0, %v164
    %v166 = vsel %vm160, %v165, %v164
    %vm167 = vcmp.lt.s32.totalorder %v99, 0
    %v168 = vsub.s32 0, %v99
    %v169 = vsel %vm167, %v168, %v99
    %v170 = vshrl.u32 %v169, 4
    %v171 = vand.u32 %v169, 15
    %v172 = vsub.s32 0, %v171
    %v173 = vsel %vm167, %v172, %v171
    %vm174 = vcmp.lt.s32.totalorder %v100, 0
    %v175 = vsub.s32 0, %v100
    %v176 = vsel %vm174, %v175, %v100
    %v177 = vshrl.u32 %v176, 4
    %v178 = vand.u32 %v176, 15
    %v179 = vsub.s32 0, %v178
    %v180 = vsel %vm174, %v179, %v178
    %vm181 = vcmp.lt.s32.totalorder %v101, 0
    %v182 = vsub.s32 0, %v101
    %v183 = vsel %vm181, %v182, %v101
    %v184 = vshrl.u32 %v183, 4
    %v185 = vand.u32 %v183, 15
    %v186 = vsub.s32 0, %v185
    %v187 = vsel %vm181, %v186, %v185
    %vm188 = vcmp.lt.s32.totalorder %v102, 0
    %v189 = vsub.s32 0, %v102
    %v190 = vsel %vm188, %v189, %v102
    %v191 = vshrl.u32 %v190, 4
    %v192 = vand.u32 %v190, 15
    %v193 = vsub.s32 0, %v192
    %v194 = vsel %vm188, %v193, %v192
    %vm195 = vcmp.lt.s32.totalorder %v103, 0
    %v196 = vsub.s32 0, %v103
    %v197 = vsel %vm195, %v196, %v103
    %v198 = vshrl.u32 %v197, 4
    %v199 = vand.u32 %v197, 15
    %v200 = vsub.s32 0, %v199
    %v201 = vsel %vm195, %v200, %v199
    %vm202 = vcmp.lt.s32.totalorder %v104, 0
    %v203 = vsub.s32 0, %v104
    %v204 = vsel %vm202, %v203, %v104
    %v205 = vshrl.u32 %v204, 4
    %v206 = vand.u32 %v204, 15
    %v207 = vsub.s32 0, %v206
    %v208 = vsel %vm202, %v207, %v206
    %vm209 = vcmp.lt.s32.totalorder %v105, 0
    %v210 = vsub.s32 0, %v105
    %v211 = vsel %vm209, %v210, %v105
    %v212 = vshrl.u32 %v211, 4
    %v213 = vand.u32 %v211, 15
    %v214 = vsub.s32 0, %v213
    %v215 = vsel %vm209, %v214, %v213
    %vm216 = vcmp.lt.s32.totalorder %v106, 0
    %v217 = vsub.s32 0, %v106
    %v218 = vsel %vm216, %v217, %v106
    %v219 = vshrl.u32 %v218, 4
    %v220 = vand.u32 %v218, 15
    %v221 = vsub.s32 0, %v220
    %v222 = vsel %vm216, %v221, %v220
    %vm223 = vcmp.lt.s32.totalorder %v107, 0
    %v224 = vsub.s32 0, %v107
    %v225 = vsel %vm223, %v224, %v107
    %v226 = vshrl.u32 %v225, 4
    %v227 = vand.u32 %v225, 15
    %v228 = vsub.s32 0, %v227
    %v229 = vsel %vm223, %v228, %v227
    %vm230 = vcmp.lt.s32.totalorder %v108, 0
    %v231 = vsub.s32 0, %v108
    %v232 = vsel %vm230, %v231, %v108
    %v233 = vshrl.u32 %v232, 4
    %v234 = vand.u32 %v232, 15
    %v235 = vsub.s32 0, %v234
    %v236 = vsel %vm230, %v235, %v234
    %vm237 = vcmp.lt.s32.totalorder %v109, 0
    %v238 = vsub.s32 0, %v109
    %v239 = vsel %vm237, %v238, %v109
    %v240 = vshrl.u32 %v239, 4
    %v241 = vand.u32 %v239, 15
    %v242 = vsub.s32 0, %v241
    %v243 = vsel %vm237, %v242, %v241
    %vm244 = vcmp.lt.s32.totalorder %v110, 0
    %v245 = vsub.s32 0, %v110
    %v246 = vsel %vm244, %v245, %v110
    %v247 = vshrl.u32 %v246, 4
    %v248 = vand.u32 %v246, 15
    %v249 = vsub.s32 0, %v248
    %v250 = vsel %vm244, %v249, %v248
    %vm251 = vcmp.lt.s32.totalorder %v111, 0
    %v252 = vsub.s32 0, %v111
    %v253 = vsel %vm251, %v252, %v111
    %v254 = vshrl.u32 %v253, 4
    %v255 = vand.u32 %v253, 15
    %v256 = vsub.s32 0, %v255
    %v257 = vsel %vm251, %v256, %v255
    %vm258 = vcmp.lt.s32.totalorder %v112, 0
    %v259 = vsub.s32 0, %v112
    %v260 = vsel %vm258, %v259, %v112
    %v261 = vshrl.u32 %v260, 4
    %v262 = vand.u32 %v260, 15
    %v263 = vsub.s32 0, %v262
    %v264 = vsel %vm258, %v263, %v262
    %vm265 = vcmp.lt.s32.totalorder %v113, 0
    %v266 = vsub.s32 0, %v113
    %v267 = vsel %vm265, %v266, %v113
    %v268 = vshrl.u32 %v267, 4
    %v269 = vand.u32 %v267, 15
    %v270 = vsub.s32 0, %v269
    %v271 = vsel %vm265, %v270, %v269
    %vm272 = vcmp.lt.s32.totalorder %v114, 0
    %v273 = vsub.s32 0, %v114
    %v274 = vsel %vm272, %v273, %v114
    %v275 = vshrl.u32 %v274, 4
    %v276 = vand.u32 %v274, 15
    %v277 = vsub.s32 0, %v276
    %v278 = vsel %vm272, %v277, %v276
    %vm279 = vcmp.lt.s32.totalorder %v115, 0
    %v280 = vsub.s32 0, %v115
    %v281 = vsel %vm279, %v280, %v115
    %v282 = vshrl.u32 %v281, 4
    %v283 = vand.u32 %v281, 15
    %v284 = vsub.s32 0, %v283
    %v285 = vsel %vm279, %v284, %v283
    %vm286 = vcmp.lt.s32.totalorder %v116, 0
    %v287 = vsub.s32 0, %v116
    %v288 = vsel %vm286, %v287, %v116
    %v289 = vshrl.u32 %v288, 4
    %v290 = vand.u32 %v288, 15
    %v291 = vsub.s32 0, %v290
    %v292 = vsel %vm286, %v291, %v290
    %vm293 = vcmp.lt.s32.totalorder %v117, 0
    %v294 = vsub.s32 0, %v117
    %v295 = vsel %vm293, %v294, %v117
    %v296 = vshrl.u32 %v295, 4
    %v297 = vand.u32 %v295, 15
    %v298 = vsub.s32 0, %v297
    %v299 = vsel %vm293, %v298, %v297
    %vm300 = vcmp.lt.s32.totalorder %v118, 0
    %v301 = vsub.s32 0, %v118
    %v302 = vsel %vm300, %v301, %v118
    %v303 = vshrl.u32 %v302, 4
    %v304 = vand.u32 %v302, 15
    %v305 = vsub.s32 0, %v304
    %v306 = vsel %vm300, %v305, %v304
    %vm307 = vcmp.lt.s32.totalorder %v119, 0
    %v308 = vsub.s32 0, %v119
    %v309 = vsel %vm307, %v308, %v119
    %v310 = vshrl.u32 %v309, 4
    %v311 = vand.u32 %v309, 15
    %v312 = vsub.s32 0, %v311
    %v313 = vsel %vm307, %v312, %v311
    %vm314 = vcmp.lt.s32.totalorder %v120, 0
    %v315 = vsub.s32 0, %v120
    %v316 = vsel %vm314, %v315, %v120
    %v317 = vshrl.u32 %v316, 4
    %v318 = vand.u32 %v316, 15
    %v319 = vsub.s32 0, %v318
    %v320 = vsel %vm314, %v319, %v318
    %vm321 = vcmp.lt.s32.totalorder %v121, 0
    %v322 = vsub.s32 0, %v121
    %v323 = vsel %vm321, %v322, %v121
    %v324 = vshrl.u32 %v323, 4
    %v325 = vand.u32 %v323, 15
    %v326 = vsub.s32 0, %v325
    %v327 = vsel %vm321, %v326, %v325
    %vm328 = vcmp.lt.s32.totalorder %v122, 0
    %v329 = vsub.s32 0, %v122
    %v330 = vsel %vm328, %v329, %v122
    %v331 = vshrl.u32 %v330, 4
    %v332 = vand.u32 %v330, 15
    %v333 = vsub.s32 0, %v332
    %v334 = vsel %vm328, %v333, %v332
    %vm335 = vcmp.lt.s32.totalorder %v123, 0
    %v336 = vsub.s32 0, %v123
    %v337 = vsel %vm335, %v336, %v123
    %v338 = vshrl.u32 %v337, 4
    %v339 = vand.u32 %v337, 15
    %v340 = vsub.s32 0, %v339
    %v341 = vsel %vm335, %v340, %v339
    %vm342 = vcmp.lt.s32.totalorder %v124, 0
    %v343 = vsub.s32 0, %v124
    %v344 = vsel %vm342, %v343, %v124
    %v345 = vshrl.u32 %v344, 4
    %v346 = vand.u32 %v344, 15
    %v347 = vsub.s32 0, %v346
    %v348 = vsel %vm342, %v347, %v346
    %vm349 = vcmp.ne.s32.totalorder %v131, 0
    %vm350 = vcmp.ne.s32.totalorder %v138, 0
    %vm351 = vcmp.ne.s32.totalorder %v145, 0
    %vm352 = vcmp.ne.s32.totalorder %v152, 0
    %vm353 = vcmp.ne.s32.totalorder %v159, 0
    %vm354 = vcmp.ne.s32.totalorder %v166, 0
    %vm355 = vcmp.ne.s32.totalorder %v173, 0
    %vm356 = vcmp.ne.s32.totalorder %v180, 0
    %vm357 = vcmp.ne.s32.totalorder %v187, 0
    %vm358 = vcmp.ne.s32.totalorder %v194, 0
    %vm359 = vcmp.ne.s32.totalorder %v201, 0
    %vm360 = vcmp.ne.s32.totalorder %v208, 0
    %vm361 = vcmp.ne.s32.totalorder %v215, 0
    %vm362 = vcmp.ne.s32.totalorder %v222, 0
    %vm363 = vcmp.ne.s32.totalorder %v229, 0
    %vm364 = vcmp.ne.s32.totalorder %v236, 0
    %vm365 = vcmp.ne.s32.totalorder %v243, 0
    %vm366 = vcmp.ne.s32.totalorder %v250, 0
    %vm367 = vcmp.ne.s32.totalorder %v257, 0
    %vm368 = vcmp.ne.s32.totalorder %v264, 0
    %vm369 = vcmp.ne.s32.totalorder %v271, 0
    %vm370 = vcmp.ne.s32.totalorder %v278, 0
    %vm371 = vcmp.ne.s32.totalorder %v285, 0
    %vm372 = vcmp.ne.s32.totalorder %v292, 0
    %vm373 = vcmp.ne.s32.totalorder %v299, 0
    %vm374 = vcmp.ne.s32.totalorder %v306, 0
    %vm375 = vcmp.ne.s32.totalorder %v313, 0
    %vm376 = vcmp.ne.s32.totalorder %v320, 0
    %vm377 = vcmp.ne.s32.totalorder %v327, 0
    %vm378 = vcmp.ne.s32.totalorder %v334, 0
    %vm379 = vcmp.ne.s32.totalorder %v341, 0
    %vm380 = vcmp.ne.s32.totalorder %v348, 0
    %vm381 = vcmp.lt.s32.totalorder %v131, 0
    %vm382 = vcmp.lt.s32.totalorder %v138, 0
    %vm383 = vcmp.lt.s32.totalorder %v145, 0
    %vm384 = vcmp.lt.s32.totalorder %v152, 0
    %vm385 = vcmp.lt.s32.totalorder %v159, 0
    %vm386 = vcmp.lt.s32.totalorder %v166, 0
    %vm387 = vcmp.lt.s32.totalorder %v173, 0
    %vm388 = vcmp.lt.s32.totalorder %v180, 0
    %vm389 = vcmp.lt.s32.totalorder %v187, 0
    %vm390 = vcmp.lt.s32.totalorder %v194, 0
    %vm391 = vcmp.lt.s32.totalorder %v201, 0
    %vm392 = vcmp.lt.s32.totalorder %v208, 0
    %vm393 = vcmp.lt.s32.totalorder %v215, 0
    %vm394 = vcmp.lt.s32.totalorder %v222, 0
    %vm395 = vcmp.lt.s32.totalorder %v229, 0
    %vm396 = vcmp.lt.s32.totalorder %v236, 0
    %vm397 = vcmp.lt.s32.totalorder %v243, 0
    %vm398 = vcmp.lt.s32.totalorder %v250, 0
    %vm399 = vcmp.lt.s32.totalorder %v257, 0
    %vm400 = vcmp.lt.s32.totalorder %v264, 0
    %vm401 = vcmp.lt.s32.totalorder %v271, 0
    %vm402 = vcmp.lt.s32.totalorder %v278, 0
    %vm403 = vcmp.lt.s32.totalorder %v285, 0
    %vm404 = vcmp.lt.s32.totalorder %v292, 0
    %vm405 = vcmp.lt.s32.totalorder %v299, 0
    %vm406 = vcmp.lt.s32.totalorder %v306, 0
    %vm407 = vcmp.lt.s32.totalorder %v313, 0
    %vm408 = vcmp.lt.s32.totalorder %v320, 0
    %vm409 = vcmp.lt.s32.totalorder %v327, 0
    %vm410 = vcmp.lt.s32.totalorder %v334, 0
    %vm411 = vcmp.lt.s32.totalorder %v341, 0
    %vm412 = vcmp.lt.s32.totalorder %v348, 0
    %vm413 = vmand %vm381, %vm349
    %vm414 = vmand %vm382, %vm350
    %vm415 = vmand %vm383, %vm351
    %vm416 = vmand %vm384, %vm352
    %vm417 = vmand %vm385, %vm353
    %vm418 = vmand %vm386, %vm354
    %vm419 = vmand %vm387, %vm355
    %vm420 = vmand %vm388, %vm356
    %vm421 = vmand %vm389, %vm357
    %vm422 = vmand %vm390, %vm358
    %vm423 = vmand %vm391, %vm359
    %vm424 = vmand %vm392, %vm360
    %vm425 = vmand %vm393, %vm361
    %vm426 = vmand %vm394, %vm362
    %vm427 = vmand %vm395, %vm363
    %vm428 = vmand %vm396, %vm364
    %vm429 = vmand %vm397, %vm365
    %vm430 = vmand %vm398, %vm366
    %vm431 = vmand %vm399, %vm367
    %vm432 = vmand %vm400, %vm368
    %vm433 = vmand %vm401, %vm369
    %vm434 = vmand %vm402, %vm370
    %vm435 = vmand %vm403, %vm371
    %vm436 = vmand %vm404, %vm372
    %vm437 = vmand %vm405, %vm373
    %vm438 = vmand %vm406, %vm374
    %vm439 = vmand %vm407, %vm375
    %vm440 = vmand %vm408, %vm376
    %vm441 = vmand %vm409, %vm377
    %vm442 = vmand %vm410, %vm378
    %vm443 = vmand %vm411, %vm379
    %vm444 = vmand %vm412, %vm380
    %v445 = vadd.s32 %v131, 16
    %v446 = vadd.s32 %v138, 16
    %v447 = vadd.s32 %v145, 16
    %v448 = vadd.s32 %v152, 16
    %v449 = vadd.s32 %v159, 16
    %v450 = vadd.s32 %v166, 16
    %v451 = vadd.s32 %v173, 16
    %v452 = vadd.s32 %v180, 16
    %v453 = vadd.s32 %v187, 16
    %v454 = vadd.s32 %v194, 16
    %v455 = vadd.s32 %v201, 16
    %v456 = vadd.s32 %v208, 16
    %v457 = vadd.s32 %v215, 16
    %v458 = vadd.s32 %v222, 16
    %v459 = vadd.s32 %v229, 16
    %v460 = vadd.s32 %v236, 16
    %v461 = vadd.s32 %v243, 16
    %v462 = vadd.s32 %v250, 16
    %v463 = vadd.s32 %v257, 16
    %v464 = vadd.s32 %v264, 16
    %v465 = vadd.s32 %v271, 16
    %v466 = vadd.s32 %v278, 16
    %v467 = vadd.s32 %v285, 16
    %v468 = vadd.s32 %v292, 16
    %v469 = vadd.s32 %v299, 16
    %v470 = vadd.s32 %v306, 16
    %v471 = vadd.s32 %v313, 16
    %v472 = vadd.s32 %v320, 16
    %v473 = vadd.s32 %v327, 16
    %v474 = vadd.s32 %v334, 16
    %v475 = vadd.s32 %v341, 16
    %v476 = vadd.s32 %v348, 16
    %v477 = vsel %vm413, %v445, %v131
    %v478 = vsel %vm414, %v446, %v138
    %v479 = vsel %vm415, %v447, %v145
    %v480 = vsel %vm416, %v448, %v152
    %v481 = vsel %vm417, %v449, %v159
    %v482 = vsel %vm418, %v450, %v166
    %v483 = vsel %vm419, %v451, %v173
    %v484 = vsel %vm420, %v452, %v180
    %v485 = vsel %vm421, %v453, %v187
    %v486 = vsel %vm422, %v454, %v194
    %v487 = vsel %vm423, %v455, %v201
    %v488 = vsel %vm424, %v456, %v208
    %v489 = vsel %vm425, %v457, %v215
    %v490 = vsel %vm426, %v458, %v222
    %v491 = vsel %vm427, %v459, %v229
    %v492 = vsel %vm428, %v460, %v236
    %v493 = vsel %vm429, %v461, %v243
    %v494 = vsel %vm430, %v462, %v250
    %v495 = vsel %vm431, %v463, %v257
    %v496 = vsel %vm432, %v464, %v264
    %v497 = vsel %vm433, %v465, %v271
    %v498 = vsel %vm434, %v466, %v278
    %v499 = vsel %vm435, %v467, %v285
    %v500 = vsel %vm436, %v468, %v292
    %v501 = vsel %vm437, %v469, %v299
    %v502 = vsel %vm438, %v470, %v306
    %v503 = vsel %vm439, %v471, %v313
    %v504 = vsel %vm440, %v472, %v320
    %v505 = vsel %vm441, %v473, %v327
    %v506 = vsel %vm442, %v474, %v334
    %v507 = vsel %vm443, %v475, %v341
    %v508 = vsel %vm444, %v476, %v348
    %vm509 = vcmp.eq.s32.totalorder %v477, 0
    %vm510 = vcmp.eq.s32.totalorder %v478, 0
    %vm511 = vcmp.eq.s32.totalorder %v479, 0
    %vm512 = vcmp.eq.s32.totalorder %v480, 0
    %vm513 = vcmp.eq.s32.totalorder %v481, 0
    %vm514 = vcmp.eq.s32.totalorder %v482, 0
    %vm515 = vcmp.eq.s32.totalorder %v483, 0
    %vm516 = vcmp.eq.s32.totalorder %v484, 0
    %vm517 = vcmp.eq.s32.totalorder %v485, 0
    %vm518 = vcmp.eq.s32.totalorder %v486, 0
    %vm519 = vcmp.eq.s32.totalorder %v487, 0
    %vm520 = vcmp.eq.s32.totalorder %v488, 0
    %vm521 = vcmp.eq.s32.totalorder %v489, 0
    %vm522 = vcmp.eq.s32.totalorder %v490, 0
    %vm523 = vcmp.eq.s32.totalorder %v491, 0
    %vm524 = vcmp.eq.s32.totalorder %v492, 0
    %vm525 = vcmp.eq.s32.totalorder %v493, 0
    %vm526 = vcmp.eq.s32.totalorder %v494, 0
    %vm527 = vcmp.eq.s32.totalorder %v495, 0
    %vm528 = vcmp.eq.s32.totalorder %v496, 0
    %vm529 = vcmp.eq.s32.totalorder %v497, 0
    %vm530 = vcmp.eq.s32.totalorder %v498, 0
    %vm531 = vcmp.eq.s32.totalorder %v499, 0
    %vm532 = vcmp.eq.s32.totalorder %v500, 0
    %vm533 = vcmp.eq.s32.totalorder %v501, 0
    %vm534 = vcmp.eq.s32.totalorder %v502, 0
    %vm535 = vcmp.eq.s32.totalorder %v503, 0
    %vm536 = vcmp.eq.s32.totalorder %v504, 0
    %vm537 = vcmp.eq.s32.totalorder %v505, 0
    %vm538 = vcmp.eq.s32.totalorder %v506, 0
    %vm539 = vcmp.eq.s32.totalorder %v507, 0
    %vm540 = vcmp.eq.s32.totalorder %v508, 0
    %vm541 = vcmp.eq.s32.totalorder %v477, 15
    %vm542 = vcmp.eq.s32.totalorder %v478, 15
    %vm543 = vcmp.eq.s32.totalorder %v479, 15
    %vm544 = vcmp.eq.s32.totalorder %v480, 15
    %vm545 = vcmp.eq.s32.totalorder %v481, 15
    %vm546 = vcmp.eq.s32.totalorder %v482, 15
    %vm547 = vcmp.eq.s32.totalorder %v483, 15
    %vm548 = vcmp.eq.s32.totalorder %v484, 15
    %vm549 = vcmp.eq.s32.totalorder %v485, 15
    %vm550 = vcmp.eq.s32.totalorder %v486, 15
    %vm551 = vcmp.eq.s32.totalorder %v487, 15
    %vm552 = vcmp.eq.s32.totalorder %v488, 15
    %vm553 = vcmp.eq.s32.totalorder %v489, 15
    %vm554 = vcmp.eq.s32.totalorder %v490, 15
    %vm555 = vcmp.eq.s32.totalorder %v491, 15
    %vm556 = vcmp.eq.s32.totalorder %v492, 15
    %vm557 = vcmp.eq.s32.totalorder %v493, 15
    %vm558 = vcmp.eq.s32.totalorder %v494, 15
    %vm559 = vcmp.eq.s32.totalorder %v495, 15
    %vm560 = vcmp.eq.s32.totalorder %v496, 15
    %vm561 = vcmp.eq.s32.totalorder %v497, 15
    %vm562 = vcmp.eq.s32.totalorder %v498, 15
    %vm563 = vcmp.eq.s32.totalorder %v499, 15
    %vm564 = vcmp.eq.s32.totalorder %v500, 15
    %vm565 = vcmp.eq.s32.totalorder %v501, 15
    %vm566 = vcmp.eq.s32.totalorder %v502, 15
    %vm567 = vcmp.eq.s32.totalorder %v503, 15
    %vm568 = vcmp.eq.s32.totalorder %v504, 15
    %vm569 = vcmp.eq.s32.totalorder %v505, 15
    %vm570 = vcmp.eq.s32.totalorder %v506, 15
    %vm571 = vcmp.eq.s32.totalorder %v507, 15
    %vm572 = vcmp.eq.s32.totalorder %v508, 15
    %v573 = vrot.slane %v60, 7
    %v574 = vrot.slane %v61, 7
    %v575 = vrot.slane %v62, 7
    %v576 = vrot.slane %v63, 7
    %v577 = vrot.slane %v64, 7
    %v578 = vrot.slane %v65, 7
    %v579 = vrot.slane %v66, 7
    %v580 = vrot.slane %v67, 7
    %v581 = vrot.slane %v68, 7
    %v582 = vrot.slane %v69, 7
    %v583 = vrot.slane %v70, 7
    %v584 = vrot.slane %v71, 7
    %v585 = vrot.slane %v72, 7
    %v586 = vrot.slane %v73, 7
    %v587 = vrot.slane %v74, 7
    %v588 = vrot.slane %v75, 7
    %v589 = vrot.slane %v76, 7
    %v590 = vrot.slane %v77, 7
    %v591 = vrot.slane %v78, 7
    %v592 = vrot.slane %v79, 7
    %v593 = vrot.slane %v80, 7
    %v594 = vrot.slane %v81, 7
    %v595 = vrot.slane %v82, 7
    %v596 = vrot.slane %v83, 7
    %v597 = vrot.slane %v84, 7
    %v598 = vrot.slane %v85, 7
    %v599 = vrot.slane %v86, 7
    %v600 = vrot.slane %v87, 7
    %v601 = vrot.slane %v88, 7
    %v602 = vrot.slane %v89, 7
    %v603 = vrot.slane %v90, 7
    %v604 = vrot.slane %v91, 7
    %vm605 = vcmp.lt.s32.totalorder %v93, 1
    %v606 = vsel %vm605, %v603, %v604
    %v607 = vsel %vm605, %v602, %v603
    %v608 = vsel %vm605, %v601, %v602
    %v609 = vsel %vm605, %v600, %v601
    %v610 = vsel %vm605, %v599, %v600
    %v611 = vsel %vm605, %v598, %v599
    %v612 = vsel %vm605, %v597, %v598
    %v613 = vsel %vm605, %v596, %v597
    %v614 = vsel %vm605, %v595, %v596
    %v615 = vsel %vm605, %v594, %v595
    %v616 = vsel %vm605, %v593, %v594
    %v617 = vsel %vm605, %v592, %v593
    %v618 = vsel %vm605, %v591, %v592
    %v619 = vsel %vm605, %v590, %v591
    %v620 = vsel %vm605, %v589, %v590
    %v621 = vsel %vm605, %v588, %v589
    %v622 = vsel %vm605, %v587, %v588
    %v623 = vsel %vm605, %v586, %v587
    %v624 = vsel %vm605, %v585, %v586
    %v625 = vsel %vm605, %v584, %v585
    %v626 = vsel %vm605, %v583, %v584
    %v627 = vsel %vm605, %v582, %v583
    %v628 = vsel %vm605, %v581, %v582
    %v629 = vsel %vm605, %v580, %v581
    %v630 = vsel %vm605, %v579, %v580
    %v631 = vsel %vm605, %v578, %v579
    %v632 = vsel %vm605, %v577, %v578
    %v633 = vsel %vm605, %v576, %v577
    %v634 = vsel %vm605, %v575, %v576
    %v635 = vsel %vm605, %v574, %v575
    %v636 = vsel %vm605, %v573, %v574
    %v637 = vsel %vm605, %v604, %v573
    %v638 = vsel %vm509, 1, 0
    %v639 = vsel %vm510, 1, 0
    %v640 = vsel %vm511, 1, 0
    %v641 = vsel %vm512, 1, 0
    %v642 = vsel %vm513, 1, 0
    %v643 = vsel %vm514, 1, 0
    %v644 = vsel %vm515, 1, 0
    %v645 = vsel %vm516, 1, 0
    %v646 = vsel %vm517, 1, 0
    %v647 = vsel %vm518, 1, 0
    %v648 = vsel %vm519, 1, 0
    %v649 = vsel %vm520, 1, 0
    %v650 = vsel %vm521, 1, 0
    %v651 = vsel %vm522, 1, 0
    %v652 = vsel %vm523, 1, 0
    %v653 = vsel %vm524, 1, 0
    %v654 = vsel %vm525, 1, 0
    %v655 = vsel %vm526, 1, 0
    %v656 = vsel %vm527, 1, 0
    %v657 = vsel %vm528, 1, 0
    %v658 = vsel %vm529, 1, 0
    %v659 = vsel %vm530, 1, 0
    %v660 = vsel %vm531, 1, 0
    %v661 = vsel %vm532, 1, 0
    %v662 = vsel %vm533, 1, 0
    %v663 = vsel %vm534, 1, 0
    %v664 = vsel %vm535, 1, 0
    %v665 = vsel %vm536, 1, 0
    %v666 = vsel %vm537, 1, 0
    %v667 = vsel %vm538, 1, 0
    %v668 = vsel %vm539, 1, 0
    %v669 = vsel %vm540, 1, 0
    %vm670 = vcmp.eq.s32.totalorder %v638, 1
    %vm671 = vcmp.eq.s32.totalorder %v639, 1
    %vm672 = vcmp.eq.s32.totalorder %v640, 1
    %vm673 = vcmp.eq.s32.totalorder %v641, 1
    %vm674 = vcmp.eq.s32.totalorder %v642, 1
    %vm675 = vcmp.eq.s32.totalorder %v643, 1
    %vm676 = vcmp.eq.s32.totalorder %v644, 1
    %vm677 = vcmp.eq.s32.totalorder %v645, 1
    %vm678 = vcmp.eq.s32.totalorder %v646, 1
    %vm679 = vcmp.eq.s32.totalorder %v647, 1
    %vm680 = vcmp.eq.s32.totalorder %v648, 1
    %vm681 = vcmp.eq.s32.totalorder %v649, 1
    %vm682 = vcmp.eq.s32.totalorder %v650, 1
    %vm683 = vcmp.eq.s32.totalorder %v651, 1
    %vm684 = vcmp.eq.s32.totalorder %v652, 1
    %vm685 = vcmp.eq.s32.totalorder %v653, 1
    %vm686 = vcmp.eq.s32.totalorder %v654, 1
    %vm687 = vcmp.eq.s32.totalorder %v655, 1
    %vm688 = vcmp.eq.s32.totalorder %v656, 1
    %vm689 = vcmp.eq.s32.totalorder %v657, 1
    %vm690 = vcmp.eq.s32.totalorder %v658, 1
    %vm691 = vcmp.eq.s32.totalorder %v659, 1
    %vm692 = vcmp.eq.s32.totalorder %v660, 1
    %vm693 = vcmp.eq.s32.totalorder %v661, 1
    %vm694 = vcmp.eq.s32.totalorder %v662, 1
    %vm695 = vcmp.eq.s32.totalorder %v663, 1
    %vm696 = vcmp.eq.s32.totalorder %v664, 1
    %vm697 = vcmp.eq.s32.totalorder %v665, 1
    %vm698 = vcmp.eq.s32.totalorder %v666, 1
    %vm699 = vcmp.eq.s32.totalorder %v667, 1
    %vm700 = vcmp.eq.s32.totalorder %v668, 1
    %vm701 = vcmp.eq.s32.totalorder %v669, 1
    %v702 = vsel %vm670, 0.0, %v637
    %v703 = vsel %vm671, 0.0, %v636
    %v704 = vsel %vm672, 0.0, %v635
    %v705 = vsel %vm673, 0.0, %v634
    %v706 = vsel %vm674, 0.0, %v633
    %v707 = vsel %vm675, 0.0, %v632
    %v708 = vsel %vm676, 0.0, %v631
    %v709 = vsel %vm677, 0.0, %v630
    %v710 = vsel %vm678, 0.0, %v629
    %v711 = vsel %vm679, 0.0, %v628
    %v712 = vsel %vm680, 0.0, %v627
    %v713 = vsel %vm681, 0.0, %v626
    %v714 = vsel %vm682, 0.0, %v625
    %v715 = vsel %vm683, 0.0, %v624
    %v716 = vsel %vm684, 0.0, %v623
    %v717 = vsel %vm685, 0.0, %v622
    %v718 = vsel %vm686, 0.0, %v621
    %v719 = vsel %vm687, 0.0, %v620
    %v720 = vsel %vm688, 0.0, %v619
    %v721 = vsel %vm689, 0.0, %v618
    %v722 = vsel %vm690, 0.0, %v617
    %v723 = vsel %vm691, 0.0, %v616
    %v724 = vsel %vm692, 0.0, %v615
    %v725 = vsel %vm693, 0.0, %v614
    %v726 = vsel %vm694, 0.0, %v613
    %v727 = vsel %vm695, 0.0, %v612
    %v728 = vsel %vm696, 0.0, %v611
    %v729 = vsel %vm697, 0.0, %v610
    %v730 = vsel %vm698, 0.0, %v609
    %v731 = vsel %vm699, 0.0, %v608
    %v732 = vsel %vm700, 0.0, %v607
    %v733 = vsel %vm701, 0.0, %v606
    %v734 = vrot.slane %v60, 1
    %v735 = vrot.slane %v61, 1
    %v736 = vrot.slane %v62, 1
    %v737 = vrot.slane %v63, 1
    %v738 = vrot.slane %v64, 1
    %v739 = vrot.slane %v65, 1
    %v740 = vrot.slane %v66, 1
    %v741 = vrot.slane %v67, 1
    %v742 = vrot.slane %v68, 1
    %v743 = vrot.slane %v69, 1
    %v744 = vrot.slane %v70, 1
    %v745 = vrot.slane %v71, 1
    %v746 = vrot.slane %v72, 1
    %v747 = vrot.slane %v73, 1
    %v748 = vrot.slane %v74, 1
    %v749 = vrot.slane %v75, 1
    %v750 = vrot.slane %v76, 1
    %v751 = vrot.slane %v77, 1
    %v752 = vrot.slane %v78, 1
    %v753 = vrot.slane %v79, 1
    %v754 = vrot.slane %v80, 1
    %v755 = vrot.slane %v81, 1
    %v756 = vrot.slane %v82, 1
    %v757 = vrot.slane %v83, 1
    %v758 = vrot.slane %v84, 1
    %v759 = vrot.slane %v85, 1
    %v760 = vrot.slane %v86, 1
    %v761 = vrot.slane %v87, 1
    %v762 = vrot.slane %v88, 1
    %v763 = vrot.slane %v89, 1
    %v764 = vrot.slane %v90, 1
    %v765 = vrot.slane %v91, 1
    %vm766 = vcmp.lt.s32.totalorder %v93, 7
    %v767 = vsel %vm766, %v764, %v765
    %v768 = vsel %vm766, %v763, %v764
    %v769 = vsel %vm766, %v762, %v763
    %v770 = vsel %vm766, %v761, %v762
    %v771 = vsel %vm766, %v760, %v761
    %v772 = vsel %vm766, %v759, %v760
    %v773 = vsel %vm766, %v758, %v759
    %v774 = vsel %vm766, %v757, %v758
    %v775 = vsel %vm766, %v756, %v757
    %v776 = vsel %vm766, %v755, %v756
    %v777 = vsel %vm766, %v754, %v755
    %v778 = vsel %vm766, %v753, %v754
    %v779 = vsel %vm766, %v752, %v753
    %v780 = vsel %vm766, %v751, %v752
    %v781 = vsel %vm766, %v750, %v751
    %v782 = vsel %vm766, %v749, %v750
    %v783 = vsel %vm766, %v748, %v749
    %v784 = vsel %vm766, %v747, %v748
    %v785 = vsel %vm766, %v746, %v747
    %v786 = vsel %vm766, %v745, %v746
    %v787 = vsel %vm766, %v744, %v745
    %v788 = vsel %vm766, %v743, %v744
    %v789 = vsel %vm766, %v742, %v743
    %v790 = vsel %vm766, %v741, %v742
    %v791 = vsel %vm766, %v740, %v741
    %v792 = vsel %vm766, %v739, %v740
    %v793 = vsel %vm766, %v738, %v739
    %v794 = vsel %vm766, %v737, %v738
    %v795 = vsel %vm766, %v736, %v737
    %v796 = vsel %vm766, %v735, %v736
    %v797 = vsel %vm766, %v734, %v735
    %v798 = vsel %vm766, %v765, %v734
    %v799 = vsel %vm541, 1, 0
    %v800 = vsel %vm542, 1, 0
    %v801 = vsel %vm543, 1, 0
    %v802 = vsel %vm544, 1, 0
    %v803 = vsel %vm545, 1, 0
    %v804 = vsel %vm546, 1, 0
    %v805 = vsel %vm547, 1, 0
    %v806 = vsel %vm548, 1, 0
    %v807 = vsel %vm549, 1, 0
    %v808 = vsel %vm550, 1, 0
    %v809 = vsel %vm551, 1, 0
    %v810 = vsel %vm552, 1, 0
    %v811 = vsel %vm553, 1, 0
    %v812 = vsel %vm554, 1, 0
    %v813 = vsel %vm555, 1, 0
    %v814 = vsel %vm556, 1, 0
    %v815 = vsel %vm557, 1, 0
    %v816 = vsel %vm558, 1, 0
    %v817 = vsel %vm559, 1, 0
    %v818 = vsel %vm560, 1, 0
    %v819 = vsel %vm561, 1, 0
    %v820 = vsel %vm562, 1, 0
    %v821 = vsel %vm563, 1, 0
    %v822 = vsel %vm564, 1, 0
    %v823 = vsel %vm565, 1, 0
    %v824 = vsel %vm566, 1, 0
    %v825 = vsel %vm567, 1, 0
    %v826 = vsel %vm568, 1, 0
    %v827 = vsel %vm569, 1, 0
    %v828 = vsel %vm570, 1, 0
    %v829 = vsel %vm571, 1, 0
    %v830 = vsel %vm572, 1, 0
    %vm831 = vcmp.eq.s32.totalorder %v799, 1
    %vm832 = vcmp.eq.s32.totalorder %v800, 1
    %vm833 = vcmp.eq.s32.totalorder %v801, 1
    %vm834 = vcmp.eq.s32.totalorder %v802, 1
    %vm835 = vcmp.eq.s32.totalorder %v803, 1
    %vm836 = vcmp.eq.s32.totalorder %v804, 1
    %vm837 = vcmp.eq.s32.totalorder %v805, 1
    %vm838 = vcmp.eq.s32.totalorder %v806, 1
    %vm839 = vcmp.eq.s32.totalorder %v807, 1
    %vm840 = vcmp.eq.s32.totalorder %v808, 1
    %vm841 = vcmp.eq.s32.totalorder %v809, 1
    %vm842 = vcmp.eq.s32.totalorder %v810, 1
    %vm843 = vcmp.eq.s32.totalorder %v811, 1
    %vm844 = vcmp.eq.s32.totalorder %v812, 1
    %vm845 = vcmp.eq.s32.totalorder %v813, 1
    %vm846 = vcmp.eq.s32.totalorder %v814, 1
    %vm847 = vcmp.eq.s32.totalorder %v815, 1
    %vm848 = vcmp.eq.s32.totalorder %v816, 1
    %vm849 = vcmp.eq.s32.totalorder %v817, 1
    %vm850 = vcmp.eq.s32.totalorder %v818, 1
    %vm851 = vcmp.eq.s32.totalorder %v819, 1
    %vm852 = vcmp.eq.s32.totalorder %v820, 1
    %vm853 = vcmp.eq.s32.totalorder %v821, 1
    %vm854 = vcmp.eq.s32.totalorder %v822, 1
    %vm855 = vcmp.eq.s32.totalorder %v823, 1
    %vm856 = vcmp.eq.s32.totalorder %v824, 1
    %vm857 = vcmp.eq.s32.totalorder %v825, 1
    %vm858 = vcmp.eq.s32.totalorder %v826, 1
    %vm859 = vcmp.eq.s32.totalorder %v827, 1
    %vm860 = vcmp.eq.s32.totalorder %v828, 1
    %vm861 = vcmp.eq.s32.totalorder %v829, 1
    %vm862 = vcmp.eq.s32.totalorder %v830, 1
    %v863 = vsel %vm831, 0.0, %v797
    %v864 = vsel %vm832, 0.0, %v796
    %v865 = vsel %vm833, 0.0, %v795
    %v866 = vsel %vm834, 0.0, %v794
    %v867 = vsel %vm835, 0.0, %v793
    %v868 = vsel %vm836, 0.0, %v792
    %v869 = vsel %vm837, 0.0, %v791
    %v870 = vsel %vm838, 0.0, %v790
    %v871 = vsel %vm839, 0.0, %v789
    %v872 = vsel %vm840, 0.0, %v788
    %v873 = vsel %vm841, 0.0, %v787
    %v874 = vsel %vm842, 0.0, %v786
    %v875 = vsel %vm843, 0.0, %v785
    %v876 = vsel %vm844, 0.0, %v784
    %v877 = vsel %vm845, 0.0, %v783
    %v878 = vsel %vm846, 0.0, %v782
    %v879 = vsel %vm847, 0.0, %v781
    %v880 = vsel %vm848, 0.0, %v780
    %v881 = vsel %vm849, 0.0, %v779
    %v882 = vsel %vm850, 0.0, %v778
    %v883 = vsel %vm851, 0.0, %v777
    %v884 = vsel %vm852, 0.0, %v776
    %v885 = vsel %vm853, 0.0, %v775
    %v886 = vsel %vm854, 0.0, %v774
    %v887 = vsel %vm855, 0.0, %v773
    %v888 = vsel %vm856, 0.0, %v772
    %v889 = vsel %vm857, 0.0, %v771
    %v890 = vsel %vm858, 0.0, %v770
    %v891 = vsel %vm859, 0.0, %v769
    %v892 = vsel %vm860, 0.0, %v768
    %v893 = vsel %vm861, 0.0, %v767
    %v894 = vsel %vm862, 0.0, %v798
    %927 = vrot.lane.b32.xlu0 %v60, 4
    %v928 = vpop.permute.xlu0 %927
    %929 = vrot.lane.b32.xlu0 %v61, 4
    %v930 = vpop.permute.xlu0 %929
    %931 = vrot.lane.b32.xlu0 %v62, 4
    %v932 = vpop.permute.xlu0 %931
    %933 = vrot.lane.b32.xlu0 %v63, 4
    %v934 = vpop.permute.xlu0 %933
    %935 = vrot.lane.b32.xlu0 %v64, 4
    %v936 = vpop.permute.xlu0 %935
    %937 = vrot.lane.b32.xlu0 %v65, 4
    %v938 = vpop.permute.xlu0 %937
    %939 = vrot.lane.b32.xlu0 %v66, 4
    %v940 = vpop.permute.xlu0 %939
    %941 = vrot.lane.b32.xlu0 %v67, 4
    %v942 = vpop.permute.xlu0 %941
    %943 = vrot.lane.b32.xlu0 %v68, 4
    %v944 = vpop.permute.xlu0 %943
    %945 = vrot.lane.b32.xlu0 %v69, 4
    %v946 = vpop.permute.xlu0 %945
    %947 = vrot.lane.b32.xlu0 %v70, 4
    %v948 = vpop.permute.xlu0 %947
    %949 = vrot.lane.b32.xlu0 %v71, 4
    %v950 = vpop.permute.xlu0 %949
    %951 = vrot.lane.b32.xlu0 %v72, 4
    %v952 = vpop.permute.xlu0 %951
    %953 = vrot.lane.b32.xlu0 %v73, 4
    %v954 = vpop.permute.xlu0 %953
    %955 = vrot.lane.b32.xlu0 %v74, 4
    %v956 = vpop.permute.xlu0 %955
    %957 = vrot.lane.b32.xlu0 %v75, 4
    %v958 = vpop.permute.xlu0 %957
    %959 = vrot.lane.b32.xlu0 %v76, 4
    %v960 = vpop.permute.xlu0 %959
    %961 = vrot.lane.b32.xlu0 %v77, 4
    %v962 = vpop.permute.xlu0 %961
    %963 = vrot.lane.b32.xlu0 %v78, 4
    %v964 = vpop.permute.xlu0 %963
    %965 = vrot.lane.b32.xlu0 %v79, 4
    %v966 = vpop.permute.xlu0 %965
    %967 = vrot.lane.b32.xlu0 %v80, 4
    %v968 = vpop.permute.xlu0 %967
    %969 = vrot.lane.b32.xlu0 %v81, 4
    %v970 = vpop.permute.xlu0 %969
    %971 = vrot.lane.b32.xlu0 %v82, 4
    %v972 = vpop.permute.xlu0 %971
    %973 = vrot.lane.b32.xlu0 %v83, 4
    %v974 = vpop.permute.xlu0 %973
    %975 = vrot.lane.b32.xlu0 %v84, 4
    %v976 = vpop.permute.xlu0 %975
    %977 = vrot.lane.b32.xlu0 %v85, 4
    %v978 = vpop.permute.xlu0 %977
    %979 = vrot.lane.b32.xlu0 %v86, 4
    %v980 = vpop.permute.xlu0 %979
    %981 = vrot.lane.b32.xlu0 %v87, 4
    %v982 = vpop.permute.xlu0 %981
    %983 = vrot.lane.b32.xlu0 %v88, 4
    %v984 = vpop.permute.xlu0 %983
    %985 = vrot.lane.b32.xlu0 %v89, 4
    %v986 = vpop.permute.xlu0 %985
    %987 = vrot.lane.b32.xlu0 %v90, 4
    %v988 = vpop.permute.xlu0 %987
    %989 = vrot.lane.b32.xlu0 %v91, 4
    %v990 = vpop.permute.xlu0 %989
    %1055 = vrot.lane.b32.xlu0 %v863, 8
    %v1056 = vpop.permute.xlu0 %1055
    %1057 = vrot.lane.b32.xlu0 %v864, 8
    %v1058 = vpop.permute.xlu0 %1057
    %1059 = vrot.lane.b32.xlu0 %v865, 8
    %v1060 = vpop.permute.xlu0 %1059
    %1061 = vrot.lane.b32.xlu0 %v866, 8
    %v1062 = vpop.permute.xlu0 %1061
    %1063 = vrot.lane.b32.xlu0 %v867, 8
    %v1064 = vpop.permute.xlu0 %1063
    %1065 = vrot.lane.b32.xlu0 %v868, 8
    %v1066 = vpop.permute.xlu0 %1065
    %1067 = vrot.lane.b32.xlu0 %v869, 8
    %v1068 = vpop.permute.xlu0 %1067
    %1069 = vrot.lane.b32.xlu0 %v870, 8
    %v1070 = vpop.permute.xlu0 %1069
    %1071 = vrot.lane.b32.xlu0 %v871, 8
    %v1072 = vpop.permute.xlu0 %1071
    %1073 = vrot.lane.b32.xlu0 %v872, 8
    %v1074 = vpop.permute.xlu0 %1073
    %1075 = vrot.lane.b32.xlu0 %v873, 8
    %v1076 = vpop.permute.xlu0 %1075
    %1077 = vrot.lane.b32.xlu0 %v874, 8
    %v1078 = vpop.permute.xlu0 %1077
    %1079 = vrot.lane.b32.xlu0 %v875, 8
    %v1080 = vpop.permute.xlu0 %1079
    %1081 = vrot.lane.b32.xlu0 %v876, 8
    %v1082 = vpop.permute.xlu0 %1081
    %1083 = vrot.lane.b32.xlu0 %v877, 8
    %v1084 = vpop.permute.xlu0 %1083
    %1085 = vrot.lane.b32.xlu0 %v878, 8
    %v1086 = vpop.permute.xlu0 %1085
    %1087 = vrot.lane.b32.xlu0 %v879, 8
    %v1088 = vpop.permute.xlu0 %1087
    %1089 = vrot.lane.b32.xlu0 %v880, 8
    %v1090 = vpop.permute.xlu0 %1089
    %1091 = vrot.lane.b32.xlu0 %v881, 8
    %v1092 = vpop.permute.xlu0 %1091
    %1093 = vrot.lane.b32.xlu0 %v882, 8
    %v1094 = vpop.permute.xlu0 %1093
    %1095 = vrot.lane.b32.xlu0 %v883, 8
    %v1096 = vpop.permute.xlu0 %1095
    %1097 = vrot.lane.b32.xlu0 %v884, 8
    %v1098 = vpop.permute.xlu0 %1097
    %1099 = vrot.lane.b32.xlu0 %v885, 8
    %v1100 = vpop.permute.xlu0 %1099
    %1101 = vrot.lane.b32.xlu0 %v886, 8
    %v1102 = vpop.permute.xlu0 %1101
    %1103 = vrot.lane.b32.xlu0 %v887, 8
    %v1104 = vpop.permute.xlu0 %1103
    %1105 = vrot.lane.b32.xlu0 %v888, 8
    %v1106 = vpop.permute.xlu0 %1105
    %1107 = vrot.lane.b32.xlu0 %v889, 8
    %v1108 = vpop.permute.xlu0 %1107
    %1109 = vrot.lane.b32.xlu0 %v890, 8
    %v1110 = vpop.permute.xlu0 %1109
    %1111 = vrot.lane.b32.xlu0 %v891, 8
    %v1112 = vpop.permute.xlu0 %1111
    %1113 = vrot.lane.b32.xlu0 %v892, 8
    %v1114 = vpop.permute.xlu0 %1113
    %1115 = vrot.lane.b32.xlu0 %v893, 8
    %v1116 = vpop.permute.xlu0 %1115
    %1117 = vrot.lane.b32.xlu0 %v894, 8
    %v1118 = vpop.permute.xlu0 %1117
    %vm1151 = vcmask 31744
    %v1152 = vsel %vm1151, %v702, %v928
    %v1153 = vsel %vm1151, %v703, %v930
    %v1154 = vsel %vm1151, %v704, %v932
    %v1155 = vsel %vm1151, %v705, %v934
    %v1156 = vsel %vm1151, %v706, %v936
    %v1157 = vsel %vm1151, %v707, %v938
    %v1158 = vsel %vm1151, %v708, %v940
    %v1159 = vsel %vm1151, %v709, %v942
    %v1160 = vsel %vm1151, %v710, %v944
    %v1161 = vsel %vm1151, %v711, %v946
    %v1162 = vsel %vm1151, %v712, %v948
    %v1163 = vsel %vm1151, %v713, %v950
    %v1164 = vsel %vm1151, %v714, %v952
    %v1165 = vsel %vm1151, %v715, %v954
    %v1166 = vsel %vm1151, %v716, %v956
    %v1167 = vsel %vm1151, %v717, %v958
    %v1168 = vsel %vm1151, %v718, %v960
    %v1169 = vsel %vm1151, %v719, %v962
    %v1170 = vsel %vm1151, %v720, %v964
    %v1171 = vsel %vm1151, %v721, %v966
    %v1172 = vsel %vm1151, %v722, %v968
    %v1173 = vsel %vm1151, %v723, %v970
    %v1174 = vsel %vm1151, %v724, %v972
    %v1175 = vsel %vm1151, %v725, %v974
    %v1176 = vsel %vm1151, %v726, %v976
    %v1177 = vsel %vm1151, %v727, %v978
    %v1178 = vsel %vm1151, %v728, %v980
    %v1179 = vsel %vm1151, %v729, %v982
    %v1180 = vsel %vm1151, %v730, %v984
    %v1181 = vsel %vm1151, %v731, %v986
    %v1182 = vsel %vm1151, %v732, %v988
    %v1183 = vsel %vm1151, %v733, %v990
    %vm1184 = vcmask 64512
    %v1185 = vsel %vm1184, %v1152, %v1056
    %v1186 = vsel %vm1184, %v1153, %v1058
    %v1187 = vsel %vm1184, %v1154, %v1060
    %v1188 = vsel %vm1184, %v1155, %v1062
    %v1189 = vsel %vm1184, %v1156, %v1064
    %v1190 = vsel %vm1184, %v1157, %v1066
    %v1191 = vsel %vm1184, %v1158, %v1068
    %v1192 = vsel %vm1184, %v1159, %v1070
    %v1193 = vsel %vm1184, %v1160, %v1072
    %v1194 = vsel %vm1184, %v1161, %v1074
    %v1195 = vsel %vm1184, %v1162, %v1076
    %v1196 = vsel %vm1184, %v1163, %v1078
    %v1197 = vsel %vm1184, %v1164, %v1080
    %v1198 = vsel %vm1184, %v1165, %v1082
    %v1199 = vsel %vm1184, %v1166, %v1084
    %v1200 = vsel %vm1184, %v1167, %v1086
    %v1201 = vsel %vm1184, %v1168, %v1088
    %v1202 = vsel %vm1184, %v1169, %v1090
    %v1203 = vsel %vm1184, %v1170, %v1092
    %v1204 = vsel %vm1184, %v1171, %v1094
    %v1205 = vsel %vm1184, %v1172, %v1096
    %v1206 = vsel %vm1184, %v1173, %v1098
    %v1207 = vsel %vm1184, %v1174, %v1100
    %v1208 = vsel %vm1184, %v1175, %v1102
    %v1209 = vsel %vm1184, %v1176, %v1104
    %v1210 = vsel %vm1184, %v1177, %v1106
    %v1211 = vsel %vm1184, %v1178, %v1108
    %v1212 = vsel %vm1184, %v1179, %v1110
    %v1213 = vsel %vm1184, %v1180, %v1112
    %v1214 = vsel %vm1184, %v1181, %v1114
    %v1215 = vsel %vm1184, %v1182, %v1116
    %v1216 = vsel %vm1184, %v1183, %v1118
    %v1217 = vld [vmem:[%s2] sm:$0xff]
    %v1218 = vld [vmem:[%s2 + $0x8] sm:$0xf]
    %v1219 = vld [vmem:[%s3] sm:$0x1]
    %v1221 = vlaneseq
    %v1222 = vshrl.u32 %v1221, 7
    %v1223 = vsub.s32 0, %v1222
    %v1224 = vrot.slane %v1219, %v1223
    %vm1226 = vcmask 97280
    %v1228 = vsel %vm1226, %v1185, 0
    %v1231 = vsel %vm1226, %v1186, 0
    %v1234 = vsel %vm1226, %v1187, 0
    %v1237 = vsel %vm1226, %v1188, 0
    %v1240 = vsel %vm1226, %v1189, 0
    %v1243 = vsel %vm1226, %v1190, 0
    %v1246 = vsel %vm1226, %v1191, 0
    %v1249 = vsel %vm1226, %v1192, 0
    %v1252 = vsel %vm1226, %v1193, 0
    %v1255 = vsel %vm1226, %v1194, 0
    %v1258 = vsel %vm1226, %v1195, 0
    %v1261 = vsel %vm1226, %v1196, 0
    %v1264 = vsel %vm1226, %v1197, 0
    %v1267 = vsel %vm1226, %v1198, 0
    %v1270 = vsel %vm1226, %v1199, 0
    %v1273 = vsel %vm1226, %v1200, 0
    %v1276 = vsel %vm1226, %v1201, 0
    %v1279 = vsel %vm1226, %v1202, 0
    %v1282 = vsel %vm1226, %v1203, 0
    %v1285 = vsel %vm1226, %v1204, 0
    %v1288 = vsel %vm1226, %v1205, 0
    %v1291 = vsel %vm1226, %v1206, 0
    %v1294 = vsel %vm1226, %v1207, 0
    %v1297 = vsel %vm1226, %v1208, 0
    %v1300 = vsel %vm1226, %v1209, 0
    %v1303 = vsel %vm1226, %v1210, 0
    %v1306 = vsel %vm1226, %v1211, 0
    %v1309 = vsel %vm1226, %v1212, 0
    %v1312 = vsel %vm1226, %v1213, 0
    %v1315 = vsel %vm1226, %v1214, 0
    %v1318 = vsel %vm1226, %v1215, 0
    %v1321 = vsel %vm1226, %v1216, 0
    %vm1323 = vcmask 1043456
    %v1325 = vsel %vm1323, %v1218, 0
    %1327 = vmatprep.subr.mxu0 0.0
    %1328 = vmatpush1.msra.mxu0 %v1217
    %1329 = vmatprep.subr.mxu0 0.0
    %1330 = vmatpush1.msra.mxu0 %v1325
    %1331 = vmatprep.subr.mxu0 0.0
    %1332 = vmatpush1.msra.mxu0 0.0
    %1333 = vmatprep.subr.mxu0 0.0
    %1334 = vmatpush1.msra.mxu0 0.0
    %1335 = vmatprep.subr.mxu0 0.0
    %1336 = vmatpush1.msra.mxu0 0.0
    %1337 = vmatprep.subr.mxu0 0.0
    %1338 = vmatpush1.msra.mxu0 0.0
    %1339 = vmatprep.subr.mxu0 0.0
    %1340 = vmatpush1.msra.mxu0 0.0
    %1341 = vmatprep.subr.mxu0 0.0
    %1342 = vmatpush1.msra.mxu0 0.0
    %1343 = vmatprep.subr.mxu0 0.0
    %1344 = vmatpush1.msra.mxu0 0.0
    %1345 = vmatprep.subr.mxu0 0.0
    %1346 = vmatpush1.msra.mxu0 0.0
    %1347 = vmatprep.subr.mxu0 0.0
    %1348 = vmatpush1.msra.mxu0 0.0
    %1349 = vmatprep.subr.mxu0 0.0
    %1350 = vmatpush1.msra.mxu0 0.0
    %1351 = vmatprep.subr.mxu0 0.0
    %1352 = vmatpush1.msra.mxu0 0.0
    %1353 = vmatprep.subr.mxu0 0.0
    %1354 = vmatpush1.msra.mxu0 0.0
    %1355 = vmatprep.subr.mxu0 0.0
    %1356 = vmatpush1.msra.mxu0 0.0
    %1357 = vmatprep.subr.mxu0 0.0
    %1358 = vmatpush1.msra.mxu0 0.0
    %1359 = vmatprep.subr.mxu0 0.0
    %1360 = vmatpush1.msra.mxu0 0.0
    %1361 = vmatprep.subr.mxu0 0.0
    %1362 = vmatpush1.msra.mxu0 0.0
    %1363 = vmatprep.subr.mxu0 0.0
    %1364 = vmatpush1.msra.mxu0 0.0
    %1365 = vmatprep.subr.mxu0 0.0
    %1366 = vmatpush1.msra.mxu0 0.0
    %1367 = vmatprep.subr.mxu0 0.0
    %1368 = vmatpush1.msra.mxu0 0.0
    %1369 = vmatprep.subr.mxu0 0.0
    %1370 = vmatpush1.msra.mxu0 0.0
    %1371 = vmatprep.subr.mxu0 0.0
    %1372 = vmatpush1.msra.mxu0 0.0
    %1373 = vmatprep.subr.mxu0 0.0
    %1374 = vmatpush1.msra.mxu0 0.0
    %1375 = vmatprep.subr.mxu0 0.0
    %1376 = vmatpush1.msra.mxu0 0.0
    %1377 = vmatprep.subr.mxu0 0.0
    %1378 = vmatpush1.msra.mxu0 0.0
    %1379 = vmatprep.subr.mxu0 0.0
    %1380 = vmatpush1.msra.mxu0 0.0
    %1381 = vmatprep.subr.mxu0 0.0
    %1382 = vmatpush1.msra.mxu0 0.0
    %1383 = vmatprep.subr.mxu0 0.0
    %1384 = vmatpush1.msra.mxu0 0.0
    %1385 = vmatprep.subr.mxu0 0.0
    %1386 = vmatpush1.msra.mxu0 0.0
    %1387 = vmatprep.subr.mxu0 0.0
    %1388 = vmatpush1.msra.mxu0 0.0
    %1389 = vmatprep.subr.mxu0 0.0
    %1390 = vmatpush1.msra.mxu0 0.0
    %1391 = vmatprep.mubr.f32.mxu0 0.0
    %1392 = vmatmul.mubr.f32.gmra.mrb[0].mxu0 %v1228
    %v1393 = vpop.f32.mrb[0].mxu0
    %v1394 = vadd.f32 %v1224, %v1393
    %v1395 = vpop.f32.mrb[0].mxu0
    %1396 = vmatprep.mubr.f32.mxu0 0.0
    %1397 = vmatmul.mubr.f32.gmra.mrb[0].mxu0 %v1231
    %v1398 = vpop.f32.mrb[0].mxu0
    %v1399 = vadd.f32 %v1224, %v1398
    %v1400 = vpop.f32.mrb[0].mxu0
    %1401 = vmatprep.mubr.f32.mxu0 0.0
    %1402 = vmatmul.mubr.f32.gmra.mrb[0].mxu0 %v1234
    %v1403 = vpop.f32.mrb[0].mxu0
    %v1404 = vadd.f32 %v1224, %v1403
    %v1405 = vpop.f32.mrb[0].mxu0
    %1406 = vmatprep.mubr.f32.mxu0 0.0
    %1407 = vmatmul.mubr.f32.gmra.mrb[0].mxu0 %v1237
    %v1408 = vpop.f32.mrb[0].mxu0
    %v1409 = vadd.f32 %v1224, %v1408
    %v1410 = vpop.f32.mrb[0].mxu0
    %1411 = vmatprep.mubr.f32.mxu0 0.0
    %1412 = vmatmul.mubr.f32.gmra.mrb[0].mxu0 %v1240
    %v1413 = vpop.f32.mrb[0].mxu0
    %v1414 = vadd.f32 %v1224, %v1413
    %v1415 = vpop.f32.mrb[0].mxu0
    %1416 = vmatprep.mubr.f32.mxu0 0.0
    %1417 = vmatmul.mubr.f32.gmra.mrb[0].mxu0 %v1243
    %v1418 = vpop.f32.mrb[0].mxu0
    %v1419 = vadd.f32 %v1224, %v1418
    %v1420 = vpop.f32.mrb[0].mxu0
    %1421 = vmatprep.mubr.f32.mxu0 0.0
    %1422 = vmatmul.mubr.f32.gmra.mrb[0].mxu0 %v1246
    %v1423 = vpop.f32.mrb[0].mxu0
    %v1424 = vadd.f32 %v1224, %v1423
    %v1425 = vpop.f32.mrb[0].mxu0
    %1426 = vmatprep.mubr.f32.mxu0 0.0
    %1427 = vmatmul.mubr.f32.gmra.mrb[0].mxu0 %v1249
    %v1428 = vpop.f32.mrb[0].mxu0
    %v1429 = vadd.f32 %v1224, %v1428
    %v1430 = vpop.f32.mrb[0].mxu0
    %1431 = vmatprep.mubr.f32.mxu0 0.0
    %1432 = vmatmul.mubr.f32.gmra.mrb[0].mxu0 %v1252
    %v1433 = vpop.f32.mrb[0].mxu0
    %v1434 = vadd.f32 %v1224, %v1433
    %v1435 = vpop.f32.mrb[0].mxu0
    %1436 = vmatprep.mubr.f32.mxu0 0.0
    %1437 = vmatmul.mubr.f32.gmra.mrb[0].mxu0 %v1255
    %v1438 = vpop.f32.mrb[0].mxu0
    %v1439 = vadd.f32 %v1224, %v1438
    %v1440 = vpop.f32.mrb[0].mxu0
    %1441 = vmatprep.mubr.f32.mxu0 0.0
    %1442 = vmatmul.mubr.f32.gmra.mrb[0].mxu0 %v1258
    %v1443 = vpop.f32.mrb[0].mxu0
    %v1444 = vadd.f32 %v1224, %v1443
    %v1445 = vpop.f32.mrb[0].mxu0
    %1446 = vmatprep.mubr.f32.mxu0 0.0
    %1447 = vmatmul.mubr.f32.gmra.mrb[0].mxu0 %v1261
    %v1448 = vpop.f32.mrb[0].mxu0
    %v1449 = vadd.f32 %v1224, %v1448
    %v1450 = vpop.f32.mrb[0].mxu0
    %1451 = vmatprep.mubr.f32.mxu0 0.0
    %1452 = vmatmul.mubr.f32.gmra.mrb[0].mxu0 %v1264
    %v1453 = vpop.f32.mrb[0].mxu0
    %v1454 = vadd.f32 %v1224, %v1453
    %v1455 = vpop.f32.mrb[0].mxu0
    %1456 = vmatprep.mubr.f32.mxu0 0.0
    %1457 = vmatmul.mubr.f32.gmra.mrb[0].mxu0 %v1267
    %v1458 = vpop.f32.mrb[0].mxu0
    %v1459 = vadd.f32 %v1224, %v1458
    %v1460 = vpop.f32.mrb[0].mxu0
    %1461 = vmatprep.mubr.f32.mxu0 0.0
    %1462 = vmatmul.mubr.f32.gmra.mrb[0].mxu0 %v1270
    %v1463 = vpop.f32.mrb[0].mxu0
    %v1464 = vadd.f32 %v1224, %v1463
    %v1465 = vpop.f32.mrb[0].mxu0
    %1466 = vmatprep.mubr.f32.mxu0 0.0
    %1467 = vmatmul.mubr.f32.gmra.mrb[0].mxu0 %v1273
    %v1468 = vpop.f32.mrb[0].mxu0
    %v1469 = vadd.f32 %v1224, %v1468
    %v1470 = vpop.f32.mrb[0].mxu0
    %1471 = vmatprep.mubr.f32.mxu0 0.0
    %1472 = vmatmul.mubr.f32.gmra.mrb[0].mxu0 %v1276
    %v1473 = vpop.f32.mrb[0].mxu0
    %v1474 = vadd.f32 %v1224, %v1473
    %v1475 = vpop.f32.mrb[0].mxu0
    %1476 = vmatprep.mubr.f32.mxu0 0.0
    %1477 = vmatmul.mubr.f32.gmra.mrb[0].mxu0 %v1279
    %v1478 = vpop.f32.mrb[0].mxu0
    %v1479 = vadd.f32 %v1224, %v1478
    %v1480 = vpop.f32.mrb[0].mxu0
    %1481 = vmatprep.mubr.f32.mxu0 0.0
    %1482 = vmatmul.mubr.f32.gmra.mrb[0].mxu0 %v1282
    %v1483 = vpop.f32.mrb[0].mxu0
    %v1484 = vadd.f32 %v1224, %v1483
    %v1485 = vpop.f32.mrb[0].mxu0
    %1486 = vmatprep.mubr.f32.mxu0 0.0
    %1487 = vmatmul.mubr.f32.gmra.mrb[0].mxu0 %v1285
    %v1488 = vpop.f32.mrb[0].mxu0
    %v1489 = vadd.f32 %v1224, %v1488
    %v1490 = vpop.f32.mrb[0].mxu0
    %1491 = vmatprep.mubr.f32.mxu0 0.0
    %1492 = vmatmul.mubr.f32.gmra.mrb[0].mxu0 %v1288
    %v1493 = vpop.f32.mrb[0].mxu0
    %v1494 = vadd.f32 %v1224, %v1493
    %v1495 = vpop.f32.mrb[0].mxu0
    %1496 = vmatprep.mubr.f32.mxu0 0.0
    %1497 = vmatmul.mubr.f32.gmra.mrb[0].mxu0 %v1291
    %v1498 = vpop.f32.mrb[0].mxu0
    %v1499 = vadd.f32 %v1224, %v1498
    %v1500 = vpop.f32.mrb[0].mxu0
    %1501 = vmatprep.mubr.f32.mxu0 0.0
    %1502 = vmatmul.mubr.f32.gmra.mrb[0].mxu0 %v1294
    %v1503 = vpop.f32.mrb[0].mxu0
    %v1504 = vadd.f32 %v1224, %v1503
    %v1505 = vpop.f32.mrb[0].mxu0
    %1506 = vmatprep.mubr.f32.mxu0 0.0
    %1507 = vmatmul.mubr.f32.gmra.mrb[0].mxu0 %v1297
    %v1508 = vpop.f32.mrb[0].mxu0
    %v1509 = vadd.f32 %v1224, %v1508
    %v1510 = vpop.f32.mrb[0].mxu0
    %1511 = vmatprep.mubr.f32.mxu0 0.0
    %1512 = vmatmul.mubr.f32.gmra.mrb[0].mxu0 %v1300
    %v1513 = vpop.f32.mrb[0].mxu0
    %v1514 = vadd.f32 %v1224, %v1513
    %v1515 = vpop.f32.mrb[0].mxu0
    %1516 = vmatprep.mubr.f32.mxu0 0.0
    %1517 = vmatmul.mubr.f32.gmra.mrb[0].mxu0 %v1303
    %v1518 = vpop.f32.mrb[0].mxu0
    %v1519 = vadd.f32 %v1224, %v1518
    %v1520 = vpop.f32.mrb[0].mxu0
    %1521 = vmatprep.mubr.f32.mxu0 0.0
    %1522 = vmatmul.mubr.f32.gmra.mrb[0].mxu0 %v1306
    %v1523 = vpop.f32.mrb[0].mxu0
    %v1524 = vadd.f32 %v1224, %v1523
    %v1525 = vpop.f32.mrb[0].mxu0
    %1526 = vmatprep.mubr.f32.mxu0 0.0
    %1527 = vmatmul.mubr.f32.gmra.mrb[0].mxu0 %v1309
    %v1528 = vpop.f32.mrb[0].mxu0
    %v1529 = vadd.f32 %v1224, %v1528
    %v1530 = vpop.f32.mrb[0].mxu0
    %1531 = vmatprep.mubr.f32.mxu0 0.0
    %1532 = vmatmul.mubr.f32.gmra.mrb[0].mxu0 %v1312
    %v1533 = vpop.f32.mrb[0].mxu0
    %v1534 = vadd.f32 %v1224, %v1533
    %v1535 = vpop.f32.mrb[0].mxu0
    %1536 = vmatprep.mubr.f32.mxu0 0.0
    %1537 = vmatmul.mubr.f32.gmra.mrb[0].mxu0 %v1315
    %v1538 = vpop.f32.mrb[0].mxu0
    %v1539 = vadd.f32 %v1224, %v1538
    %v1540 = vpop.f32.mrb[0].mxu0
    %1541 = vmatprep.mubr.f32.mxu0 0.0
    %1542 = vmatmul.mubr.f32.gmra.mrb[0].mxu0 %v1318
    %v1543 = vpop.f32.mrb[0].mxu0
    %v1544 = vadd.f32 %v1224, %v1543
    %v1545 = vpop.f32.mrb[0].mxu0
    %1546 = vmatprep.mubr.f32.mxu0 0.0
    %1547 = vmatmul.mubr.f32.gmra.mrb[0].mxu0 %v1321
    %v1548 = vpop.f32.mrb[0].mxu0
    %v1549 = vadd.f32 %v1224, %v1548
    %v1550 = vpop.f32.mrb[0].mxu0
    %1551 = vdwg.mxu0
    %v1552 = vmax.f32 %v1394, 0.0
    %v1553 = vmax.f32 %v1399, 0.0
    %v1554 = vmax.f32 %v1404, 0.0
    %v1555 = vmax.f32 %v1409, 0.0
    %v1556 = vmax.f32 %v1414, 0.0
    %v1557 = vmax.f32 %v1419, 0.0
    %v1558 = vmax.f32 %v1424, 0.0
    %v1559 = vmax.f32 %v1429, 0.0
    %v1560 = vmax.f32 %v1434, 0.0
    %v1561 = vmax.f32 %v1439, 0.0
    %v1562 = vmax.f32 %v1444, 0.0
    %v1563 = vmax.f32 %v1449, 0.0
    %v1564 = vmax.f32 %v1454, 0.0
    %v1565 = vmax.f32 %v1459, 0.0
    %v1566 = vmax.f32 %v1464, 0.0
    %v1567 = vmax.f32 %v1469, 0.0
    %v1568 = vmax.f32 %v1474, 0.0
    %v1569 = vmax.f32 %v1479, 0.0
    %v1570 = vmax.f32 %v1484, 0.0
    %v1571 = vmax.f32 %v1489, 0.0
    %v1572 = vmax.f32 %v1494, 0.0
    %v1573 = vmax.f32 %v1499, 0.0
    %v1574 = vmax.f32 %v1504, 0.0
    %v1575 = vmax.f32 %v1509, 0.0
    %v1576 = vmax.f32 %v1514, 0.0
    %v1577 = vmax.f32 %v1519, 0.0
    %v1578 = vmax.f32 %v1524, 0.0
    %v1579 = vmax.f32 %v1529, 0.0
    %v1580 = vmax.f32 %v1534, 0.0
    %v1581 = vmax.f32 %v1539, 0.0
    %v1582 = vmax.f32 %v1544, 0.0
    %v1583 = vmax.f32 %v1549, 0.0
    %v1584 = vrot.slane %v1552, 7
    %v1585 = vrot.slane %v1553, 7
    %v1586 = vrot.slane %v1554, 7
    %v1587 = vrot.slane %v1555, 7
    %v1588 = vrot.slane %v1556, 7
    %v1589 = vrot.slane %v1557, 7
    %v1590 = vrot.slane %v1558, 7
    %v1591 = vrot.slane %v1559, 7
    %v1592 = vrot.slane %v1560, 7
    %v1593 = vrot.slane %v1561, 7
    %v1594 = vrot.slane %v1562, 7
    %v1595 = vrot.slane %v1563, 7
    %v1596 = vrot.slane %v1564, 7
    %v1597 = vrot.slane %v1565, 7
    %v1598 = vrot.slane %v1566, 7
    %v1599 = vrot.slane %v1567, 7
    %v1600 = vrot.slane %v1568, 7
    %v1601 = vrot.slane %v1569, 7
    %v1602 = vrot.slane %v1570, 7
    %v1603 = vrot.slane %v1571, 7
    %v1604 = vrot.slane %v1572, 7
    %v1605 = vrot.slane %v1573, 7
    %v1606 = vrot.slane %v1574, 7
    %v1607 = vrot.slane %v1575, 7
    %v1608 = vrot.slane %v1576, 7
    %v1609 = vrot.slane %v1577, 7
    %v1610 = vrot.slane %v1578, 7
    %v1611 = vrot.slane %v1579, 7
    %v1612 = vrot.slane %v1580, 7
    %v1613 = vrot.slane %v1581, 7
    %v1614 = vrot.slane %v1582, 7
    %v1615 = vrot.slane %v1583, 7
    %v1616 = vsel %vm605, %v1614, %v1615
    %v1617 = vsel %vm605, %v1613, %v1614
    %v1618 = vsel %vm605, %v1612, %v1613
    %v1619 = vsel %vm605, %v1611, %v1612
    %v1620 = vsel %vm605, %v1610, %v1611
    %v1621 = vsel %vm605, %v1609, %v1610
    %v1622 = vsel %vm605, %v1608, %v1609
    %v1623 = vsel %vm605, %v1607, %v1608
    %v1624 = vsel %vm605, %v1606, %v1607
    %v1625 = vsel %vm605, %v1605, %v1606
    %v1626 = vsel %vm605, %v1604, %v1605
    %v1627 = vsel %vm605, %v1603, %v1604
    %v1628 = vsel %vm605, %v1602, %v1603
    %v1629 = vsel %vm605, %v1601, %v1602
    %v1630 = vsel %vm605, %v1600, %v1601
    %v1631 = vsel %vm605, %v1599, %v1600
    %v1632 = vsel %vm605, %v1598, %v1599
    %v1633 = vsel %vm605, %v1597, %v1598
    %v1634 = vsel %vm605, %v1596, %v1597
    %v1635 = vsel %vm605, %v1595, %v1596
    %v1636 = vsel %vm605, %v1594, %v1595
    %v1637 = vsel %vm605, %v1593, %v1594
    %v1638 = vsel %vm605, %v1592, %v1593
    %v1639 = vsel %vm605, %v1591, %v1592
    %v1640 = vsel %vm605, %v1590, %v1591
    %v1641 = vsel %vm605, %v1589, %v1590
    %v1642 = vsel %vm605, %v1588, %v1589
    %v1643 = vsel %vm605, %v1587, %v1588
    %v1644 = vsel %vm605, %v1586, %v1587
    %v1645 = vsel %vm605, %v1585, %v1586
    %v1646 = vsel %vm605, %v1584, %v1585
    %v1647 = vsel %vm605, %v1615, %v1584
    %v1648 = vsel %vm670, 0.0, %v1647
    %v1649 = vsel %vm671, 0.0, %v1646
    %v1650 = vsel %vm672, 0.0, %v1645
    %v1651 = vsel %vm673, 0.0, %v1644
    %v1652 = vsel %vm674, 0.0, %v1643
    %v1653 = vsel %vm675, 0.0, %v1642
    %v1654 = vsel %vm676, 0.0, %v1641
    %v1655 = vsel %vm677, 0.0, %v1640
    %v1656 = vsel %vm678, 0.0, %v1639
    %v1657 = vsel %vm679, 0.0, %v1638
    %v1658 = vsel %vm680, 0.0, %v1637
    %v1659 = vsel %vm681, 0.0, %v1636
    %v1660 = vsel %vm682, 0.0, %v1635
    %v1661 = vsel %vm683, 0.0, %v1634
    %v1662 = vsel %vm684, 0.0, %v1633
    %v1663 = vsel %vm685, 0.0, %v1632
    %v1664 = vsel %vm686, 0.0, %v1631
    %v1665 = vsel %vm687, 0.0, %v1630
    %v1666 = vsel %vm688, 0.0, %v1629
    %v1667 = vsel %vm689, 0.0, %v1628
    %v1668 = vsel %vm690, 0.0, %v1627
    %v1669 = vsel %vm691, 0.0, %v1626
    %v1670 = vsel %vm692, 0.0, %v1625
    %v1671 = vsel %vm693, 0.0, %v1624
    %v1672 = vsel %vm694, 0.0, %v1623
    %v1673 = vsel %vm695, 0.0, %v1622
    %v1674 = vsel %vm696, 0.0, %v1621
    %v1675 = vsel %vm697, 0.0, %v1620
    %v1676 = vsel %vm698, 0.0, %v1619
    %v1677 = vsel %vm699, 0.0, %v1618
    %v1678 = vsel %vm700, 0.0, %v1617
    %v1679 = vsel %vm701, 0.0, %v1616
    %v1680 = vrot.slane %v1552, 1
    %v1681 = vrot.slane %v1553, 1
    %v1682 = vrot.slane %v1554, 1
    %v1683 = vrot.slane %v1555, 1
    %v1684 = vrot.slane %v1556, 1
    %v1685 = vrot.slane %v1557, 1
    %v1686 = vrot.slane %v1558, 1
    %v1687 = vrot.slane %v1559, 1
    %v1688 = vrot.slane %v1560, 1
    %v1689 = vrot.slane %v1561, 1
    %v1690 = vrot.slane %v1562, 1
    %v1691 = vrot.slane %v1563, 1
    %v1692 = vrot.slane %v1564, 1
    %v1693 = vrot.slane %v1565, 1
    %v1694 = vrot.slane %v1566, 1
    %v1695 = vrot.slane %v1567, 1
    %v1696 = vrot.slane %v1568, 1
    %v1697 = vrot.slane %v1569, 1
    %v1698 = vrot.slane %v1570, 1
    %v1699 = vrot.slane %v1571, 1
    %v1700 = vrot.slane %v1572, 1
    %v1701 = vrot.slane %v1573, 1
    %v1702 = vrot.slane %v1574, 1
    %v1703 = vrot.slane %v1575, 1
    %v1704 = vrot.slane %v1576, 1
    %v1705 = vrot.slane %v1577, 1
    %v1706 = vrot.slane %v1578, 1
    %v1707 = vrot.slane %v1579, 1
    %v1708 = vrot.slane %v1580, 1
    %v1709 = vrot.slane %v1581, 1
    %v1710 = vrot.slane %v1582, 1
    %v1711 = vrot.slane %v1583, 1
    %v1712 = vsel %vm766, %v1710, %v1711
    %v1713 = vsel %vm766, %v1709, %v1710
    %v1714 = vsel %vm766, %v1708, %v1709
    %v1715 = vsel %vm766, %v1707, %v1708
    %v1716 = vsel %vm766, %v1706, %v1707
    %v1717 = vsel %vm766, %v1705, %v1706
    %v1718 = vsel %vm766, %v1704, %v1705
    %v1719 = vsel %vm766, %v1703, %v1704
    %v1720 = vsel %vm766, %v1702, %v1703
    %v1721 = vsel %vm766, %v1701, %v1702
    %v1722 = vsel %vm766, %v1700, %v1701
    %v1723 = vsel %vm766, %v1699, %v1700
    %v1724 = vsel %vm766, %v1698, %v1699
    %v1725 = vsel %vm766, %v1697, %v1698
    %v1726 = vsel %vm766, %v1696, %v1697
    %v1727 = vsel %vm766, %v1695, %v1696
    %v1728 = vsel %vm766, %v1694, %v1695
    %v1729 = vsel %vm766, %v1693, %v1694
    %v1730 = vsel %vm766, %v1692, %v1693
    %v1731 = vsel %vm766, %v1691, %v1692
    %v1732 = vsel %vm766, %v1690, %v1691
    %v1733 = vsel %vm766, %v1689, %v1690
    %v1734 = vsel %vm766, %v1688, %v1689
    %v1735 = vsel %vm766, %v1687, %v1688
    %v1736 = vsel %vm766, %v1686, %v1687
    %v1737 = vsel %vm766, %v1685, %v1686
    %v1738 = vsel %vm766, %v1684, %v1685
    %v1739 = vsel %vm766, %v1683, %v1684
    %v1740 = vsel %vm766, %v1682, %v1683
    %v1741 = vsel %vm766, %v1681, %v1682
    %v1742 = vsel %vm766, %v1680, %v1681
    %v1743 = vsel %vm766, %v1711, %v1680
    %v1744 = vsel %vm831, 0.0, %v1742
    %v1745 = vsel %vm832, 0.0, %v1741
    %v1746 = vsel %vm833, 0.0, %v1740
    %v1747 = vsel %vm834, 0.0, %v1739
    %v1748 = vsel %vm835, 0.0, %v1738
    %v1749 = vsel %vm836, 0.0, %v1737
    %v1750 = vsel %vm837, 0.0, %v1736
    %v1751 = vsel %vm838, 0.0, %v1735
    %v1752 = vsel %vm839, 0.0, %v1734
    %v1753 = vsel %vm840, 0.0, %v1733
    %v1754 = vsel %vm841, 0.0, %v1732
    %v1755 = vsel %vm842, 0.0, %v1731
    %v1756 = vsel %vm843, 0.0, %v1730
    %v1757 = vsel %vm844, 0.0, %v1729
    %v1758 = vsel %vm845, 0.0, %v1728
    %v1759 = vsel %vm846, 0.0, %v1727
    %v1760 = vsel %vm847, 0.0, %v1726
    %v1761 = vsel %vm848, 0.0, %v1725
    %v1762 = vsel %vm849, 0.0, %v1724
    %v1763 = vsel %vm850, 0.0, %v1723
    %v1764 = vsel %vm851, 0.0, %v1722
    %v1765 = vsel %vm852, 0.0, %v1721
    %v1766 = vsel %vm853, 0.0, %v1720
    %v1767 = vsel %vm854, 0.0, %v1719
    %v1768 = vsel %vm855, 0.0, %v1718
    %v1769 = vsel %vm856, 0.0, %v1717
    %v1770 = vsel %vm857, 0.0, %v1716
    %v1771 = vsel %vm858, 0.0, %v1715
    %v1772 = vsel %vm859, 0.0, %v1714
    %v1773 = vsel %vm860, 0.0, %v1713
    %v1774 = vsel %vm861, 0.0, %v1712
    %v1775 = vsel %vm862, 0.0, %v1743
    %1808 = vrot.lane.b32.xlu0 %v1552, 32
    %v1809 = vpop.permute.xlu0 %1808
    %1810 = vrot.lane.b32.xlu0 %v1553, 32
    %v1811 = vpop.permute.xlu0 %1810
    %1812 = vrot.lane.b32.xlu0 %v1554, 32
    %v1813 = vpop.permute.xlu0 %1812
    %1814 = vrot.lane.b32.xlu0 %v1555, 32
    %v1815 = vpop.permute.xlu0 %1814
    %1816 = vrot.lane.b32.xlu0 %v1556, 32
    %v1817 = vpop.permute.xlu0 %1816
    %1818 = vrot.lane.b32.xlu0 %v1557, 32
    %v1819 = vpop.permute.xlu0 %1818
    %1820 = vrot.lane.b32.xlu0 %v1558, 32
    %v1821 = vpop.permute.xlu0 %1820
    %1822 = vrot.lane.b32.xlu0 %v1559, 32
    %v1823 = vpop.permute.xlu0 %1822
    %1824 = vrot.lane.b32.xlu0 %v1560, 32
    %v1825 = vpop.permute.xlu0 %1824
    %1826 = vrot.lane.b32.xlu0 %v1561, 32
    %v1827 = vpop.permute.xlu0 %1826
    %1828 = vrot.lane.b32.xlu0 %v1562, 32
    %v1829 = vpop.permute.xlu0 %1828
    %1830 = vrot.lane.b32.xlu0 %v1563, 32
    %v1831 = vpop.permute.xlu0 %1830
    %1832 = vrot.lane.b32.xlu0 %v1564, 32
    %v1833 = vpop.permute.xlu0 %1832
    %1834 = vrot.lane.b32.xlu0 %v1565, 32
    %v1835 = vpop.permute.xlu0 %1834
    %1836 = vrot.lane.b32.xlu0 %v1566, 32
    %v1837 = vpop.permute.xlu0 %1836
    %1838 = vrot.lane.b32.xlu0 %v1567, 32
    %v1839 = vpop.permute.xlu0 %1838
    %1840 = vrot.lane.b32.xlu0 %v1568, 32
    %v1841 = vpop.permute.xlu0 %1840
    %1842 = vrot.lane.b32.xlu0 %v1569, 32
    %v1843 = vpop.permute.xlu0 %1842
    %1844 = vrot.lane.b32.xlu0 %v1570, 32
    %v1845 = vpop.permute.xlu0 %1844
    %1846 = vrot.lane.b32.xlu0 %v1571, 32
    %v1847 = vpop.permute.xlu0 %1846
    %1848 = vrot.lane.b32.xlu0 %v1572, 32
    %v1849 = vpop.permute.xlu0 %1848
    %1850 = vrot.lane.b32.xlu0 %v1573, 32
    %v1851 = vpop.permute.xlu0 %1850
    %1852 = vrot.lane.b32.xlu0 %v1574, 32
    %v1853 = vpop.permute.xlu0 %1852
    %1854 = vrot.lane.b32.xlu0 %v1575, 32
    %v1855 = vpop.permute.xlu0 %1854
    %1856 = vrot.lane.b32.xlu0 %v1576, 32
    %v1857 = vpop.permute.xlu0 %1856
    %1858 = vrot.lane.b32.xlu0 %v1577, 32
    %v1859 = vpop.permute.xlu0 %1858
    %1860 = vrot.lane.b32.xlu0 %v1578, 32
    %v1861 = vpop.permute.xlu0 %1860
    %1862 = vrot.lane.b32.xlu0 %v1579, 32
    %v1863 = vpop.permute.xlu0 %1862
    %1864 = vrot.lane.b32.xlu0 %v1580, 32
    %v1865 = vpop.permute.xlu0 %1864
    %1866 = vrot.lane.b32.xlu0 %v1581, 32
    %v1867 = vpop.permute.xlu0 %1866
    %1868 = vrot.lane.b32.xlu0 %v1582, 32
    %v1869 = vpop.permute.xlu0 %1868
    %1870 = vrot.lane.b32.xlu0 %v1583, 32
    %v1871 = vpop.permute.xlu0 %1870
    %1936 = vrot.lane.b32.xlu0 %v1744, 64
    %v1937 = vpop.permute.xlu0 %1936
    %1938 = vrot.lane.b32.xlu0 %v1745, 64
    %v1939 = vpop.permute.xlu0 %1938
    %1940 = vrot.lane.b32.xlu0 %v1746, 64
    %v1941 = vpop.permute.xlu0 %1940
    %1942 = vrot.lane.b32.xlu0 %v1747, 64
    %v1943 = vpop.permute.xlu0 %1942
    %1944 = vrot.lane.b32.xlu0 %v1748, 64
    %v1945 = vpop.permute.xlu0 %1944
    %1946 = vrot.lane.b32.xlu0 %v1749, 64
    %v1947 = vpop.permute.xlu0 %1946
    %1948 = vrot.lane.b32.xlu0 %v1750, 64
    %v1949 = vpop.permute.xlu0 %1948
    %1950 = vrot.lane.b32.xlu0 %v1751, 64
    %v1951 = vpop.permute.xlu0 %1950
    %1952 = vrot.lane.b32.xlu0 %v1752, 64
    %v1953 = vpop.permute.xlu0 %1952
    %1954 = vrot.lane.b32.xlu0 %v1753, 64
    %v1955 = vpop.permute.xlu0 %1954
    %1956 = vrot.lane.b32.xlu0 %v1754, 64
    %v1957 = vpop.permute.xlu0 %1956
    %1958 = vrot.lane.b32.xlu0 %v1755, 64
    %v1959 = vpop.permute.xlu0 %1958
    %1960 = vrot.lane.b32.xlu0 %v1756, 64
    %v1961 = vpop.permute.xlu0 %1960
    %1962 = vrot.lane.b32.xlu0 %v1757, 64
    %v1963 = vpop.permute.xlu0 %1962
    %1964 = vrot.lane.b32.xlu0 %v1758, 64
    %v1965 = vpop.permute.xlu0 %1964
    %1966 = vrot.lane.b32.xlu0 %v1759, 64
    %v1967 = vpop.permute.xlu0 %1966
    %1968 = vrot.lane.b32.xlu0 %v1760, 64
    %v1969 = vpop.permute.xlu0 %1968
    %1970 = vrot.lane.b32.xlu0 %v1761, 64
    %v1971 = vpop.permute.xlu0 %1970
    %1972 = vrot.lane.b32.xlu0 %v1762, 64
    %v1973 = vpop.permute.xlu0 %1972
    %1974 = vrot.lane.b32.xlu0 %v1763, 64
    %v1975 = vpop.permute.xlu0 %1974
    %1976 = vrot.lane.b32.xlu0 %v1764, 64
    %v1977 = vpop.permute.xlu0 %1976
    %1978 = vrot.lane.b32.xlu0 %v1765, 64
    %v1979 = vpop.permute.xlu0 %1978
    %1980 = vrot.lane.b32.xlu0 %v1766, 64
    %v1981 = vpop.permute.xlu0 %1980
    %1982 = vrot.lane.b32.xlu0 %v1767, 64
    %v1983 = vpop.permute.xlu0 %1982
    %1984 = vrot.lane.b32.xlu0 %v1768, 64
    %v1985 = vpop.permute.xlu0 %1984
    %1986 = vrot.lane.b32.xlu0 %v1769, 64
    %v1987 = vpop.permute.xlu0 %1986
    %1988 = vrot.lane.b32.xlu0 %v1770, 64
    %v1989 = vpop.permute.xlu0 %1988
    %1990 = vrot.lane.b32.xlu0 %v1771, 64
    %v1991 = vpop.permute.xlu0 %1990
    %1992 = vrot.lane.b32.xlu0 %v1772, 64
    %v1993 = vpop.permute.xlu0 %1992
    %1994 = vrot.lane.b32.xlu0 %v1773, 64
    %v1995 = vpop.permute.xlu0 %1994
    %1996 = vrot.lane.b32.xlu0 %v1774, 64
    %v1997 = vpop.permute.xlu0 %1996
    %1998 = vrot.lane.b32.xlu0 %v1775, 64
    %v1999 = vpop.permute.xlu0 %1998
    %vm2032 = vcmask 261120
    %v2033 = vsel %vm2032, %v1648, %v1809
    %v2034 = vsel %vm2032, %v1649, %v1811
    %v2035 = vsel %vm2032, %v1650, %v1813
    %v2036 = vsel %vm2032, %v1651, %v1815
    %v2037 = vsel %vm2032, %v1652, %v1817
    %v2038 = vsel %vm2032, %v1653, %v1819
    %v2039 = vsel %vm2032, %v1654, %v1821
    %v2040 = vsel %vm2032, %v1655, %v1823
    %v2041 = vsel %vm2032, %v1656, %v1825
    %v2042 = vsel %vm2032, %v1657, %v1827
    %v2043 = vsel %vm2032, %v1658, %v1829
    %v2044 = vsel %vm2032, %v1659, %v1831
    %v2045 = vsel %vm2032, %v1660, %v1833
    %v2046 = vsel %vm2032, %v1661, %v1835
    %v2047 = vsel %vm2032, %v1662, %v1837
    %v2048 = vsel %vm2032, %v1663, %v1839
    %v2049 = vsel %vm2032, %v1664, %v1841
    %v2050 = vsel %vm2032, %v1665, %v1843
    %v2051 = vsel %vm2032, %v1666, %v1845
    %v2052 = vsel %vm2032, %v1667, %v1847
    %v2053 = vsel %vm2032, %v1668, %v1849
    %v2054 = vsel %vm2032, %v1669, %v1851
    %v2055 = vsel %vm2032, %v1670, %v1853
    %v2056 = vsel %vm2032, %v1671, %v1855
    %v2057 = vsel %vm2032, %v1672, %v1857
    %v2058 = vsel %vm2032, %v1673, %v1859
    %v2059 = vsel %vm2032, %v1674, %v1861
    %v2060 = vsel %vm2032, %v1675, %v1863
    %v2061 = vsel %vm2032, %v1676, %v1865
    %v2062 = vsel %vm2032, %v1677, %v1867
    %v2063 = vsel %vm2032, %v1678, %v1869
    %v2064 = vsel %vm2032, %v1679, %v1871
    %vm2065 = vcmask 523264
    %v2066 = vsel %vm2065, %v2033, %v1937
    %v2067 = vsel %vm2065, %v2034, %v1939
    %v2068 = vsel %vm2065, %v2035, %v1941
    %v2069 = vsel %vm2065, %v2036, %v1943
    %v2070 = vsel %vm2065, %v2037, %v1945
    %v2071 = vsel %vm2065, %v2038, %v1947
    %v2072 = vsel %vm2065, %v2039, %v1949
    %v2073 = vsel %vm2065, %v2040, %v1951
    %v2074 = vsel %vm2065, %v2041, %v1953
    %v2075 = vsel %vm2065, %v2042, %v1955
    %v2076 = vsel %vm2065, %v2043, %v1957
    %v2077 = vsel %vm2065, %v2044, %v1959
    %v2078 = vsel %vm2065, %v2045, %v1961
    %v2079 = vsel %vm2065, %v2046, %v1963
    %v2080 = vsel %vm2065, %v2047, %v1965
    %v2081 = vsel %vm2065, %v2048, %v1967
    %v2082 = vsel %vm2065, %v2049, %v1969
    %v2083 = vsel %vm2065, %v2050, %v1971
    %v2084 = vsel %vm2065, %v2051, %v1973
    %v2085 = vsel %vm2065, %v2052, %v1975
    %v2086 = vsel %vm2065, %v2053, %v1977
    %v2087 = vsel %vm2065, %v2054, %v1979
    %v2088 = vsel %vm2065, %v2055, %v1981
    %v2089 = vsel %vm2065, %v2056, %v1983
    %v2090 = vsel %vm2065, %v2057, %v1985
    %v2091 = vsel %vm2065, %v2058, %v1987
    %v2092 = vsel %vm2065, %v2059, %v1989
    %v2093 = vsel %vm2065, %v2060, %v1991
    %v2094 = vsel %vm2065, %v2061, %v1993
    %v2095 = vsel %vm2065, %v2062, %v1995
    %v2096 = vsel %vm2065, %v2063, %v1997
    %v2097 = vsel %vm2065, %v2064, %v1999
    %v2098 = vld [vmem:[%s4] sm:$0xff]
    %v2099 = vld [vmem:[%s4 + $0x8] sm:$0xff]
    %v2100 = vld [vmem:[%s4 + $0x10] sm:$0xff]
    %v2101 = vld [vmem:[%s4 + $0x18] sm:$0xff]
    %v2102 = vld [vmem:[%s4 + $0x20] sm:$0xff]
    %v2103 = vld [vmem:[%s4 + $0x28] sm:$0xff]
    %v2104 = vld [vmem:[%s4 + $0x30] sm:$0xff]
    %v2105 = vld [vmem:[%s4 + $0x38] sm:$0xff]
    %v2106 = vld [vmem:[%s4 + $0x40] sm:$0xff]
    %v2107 = vld [vmem:[%s4 + $0x48] sm:$0xff]
    %v2108 = vld [vmem:[%s4 + $0x50] sm:$0xff]
    %v2109 = vld [vmem:[%s4 + $0x58] sm:$0xff]
    %v2110 = vld [vmem:[%s5] sm:$0x1]
    %v2112 = vlaneseq
    %v2113 = vshrl.u32 %v2112, 7
    %v2114 = vsub.s32 0, %v2113
    %v2115 = vrot.slane %v2110, %v2114
    %vm2117 = vcmask 785408
    %v2119 = vsel %vm2117, %v2066, 0
    %v2122 = vsel %vm2117, %v2067, 0
    %v2125 = vsel %vm2117, %v2068, 0
    %v2128 = vsel %vm2117, %v2069, 0
    %v2131 = vsel %vm2117, %v2070, 0
    %v2134 = vsel %vm2117, %v2071, 0
    %v2137 = vsel %vm2117, %v2072, 0
    %v2140 = vsel %vm2117, %v2073, 0
    %v2143 = vsel %vm2117, %v2074, 0
    %v2146 = vsel %vm2117, %v2075, 0
    %v2149 = vsel %vm2117, %v2076, 0
    %v2152 = vsel %vm2117, %v2077, 0
    %v2155 = vsel %vm2117, %v2078, 0
    %v2158 = vsel %vm2117, %v2079, 0
    %v2161 = vsel %vm2117, %v2080, 0
    %v2164 = vsel %vm2117, %v2081, 0
    %v2167 = vsel %vm2117, %v2082, 0
    %v2170 = vsel %vm2117, %v2083, 0
    %v2173 = vsel %vm2117, %v2084, 0
    %v2176 = vsel %vm2117, %v2085, 0
    %v2179 = vsel %vm2117, %v2086, 0
    %v2182 = vsel %vm2117, %v2087, 0
    %v2185 = vsel %vm2117, %v2088, 0
    %v2188 = vsel %vm2117, %v2089, 0
    %v2191 = vsel %vm2117, %v2090, 0
    %v2194 = vsel %vm2117, %v2091, 0
    %v2197 = vsel %vm2117, %v2092, 0
    %v2200 = vsel %vm2117, %v2093, 0
    %v2203 = vsel %vm2117, %v2094, 0
    %v2206 = vsel %vm2117, %v2095, 0
    %v2209 = vsel %vm2117, %v2096, 0
    %v2212 = vsel %vm2117, %v2097, 0
    %2214 = vmatprep.subr.mxu0 0.0
    %2215 = vmatpush1.msra.mxu0 %v2098
    %2216 = vmatprep.subr.mxu0 0.0
    %2217 = vmatpush1.msra.mxu0 %v2099
    %2218 = vmatprep.subr.mxu0 0.0
    %2219 = vmatpush1.msra.mxu0 %v2100
    %2220 = vmatprep.subr.mxu0 0.0
    %2221 = vmatpush1.msra.mxu0 %v2101
    %2222 = vmatprep.subr.mxu0 0.0
    %2223 = vmatpush1.msra.mxu0 %v2102
    %2224 = vmatprep.subr.mxu0 0.0
    %2225 = vmatpush1.msra.mxu0 %v2103
    %2226 = vmatprep.subr.mxu0 0.0
    %2227 = vmatpush1.msra.mxu0 %v2104
    %2228 = vmatprep.subr.mxu0 0.0
    %2229 = vmatpush1.msra.mxu0 %v2105
    %2230 = vmatprep.subr.mxu0 0.0
    %2231 = vmatpush1.msra.mxu0 %v2106
    %2232 = vmatprep.subr.mxu0 0.0
    %2233 = vmatpush1.msra.mxu0 %v2107
    %2234 = vmatprep.subr.mxu0 0.0
    %2235 = vmatpush1.msra.mxu0 %v2108
    %2236 = vmatprep.subr.mxu0 0.0
    %2237 = vmatpush1.msra.mxu0 %v2109
    %2238 = vmatprep.subr.mxu0 0.0
    %2239 = vmatpush1.msra.mxu0 0.0
    %2240 = vmatprep.subr.mxu0 0.0
    %2241 = vmatpush1.msra.mxu0 0.0
    %2242 = vmatprep.subr.mxu0 0.0
    %2243 = vmatpush1.msra.mxu0 0.0
    %2244 = vmatprep.subr.mxu0 0.0
    %2245 = vmatpush1.msra.mxu0 0.0
    %2246 = vmatprep.subr.mxu0 0.0
    %2247 = vmatpush1.msra.mxu0 0.0
    %2248 = vmatprep.subr.mxu0 0.0
    %2249 = vmatpush1.msra.mxu0 0.0
    %2250 = vmatprep.subr.mxu0 0.0
    %2251 = vmatpush1.msra.mxu0 0.0
    %2252 = vmatprep.subr.mxu0 0.0
    %2253 = vmatpush1.msra.mxu0 0.0
    %2254 = vmatprep.subr.mxu0 0.0
    %2255 = vmatpush1.msra.mxu0 0.0
    %2256 = vmatprep.subr.mxu0 0.0
    %2257 = vmatpush1.msra.mxu0 0.0
    %2258 = vmatprep.subr.mxu0 0.0
    %2259 = vmatpush1.msra.mxu0 0.0
    %2260 = vmatprep.subr.mxu0 0.0
    %2261 = vmatpush1.msra.mxu0 0.0
    %2262 = vmatprep.subr.mxu0 0.0
    %2263 = vmatpush1.msra.mxu0 0.0
    %2264 = vmatprep.subr.mxu0 0.0
    %2265 = vmatpush1.msra.mxu0 0.0
    %2266 = vmatprep.subr.mxu0 0.0
    %2267 = vmatpush1.msra.mxu0 0.0
    %2268 = vmatprep.subr.mxu0 0.0
    %2269 = vmatpush1.msra.mxu0 0.0
    %2270 = vmatprep.subr.mxu0 0.0
    %2271 = vmatpush1.msra.mxu0 0.0
    %2272 = vmatprep.subr.mxu0 0.0
    %2273 = vmatpush1.msra.mxu0 0.0
    %2274 = vmatprep.subr.mxu0 0.0
    %2275 = vmatpush1.msra.mxu0 0.0
    %2276 = vmatprep.subr.mxu0 0.0
    %2277 = vmatpush1.msra.mxu0 0.0
    %2278 = vmatprep.mubr.f32.mxu0 0.0
    %2279 = vmatmul.mubr.f32.gmra.mrb[0].mxu0 %v2119
    %v2280 = vpop.f32.mrb[0].mxu0
    %v2281 = vadd.f32 %v2115, %v2280
    %v2282 = vpop.f32.mrb[0].mxu0
    %2283 = vmatprep.mubr.f32.mxu0 0.0
    %2284 = vmatmul.mubr.f32.gmra.mrb[0].mxu0 %v2122
    %v2285 = vpop.f32.mrb[0].mxu0
    %v2286 = vadd.f32 %v2115, %v2285
    %v2287 = vpop.f32.mrb[0].mxu0
    %2288 = vmatprep.mubr.f32.mxu0 0.0
    %2289 = vmatmul.mubr.f32.gmra.mrb[0].mxu0 %v2125
    %v2290 = vpop.f32.mrb[0].mxu0
    %v2291 = vadd.f32 %v2115, %v2290
    %v2292 = vpop.f32.mrb[0].mxu0
    %2293 = vmatprep.mubr.f32.mxu0 0.0
    %2294 = vmatmul.mubr.f32.gmra.mrb[0].mxu0 %v2128
    %v2295 = vpop.f32.mrb[0].mxu0
    %v2296 = vadd.f32 %v2115, %v2295
    %v2297 = vpop.f32.mrb[0].mxu0
    %2298 = vmatprep.mubr.f32.mxu0 0.0
    %2299 = vmatmul.mubr.f32.gmra.mrb[0].mxu0 %v2131
    %v2300 = vpop.f32.mrb[0].mxu0
    %v2301 = vadd.f32 %v2115, %v2300
    %v2302 = vpop.f32.mrb[0].mxu0
    %2303 = vmatprep.mubr.f32.mxu0 0.0
    %2304 = vmatmul.mubr.f32.gmra.mrb[0].mxu0 %v2134
    %v2305 = vpop.f32.mrb[0].mxu0
    %v2306 = vadd.f32 %v2115, %v2305
    %v2307 = vpop.f32.mrb[0].mxu0
    %2308 = vmatprep.mubr.f32.mxu0 0.0
    %2309 = vmatmul.mubr.f32.gmra.mrb[0].mxu0 %v2137
    %v2310 = vpop.f32.mrb[0].mxu0
    %v2311 = vadd.f32 %v2115, %v2310
    %v2312 = vpop.f32.mrb[0].mxu0
    %2313 = vmatprep.mubr.f32.mxu0 0.0
    %2314 = vmatmul.mubr.f32.gmra.mrb[0].mxu0 %v2140
    %v2315 = vpop.f32.mrb[0].mxu0
    %v2316 = vadd.f32 %v2115, %v2315
    %v2317 = vpop.f32.mrb[0].mxu0
    %2318 = vmatprep.mubr.f32.mxu0 0.0
    %2319 = vmatmul.mubr.f32.gmra.mrb[0].mxu0 %v2143
    %v2320 = vpop.f32.mrb[0].mxu0
    %v2321 = vadd.f32 %v2115, %v2320
    %v2322 = vpop.f32.mrb[0].mxu0
    %2323 = vmatprep.mubr.f32.mxu0 0.0
    %2324 = vmatmul.mubr.f32.gmra.mrb[0].mxu0 %v2146
    %v2325 = vpop.f32.mrb[0].mxu0
    %v2326 = vadd.f32 %v2115, %v2325
    %v2327 = vpop.f32.mrb[0].mxu0
    %2328 = vmatprep.mubr.f32.mxu0 0.0
    %2329 = vmatmul.mubr.f32.gmra.mrb[0].mxu0 %v2149
    %v2330 = vpop.f32.mrb[0].mxu0
    %v2331 = vadd.f32 %v2115, %v2330
    %v2332 = vpop.f32.mrb[0].mxu0
    %2333 = vmatprep.mubr.f32.mxu0 0.0
    %2334 = vmatmul.mubr.f32.gmra.mrb[0].mxu0 %v2152
    %v2335 = vpop.f32.mrb[0].mxu0
    %v2336 = vadd.f32 %v2115, %v2335
    %v2337 = vpop.f32.mrb[0].mxu0
    %2338 = vmatprep.mubr.f32.mxu0 0.0
    %2339 = vmatmul.mubr.f32.gmra.mrb[0].mxu0 %v2155
    %v2340 = vpop.f32.mrb[0].mxu0
    %v2341 = vadd.f32 %v2115, %v2340
    %v2342 = vpop.f32.mrb[0].mxu0
    %2343 = vmatprep.mubr.f32.mxu0 0.0
    %2344 = vmatmul.mubr.f32.gmra.mrb[0].mxu0 %v2158
    %v2345 = vpop.f32.mrb[0].mxu0
    %v2346 = vadd.f32 %v2115, %v2345
    %v2347 = vpop.f32.mrb[0].mxu0
    %2348 = vmatprep.mubr.f32.mxu0 0.0
    %2349 = vmatmul.mubr.f32.gmra.mrb[0].mxu0 %v2161
    %v2350 = vpop.f32.mrb[0].mxu0
    %v2351 = vadd.f32 %v2115, %v2350
    %v2352 = vpop.f32.mrb[0].mxu0
    %2353 = vmatprep.mubr.f32.mxu0 0.0
    %2354 = vmatmul.mubr.f32.gmra.mrb[0].mxu0 %v2164
    %v2355 = vpop.f32.mrb[0].mxu0
    %v2356 = vadd.f32 %v2115, %v2355
    %v2357 = vpop.f32.mrb[0].mxu0
    %2358 = vmatprep.mubr.f32.mxu0 0.0
    %2359 = vmatmul.mubr.f32.gmra.mrb[0].mxu0 %v2167
    %v2360 = vpop.f32.mrb[0].mxu0
    %v2361 = vadd.f32 %v2115, %v2360
    %v2362 = vpop.f32.mrb[0].mxu0
    %2363 = vmatprep.mubr.f32.mxu0 0.0
    %2364 = vmatmul.mubr.f32.gmra.mrb[0].mxu0 %v2170
    %v2365 = vpop.f32.mrb[0].mxu0
    %v2366 = vadd.f32 %v2115, %v2365
    %v2367 = vpop.f32.mrb[0].mxu0
    %2368 = vmatprep.mubr.f32.mxu0 0.0
    %2369 = vmatmul.mubr.f32.gmra.mrb[0].mxu0 %v2173
    %v2370 = vpop.f32.mrb[0].mxu0
    %v2371 = vadd.f32 %v2115, %v2370
    %v2372 = vpop.f32.mrb[0].mxu0
    %2373 = vmatprep.mubr.f32.mxu0 0.0
    %2374 = vmatmul.mubr.f32.gmra.mrb[0].mxu0 %v2176
    %v2375 = vpop.f32.mrb[0].mxu0
    %v2376 = vadd.f32 %v2115, %v2375
    %v2377 = vpop.f32.mrb[0].mxu0
    %2378 = vmatprep.mubr.f32.mxu0 0.0
    %2379 = vmatmul.mubr.f32.gmra.mrb[0].mxu0 %v2179
    %v2380 = vpop.f32.mrb[0].mxu0
    %v2381 = vadd.f32 %v2115, %v2380
    %v2382 = vpop.f32.mrb[0].mxu0
    %2383 = vmatprep.mubr.f32.mxu0 0.0
    %2384 = vmatmul.mubr.f32.gmra.mrb[0].mxu0 %v2182
    %v2385 = vpop.f32.mrb[0].mxu0
    %v2386 = vadd.f32 %v2115, %v2385
    %v2387 = vpop.f32.mrb[0].mxu0
    %2388 = vmatprep.mubr.f32.mxu0 0.0
    %2389 = vmatmul.mubr.f32.gmra.mrb[0].mxu0 %v2185
    %v2390 = vpop.f32.mrb[0].mxu0
    %v2391 = vadd.f32 %v2115, %v2390
    %v2392 = vpop.f32.mrb[0].mxu0
    %2393 = vmatprep.mubr.f32.mxu0 0.0
    %2394 = vmatmul.mubr.f32.gmra.mrb[0].mxu0 %v2188
    %v2395 = vpop.f32.mrb[0].mxu0
    %v2396 = vadd.f32 %v2115, %v2395
    %v2397 = vpop.f32.mrb[0].mxu0
    %2398 = vmatprep.mubr.f32.mxu0 0.0
    %2399 = vmatmul.mubr.f32.gmra.mrb[0].mxu0 %v2191
    %v2400 = vpop.f32.mrb[0].mxu0
    %v2401 = vadd.f32 %v2115, %v2400
    %v2402 = vpop.f32.mrb[0].mxu0
    %2403 = vmatprep.mubr.f32.mxu0 0.0
    %2404 = vmatmul.mubr.f32.gmra.mrb[0].mxu0 %v2194
    %v2405 = vpop.f32.mrb[0].mxu0
    %v2406 = vadd.f32 %v2115, %v2405
    %v2407 = vpop.f32.mrb[0].mxu0
    %2408 = vmatprep.mubr.f32.mxu0 0.0
    %2409 = vmatmul.mubr.f32.gmra.mrb[0].mxu0 %v2197
    %v2410 = vpop.f32.mrb[0].mxu0
    %v2411 = vadd.f32 %v2115, %v2410
    %v2412 = vpop.f32.mrb[0].mxu0
    %2413 = vmatprep.mubr.f32.mxu0 0.0
    %2414 = vmatmul.mubr.f32.gmra.mrb[0].mxu0 %v2200
    %v2415 = vpop.f32.mrb[0].mxu0
    %v2416 = vadd.f32 %v2115, %v2415
    %v2417 = vpop.f32.mrb[0].mxu0
    %2418 = vmatprep.mubr.f32.mxu0 0.0
    %2419 = vmatmul.mubr.f32.gmra.mrb[0].mxu0 %v2203
    %v2420 = vpop.f32.mrb[0].mxu0
    %v2421 = vadd.f32 %v2115, %v2420
    %v2422 = vpop.f32.mrb[0].mxu0
    %2423 = vmatprep.mubr.f32.mxu0 0.0
    %2424 = vmatmul.mubr.f32.gmra.mrb[0].mxu0 %v2206
    %v2425 = vpop.f32.mrb[0].mxu0
    %v2426 = vadd.f32 %v2115, %v2425
    %v2427 = vpop.f32.mrb[0].mxu0
    %2428 = vmatprep.mubr.f32.mxu0 0.0
    %2429 = vmatmul.mubr.f32.gmra.mrb[0].mxu0 %v2209
    %v2430 = vpop.f32.mrb[0].mxu0
    %v2431 = vadd.f32 %v2115, %v2430
    %v2432 = vpop.f32.mrb[0].mxu0
    %2433 = vmatprep.mubr.f32.mxu0 0.0
    %2434 = vmatmul.mubr.f32.gmra.mrb[0].mxu0 %v2212
    %v2435 = vpop.f32.mrb[0].mxu0
    %v2436 = vadd.f32 %v2115, %v2435
    %v2437 = vpop.f32.mrb[0].mxu0
    %2438 = vdwg.mxu0
    %v2439 = vmax.f32 %v2281, 0.0
    %v2440 = vmax.f32 %v2286, 0.0
    %v2441 = vmax.f32 %v2291, 0.0
    %v2442 = vmax.f32 %v2296, 0.0
    %v2443 = vmax.f32 %v2301, 0.0
    %v2444 = vmax.f32 %v2306, 0.0
    %v2445 = vmax.f32 %v2311, 0.0
    %v2446 = vmax.f32 %v2316, 0.0
    %v2447 = vmax.f32 %v2321, 0.0
    %v2448 = vmax.f32 %v2326, 0.0
    %v2449 = vmax.f32 %v2331, 0.0
    %v2450 = vmax.f32 %v2336, 0.0
    %v2451 = vmax.f32 %v2341, 0.0
    %v2452 = vmax.f32 %v2346, 0.0
    %v2453 = vmax.f32 %v2351, 0.0
    %v2454 = vmax.f32 %v2356, 0.0
    %v2455 = vmax.f32 %v2361, 0.0
    %v2456 = vmax.f32 %v2366, 0.0
    %v2457 = vmax.f32 %v2371, 0.0
    %v2458 = vmax.f32 %v2376, 0.0
    %v2459 = vmax.f32 %v2381, 0.0
    %v2460 = vmax.f32 %v2386, 0.0
    %v2461 = vmax.f32 %v2391, 0.0
    %v2462 = vmax.f32 %v2396, 0.0
    %v2463 = vmax.f32 %v2401, 0.0
    %v2464 = vmax.f32 %v2406, 0.0
    %v2465 = vmax.f32 %v2411, 0.0
    %v2466 = vmax.f32 %v2416, 0.0
    %v2467 = vmax.f32 %v2421, 0.0
    %v2468 = vmax.f32 %v2426, 0.0
    %v2469 = vmax.f32 %v2431, 0.0
    %v2470 = vmax.f32 %v2436, 0.0
    %v2471 = vsel %vm2117, %v1394, -inf
    %v2472 = vsel %vm2117, %v1399, -inf
    %v2473 = vmax.f32 %v2471, %v2472
    %v2474 = vrot.slane %v2473, 4
    %v2475 = vmax.f32 %v2473, %v2474
    %v2476 = vrot.slane %v2475, 2
    %v2477 = vmax.f32 %v2475, %v2476
    %v2478 = vrot.slane %v2477, 1
    %v2479 = vmax.f32 %v2477, %v2478
    %v2480 = vsel %vm2117, %v1404, -inf
    %v2481 = vsel %vm2117, %v1409, -inf
    %v2482 = vmax.f32 %v2480, %v2481
    %v2483 = vrot.slane %v2482, 4
    %v2484 = vmax.f32 %v2482, %v2483
    %v2485 = vrot.slane %v2484, 2
    %v2486 = vmax.f32 %v2484, %v2485
    %v2487 = vrot.slane %v2486, 1
    %v2488 = vmax.f32 %v2486, %v2487
    %v2489 = vsel %vm2117, %v1414, -inf
    %v2490 = vsel %vm2117, %v1419, -inf
    %v2491 = vmax.f32 %v2489, %v2490
    %v2492 = vrot.slane %v2491, 4
    %v2493 = vmax.f32 %v2491, %v2492
    %v2494 = vrot.slane %v2493, 2
    %v2495 = vmax.f32 %v2493, %v2494
    %v2496 = vrot.slane %v2495, 1
    %v2497 = vmax.f32 %v2495, %v2496
    %v2498 = vsel %vm2117, %v1424, -inf
    %v2499 = vsel %vm2117, %v1429, -inf
    %v2500 = vmax.f32 %v2498, %v2499
    %v2501 = vrot.slane %v2500, 4
    %v2502 = vmax.f32 %v2500, %v2501
    %v2503 = vrot.slane %v2502, 2
    %v2504 = vmax.f32 %v2502, %v2503
    %v2505 = vrot.slane %v2504, 1
    %v2506 = vmax.f32 %v2504, %v2505
    %v2507 = vsel %vm2117, %v1434, -inf
    %v2508 = vsel %vm2117, %v1439, -inf
    %v2509 = vmax.f32 %v2507, %v2508
    %v2510 = vrot.slane %v2509, 4
    %v2511 = vmax.f32 %v2509, %v2510
    %v2512 = vrot.slane %v2511, 2
    %v2513 = vmax.f32 %v2511, %v2512
    %v2514 = vrot.slane %v2513, 1
    %v2515 = vmax.f32 %v2513, %v2514
    %v2516 = vsel %vm2117, %v1444, -inf
    %v2517 = vsel %vm2117, %v1449, -inf
    %v2518 = vmax.f32 %v2516, %v2517
    %v2519 = vrot.slane %v2518, 4
    %v2520 = vmax.f32 %v2518, %v2519
    %v2521 = vrot.slane %v2520, 2
    %v2522 = vmax.f32 %v2520, %v2521
    %v2523 = vrot.slane %v2522, 1
    %v2524 = vmax.f32 %v2522, %v2523
    %v2525 = vsel %vm2117, %v1454, -inf
    %v2526 = vsel %vm2117, %v1459, -inf
    %v2527 = vmax.f32 %v2525, %v2526
    %v2528 = vrot.slane %v2527, 4
    %v2529 = vmax.f32 %v2527, %v2528
    %v2530 = vrot.slane %v2529, 2
    %v2531 = vmax.f32 %v2529, %v2530
    %v2532 = vrot.slane %v2531, 1
    %v2533 = vmax.f32 %v2531, %v2532
    %v2534 = vsel %vm2117, %v1464, -inf
    %v2535 = vsel %vm2117, %v1469, -inf
    %v2536 = vmax.f32 %v2534, %v2535
    %v2537 = vrot.slane %v2536, 4
    %v2538 = vmax.f32 %v2536, %v2537
    %v2539 = vrot.slane %v2538, 2
    %v2540 = vmax.f32 %v2538, %v2539
    %v2541 = vrot.slane %v2540, 1
    %v2542 = vmax.f32 %v2540, %v2541
    %v2543 = vsel %vm2117, %v1474, -inf
    %v2544 = vsel %vm2117, %v1479, -inf
    %v2545 = vmax.f32 %v2543, %v2544
    %v2546 = vrot.slane %v2545, 4
    %v2547 = vmax.f32 %v2545, %v2546
    %v2548 = vrot.slane %v2547, 2
    %v2549 = vmax.f32 %v2547, %v2548
    %v2550 = vrot.slane %v2549, 1
    %v2551 = vmax.f32 %v2549, %v2550
    %v2552 = vsel %vm2117, %v1484, -inf
    %v2553 = vsel %vm2117, %v1489, -inf
    %v2554 = vmax.f32 %v2552, %v2553
    %v2555 = vrot.slane %v2554, 4
    %v2556 = vmax.f32 %v2554, %v2555
    %v2557 = vrot.slane %v2556, 2
    %v2558 = vmax.f32 %v2556, %v2557
    %v2559 = vrot.slane %v2558, 1
    %v2560 = vmax.f32 %v2558, %v2559
    %v2561 = vsel %vm2117, %v1494, -inf
    %v2562 = vsel %vm2117, %v1499, -inf
    %v2563 = vmax.f32 %v2561, %v2562
    %v2564 = vrot.slane %v2563, 4
    %v2565 = vmax.f32 %v2563, %v2564
    %v2566 = vrot.slane %v2565, 2
    %v2567 = vmax.f32 %v2565, %v2566
    %v2568 = vrot.slane %v2567, 1
    %v2569 = vmax.f32 %v2567, %v2568
    %v2570 = vsel %vm2117, %v1504, -inf
    %v2571 = vsel %vm2117, %v1509, -inf
    %v2572 = vmax.f32 %v2570, %v2571
    %v2573 = vrot.slane %v2572, 4
    %v2574 = vmax.f32 %v2572, %v2573
    %v2575 = vrot.slane %v2574, 2
    %v2576 = vmax.f32 %v2574, %v2575
    %v2577 = vrot.slane %v2576, 1
    %v2578 = vmax.f32 %v2576, %v2577
    %v2579 = vsel %vm2117, %v1514, -inf
    %v2580 = vsel %vm2117, %v1519, -inf
    %v2581 = vmax.f32 %v2579, %v2580
    %v2582 = vrot.slane %v2581, 4
    %v2583 = vmax.f32 %v2581, %v2582
    %v2584 = vrot.slane %v2583, 2
    %v2585 = vmax.f32 %v2583, %v2584
    %v2586 = vrot.slane %v2585, 1
    %v2587 = vmax.f32 %v2585, %v2586
    %v2588 = vsel %vm2117, %v1524, -inf
    %v2589 = vsel %vm2117, %v1529, -inf
    %v2590 = vmax.f32 %v2588, %v2589
    %v2591 = vrot.slane %v2590, 4
    %v2592 = vmax.f32 %v2590, %v2591
    %v2593 = vrot.slane %v2592, 2
    %v2594 = vmax.f32 %v2592, %v2593
    %v2595 = vrot.slane %v2594, 1
    %v2596 = vmax.f32 %v2594, %v2595
    %v2597 = vsel %vm2117, %v1534, -inf
    %v2598 = vsel %vm2117, %v1539, -inf
    %v2599 = vmax.f32 %v2597, %v2598
    %v2600 = vrot.slane %v2599, 4
    %v2601 = vmax.f32 %v2599, %v2600
    %v2602 = vrot.slane %v2601, 2
    %v2603 = vmax.f32 %v2601, %v2602
    %v2604 = vrot.slane %v2603, 1
    %v2605 = vmax.f32 %v2603, %v2604
    %v2606 = vsel %vm2117, %v1544, -inf
    %v2607 = vsel %vm2117, %v1549, -inf
    %v2608 = vmax.f32 %v2606, %v2607
    %v2609 = vrot.slane %v2608, 4
    %v2610 = vmax.f32 %v2608, %v2609
    %v2611 = vrot.slane %v2610, 2
    %v2612 = vmax.f32 %v2610, %v2611
    %v2613 = vrot.slane %v2612, 1
    %v2614 = vmax.f32 %v2612, %v2613
    %v2615 = vsel %vm2065, %v2439, -inf
    %v2616 = vsel %vm2065, %v2440, -inf
    %v2617 = vmax.f32 %v2615, %v2616
    %v2618 = vrot.slane %v2617, 4
    %v2619 = vmax.f32 %v2617, %v2618
    %v2620 = vrot.slane %v2619, 2
    %v2621 = vmax.f32 %v2619, %v2620
    %v2622 = vrot.slane %v2621, 1
    %v2623 = vmax.f32 %v2621, %v2622
    %v2624 = vsel %vm2065, %v2441, -inf
    %v2625 = vsel %vm2065, %v2442, -inf
    %v2626 = vmax.f32 %v2624, %v2625
    %v2627 = vrot.slane %v2626, 4
    %v2628 = vmax.f32 %v2626, %v2627
    %v2629 = vrot.slane %v2628, 2
    %v2630 = vmax.f32 %v2628, %v2629
    %v2631 = vrot.slane %v2630, 1
    %v2632 = vmax.f32 %v2630, %v2631
    %v2633 = vsel %vm2065, %v2443, -inf
    %v2634 = vsel %vm2065, %v2444, -inf
    %v2635 = vmax.f32 %v2633, %v2634
    %v2636 = vrot.slane %v2635, 4
    %v2637 = vmax.f32 %v2635, %v2636
    %v2638 = vrot.slane %v2637, 2
    %v2639 = vmax.f32 %v2637, %v2638
    %v2640 = vrot.slane %v2639, 1
    %v2641 = vmax.f32 %v2639, %v2640
    %v2642 = vsel %vm2065, %v2445, -inf
    %v2643 = vsel %vm2065, %v2446, -inf
    %v2644 = vmax.f32 %v2642, %v2643
    %v2645 = vrot.slane %v2644, 4
    %v2646 = vmax.f32 %v2644, %v2645
    %v2647 = vrot.slane %v2646, 2
    %v2648 = vmax.f32 %v2646, %v2647
    %v2649 = vrot.slane %v2648, 1
    %v2650 = vmax.f32 %v2648, %v2649
    %v2651 = vsel %vm2065, %v2447, -inf
    %v2652 = vsel %vm2065, %v2448, -inf
    %v2653 = vmax.f32 %v2651, %v2652
    %v2654 = vrot.slane %v2653, 4
    %v2655 = vmax.f32 %v2653, %v2654
    %v2656 = vrot.slane %v2655, 2
    %v2657 = vmax.f32 %v2655, %v2656
    %v2658 = vrot.slane %v2657, 1
    %v2659 = vmax.f32 %v2657, %v2658
    %v2660 = vsel %vm2065, %v2449, -inf
    %v2661 = vsel %vm2065, %v2450, -inf
    %v2662 = vmax.f32 %v2660, %v2661
    %v2663 = vrot.slane %v2662, 4
    %v2664 = vmax.f32 %v2662, %v2663
    %v2665 = vrot.slane %v2664, 2
    %v2666 = vmax.f32 %v2664, %v2665
    %v2667 = vrot.slane %v2666, 1
    %v2668 = vmax.f32 %v2666, %v2667
    %v2669 = vsel %vm2065, %v2451, -inf
    %v2670 = vsel %vm2065, %v2452, -inf
    %v2671 = vmax.f32 %v2669, %v2670
    %v2672 = vrot.slane %v2671, 4
    %v2673 = vmax.f32 %v2671, %v2672
    %v2674 = vrot.slane %v2673, 2
    %v2675 = vmax.f32 %v2673, %v2674
    %v2676 = vrot.slane %v2675, 1
    %v2677 = vmax.f32 %v2675, %v2676
    %v2678 = vsel %vm2065, %v2453, -inf
    %v2679 = vsel %vm2065, %v2454, -inf
    %v2680 = vmax.f32 %v2678, %v2679
    %v2681 = vrot.slane %v2680, 4
    %v2682 = vmax.f32 %v2680, %v2681
    %v2683 = vrot.slane %v2682, 2
    %v2684 = vmax.f32 %v2682, %v2683
    %v2685 = vrot.slane %v2684, 1
    %v2686 = vmax.f32 %v2684, %v2685
    %v2687 = vsel %vm2065, %v2455, -inf
    %v2688 = vsel %vm2065, %v2456, -inf
    %v2689 = vmax.f32 %v2687, %v2688
    %v2690 = vrot.slane %v2689, 4
    %v2691 = vmax.f32 %v2689, %v2690
    %v2692 = vrot.slane %v2691, 2
    %v2693 = vmax.f32 %v2691, %v2692
    %v2694 = vrot.slane %v2693, 1
    %v2695 = vmax.f32 %v2693, %v2694
    %v2696 = vsel %vm2065, %v2457, -inf
    %v2697 = vsel %vm2065, %v2458, -inf
    %v2698 = vmax.f32 %v2696, %v2697
    %v2699 = vrot.slane %v2698, 4
    %v2700 = vmax.f32 %v2698, %v2699
    %v2701 = vrot.slane %v2700, 2
    %v2702 = vmax.f32 %v2700, %v2701
    %v2703 = vrot.slane %v2702, 1
    %v2704 = vmax.f32 %v2702, %v2703
    %v2705 = vsel %vm2065, %v2459, -inf
    %v2706 = vsel %vm2065, %v2460, -inf
    %v2707 = vmax.f32 %v2705, %v2706
    %v2708 = vrot.slane %v2707, 4
    %v2709 = vmax.f32 %v2707, %v2708
    %v2710 = vrot.slane %v2709, 2
    %v2711 = vmax.f32 %v2709, %v2710
    %v2712 = vrot.slane %v2711, 1
    %v2713 = vmax.f32 %v2711, %v2712
    %v2714 = vsel %vm2065, %v2461, -inf
    %v2715 = vsel %vm2065, %v2462, -inf
    %v2716 = vmax.f32 %v2714, %v2715
    %v2717 = vrot.slane %v2716, 4
    %v2718 = vmax.f32 %v2716, %v2717
    %v2719 = vrot.slane %v2718, 2
    %v2720 = vmax.f32 %v2718, %v2719
    %v2721 = vrot.slane %v2720, 1
    %v2722 = vmax.f32 %v2720, %v2721
    %v2723 = vsel %vm2065, %v2463, -inf
    %v2724 = vsel %vm2065, %v2464, -inf
    %v2725 = vmax.f32 %v2723, %v2724
    %v2726 = vrot.slane %v2725, 4
    %v2727 = vmax.f32 %v2725, %v2726
    %v2728 = vrot.slane %v2727, 2
    %v2729 = vmax.f32 %v2727, %v2728
    %v2730 = vrot.slane %v2729, 1
    %v2731 = vmax.f32 %v2729, %v2730
    %v2732 = vsel %vm2065, %v2465, -inf
    %v2733 = vsel %vm2065, %v2466, -inf
    %v2734 = vmax.f32 %v2732, %v2733
    %v2735 = vrot.slane %v2734, 4
    %v2736 = vmax.f32 %v2734, %v2735
    %v2737 = vrot.slane %v2736, 2
    %v2738 = vmax.f32 %v2736, %v2737
    %v2739 = vrot.slane %v2738, 1
    %v2740 = vmax.f32 %v2738, %v2739
    %v2741 = vsel %vm2065, %v2467, -inf
    %v2742 = vsel %vm2065, %v2468, -inf
    %v2743 = vmax.f32 %v2741, %v2742
    %v2744 = vrot.slane %v2743, 4
    %v2745 = vmax.f32 %v2743, %v2744
    %v2746 = vrot.slane %v2745, 2
    %v2747 = vmax.f32 %v2745, %v2746
    %v2748 = vrot.slane %v2747, 1
    %v2749 = vmax.f32 %v2747, %v2748
    %v2750 = vsel %vm2065, %v2469, -inf
    %v2751 = vsel %vm2065, %v2470, -inf
    %v2752 = vmax.f32 %v2750, %v2751
    %v2753 = vrot.slane %v2752, 4
    %v2754 = vmax.f32 %v2752, %v2753
    %v2755 = vrot.slane %v2754, 2
    %v2756 = vmax.f32 %v2754, %v2755
    %v2757 = vrot.slane %v2756, 1
    %v2758 = vmax.f32 %v2756, %v2757
    %2775 = vrot.lane.b32.xlu0 %v2479, 96
    %v2776 = vpop.permute.xlu0 %2775
    %2777 = vrot.lane.b32.xlu0 %v2488, 96
    %v2778 = vpop.permute.xlu0 %2777
    %2779 = vrot.lane.b32.xlu0 %v2497, 96
    %v2780 = vpop.permute.xlu0 %2779
    %2781 = vrot.lane.b32.xlu0 %v2506, 96
    %v2782 = vpop.permute.xlu0 %2781
    %2783 = vrot.lane.b32.xlu0 %v2515, 96
    %v2784 = vpop.permute.xlu0 %2783
    %2785 = vrot.lane.b32.xlu0 %v2524, 96
    %v2786 = vpop.permute.xlu0 %2785
    %2787 = vrot.lane.b32.xlu0 %v2533, 96
    %v2788 = vpop.permute.xlu0 %2787
    %2789 = vrot.lane.b32.xlu0 %v2542, 96
    %v2790 = vpop.permute.xlu0 %2789
    %2791 = vrot.lane.b32.xlu0 %v2551, 96
    %v2792 = vpop.permute.xlu0 %2791
    %2793 = vrot.lane.b32.xlu0 %v2560, 96
    %v2794 = vpop.permute.xlu0 %2793
    %2795 = vrot.lane.b32.xlu0 %v2569, 96
    %v2796 = vpop.permute.xlu0 %2795
    %2797 = vrot.lane.b32.xlu0 %v2578, 96
    %v2798 = vpop.permute.xlu0 %2797
    %2799 = vrot.lane.b32.xlu0 %v2587, 96
    %v2800 = vpop.permute.xlu0 %2799
    %2801 = vrot.lane.b32.xlu0 %v2596, 96
    %v2802 = vpop.permute.xlu0 %2801
    %2803 = vrot.lane.b32.xlu0 %v2605, 96
    %v2804 = vpop.permute.xlu0 %2803
    %2805 = vrot.lane.b32.xlu0 %v2614, 96
    %v2806 = vpop.permute.xlu0 %2805
    %v2823 = vadd.f32 %v2623, %v2776
    %v2824 = vadd.f32 %v2632, %v2778
    %v2825 = vadd.f32 %v2641, %v2780
    %v2826 = vadd.f32 %v2650, %v2782
    %v2827 = vadd.f32 %v2659, %v2784
    %v2828 = vadd.f32 %v2668, %v2786
    %v2829 = vadd.f32 %v2677, %v2788
    %v2830 = vadd.f32 %v2686, %v2790
    %v2831 = vadd.f32 %v2695, %v2792
    %v2832 = vadd.f32 %v2704, %v2794
    %v2833 = vadd.f32 %v2713, %v2796
    %v2834 = vadd.f32 %v2722, %v2798
    %v2835 = vadd.f32 %v2731, %v2800
    %v2836 = vadd.f32 %v2740, %v2802
    %v2837 = vadd.f32 %v2749, %v2804
    %v2838 = vadd.f32 %v2758, %v2806
    %v2839 = vld [vmem:[%s1] sm:$0xff]
    %v2840 = vld [vmem:[%s1 + $0x8] sm:$0xff]
    %v2841 = vld [vmem:[%s6] sm:$0xff]
    %v2842 = vld [vmem:[%s6 + $0x8] sm:$0xff]
    %v2843 = vld [vmem:[%s6 + $0x10] sm:$0xff]
    %v2844 = vld [vmem:[%s6 + $0x18] sm:$0xff]
    %v2845 = vld [vmem:[%s6 + $0x20] sm:$0xff]
    %v2846 = vld [vmem:[%s6 + $0x28] sm:$0xff]
    %v2847 = vld [vmem:[%s6 + $0x30] sm:$0xff]
    %v2848 = vld [vmem:[%s6 + $0x38] sm:$0xff]
    %v2849 = vld [vmem:[%s7] sm:$0xff]
    %v2850 = vld [vmem:[%s7 + $0x8] sm:$0x1]
    %vm2851 = vcmask 72704
    %v2853 = vsel %vm2851, %v2839, 0
    %v2856 = vsel %vm2851, %v2840, 0
    %vm2858 = vcmask 1040384
    %v2860 = vsel %vm2858, %v2850, 0
    %2862 = vmatprep.subr.mxu0 0.0
    %2863 = vmatpush1.msra.mxu0 %v2849
    %2864 = vmatprep.subr.mxu0 0.0
    %2865 = vmatpush1.msra.mxu0 %v2860
    %2866 = vmatprep.subr.mxu0 0.0
    %2867 = vmatpush1.msra.mxu0 0.0
    %2868 = vmatprep.subr.mxu0 0.0
    %2869 = vmatpush1.msra.mxu0 0.0
    %2870 = vmatprep.subr.mxu0 0.0
    %2871 = vmatpush1.msra.mxu0 0.0
    %2872 = vmatprep.subr.mxu0 0.0
    %2873 = vmatpush1.msra.mxu0 0.0
    %2874 = vmatprep.subr.mxu0 0.0
    %2875 = vmatpush1.msra.mxu0 0.0
    %2876 = vmatprep.subr.mxu0 0.0
    %2877 = vmatpush1.msra.mxu0 0.0
    %2878 = vmatprep.subr.mxu0 0.0
    %2879 = vmatpush1.msra.mxu0 0.0
    %2880 = vmatprep.subr.mxu0 0.0
    %2881 = vmatpush1.msra.mxu0 0.0
    %2882 = vmatprep.subr.mxu0 0.0
    %2883 = vmatpush1.msra.mxu0 0.0
    %2884 = vmatprep.subr.mxu0 0.0
    %2885 = vmatpush1.msra.mxu0 0.0
    %2886 = vmatprep.subr.mxu0 0.0
    %2887 = vmatpush1.msra.mxu0 0.0
    %2888 = vmatprep.subr.mxu0 0.0
    %2889 = vmatpush1.msra.mxu0 0.0
    %2890 = vmatprep.subr.mxu0 0.0
    %2891 = vmatpush1.msra.mxu0 0.0
    %2892 = vmatprep.subr.mxu0 0.0
    %2893 = vmatpush1.msra.mxu0 0.0
    %2894 = vmatprep.subr.mxu0 0.0
    %2895 = vmatpush1.msra.mxu0 0.0
    %2896 = vmatprep.subr.mxu0 0.0
    %2897 = vmatpush1.msra.mxu0 0.0
    %2898 = vmatprep.subr.mxu0 0.0
    %2899 = vmatpush1.msra.mxu0 0.0
    %2900 = vmatprep.subr.mxu0 0.0
    %2901 = vmatpush1.msra.mxu0 0.0
    %2902 = vmatprep.subr.mxu0 0.0
    %2903 = vmatpush1.msra.mxu0 0.0
    %2904 = vmatprep.subr.mxu0 0.0
    %2905 = vmatpush1.msra.mxu0 0.0
    %2906 = vmatprep.subr.mxu0 0.0
    %2907 = vmatpush1.msra.mxu0 0.0
    %2908 = vmatprep.subr.mxu0 0.0
    %2909 = vmatpush1.msra.mxu0 0.0
    %2910 = vmatprep.subr.mxu0 0.0
    %2911 = vmatpush1.msra.mxu0 0.0
    %2912 = vmatprep.subr.mxu0 0.0
    %2913 = vmatpush1.msra.mxu0 0.0
    %2914 = vmatprep.subr.mxu0 0.0
    %2915 = vmatpush1.msra.mxu0 0.0
    %2916 = vmatprep.subr.mxu0 0.0
    %2917 = vmatpush1.msra.mxu0 0.0
    %2918 = vmatprep.subr.mxu0 0.0
    %2919 = vmatpush1.msra.mxu0 0.0
    %2920 = vmatprep.subr.mxu0 0.0
    %2921 = vmatpush1.msra.mxu0 0.0
    %2922 = vmatprep.subr.mxu0 0.0
    %2923 = vmatpush1.msra.mxu0 0.0
    %2924 = vmatprep.subr.mxu0 0.0
    %2925 = vmatpush1.msra.mxu0 0.0
    %2926 = vmatprep.mubr.f32.mxu0 0.0
    %2927 = vmatmul.mubr.f32.gmra.mrb[0].mxu0 %v2853
    %v2928 = vpop.f32.mrb[0].mxu0
    %v2929 = vadd.f32 0.0, %v2928
    %v2930 = vpop.f32.mrb[0].mxu0
    %2931 = vmatprep.mubr.f32.mxu0 0.0
    %2932 = vmatmul.mubr.f32.gmra.mrb[0].mxu0 %v2856
    %v2933 = vpop.f32.mrb[0].mxu0
    %v2934 = vadd.f32 0.0, %v2933
    %v2935 = vpop.f32.mrb[0].mxu0
    %2936 = vdwg.mxu0
    %v2953 = vrot.slane %v2824, 7
    %vm2954 = vcmask 1041409
    %v2955 = vsel %vm2954, %v2953, %v2823
    %v2956 = vrot.slane %v2825, 6
    %vm2957 = vcmask 1042434
    %v2958 = vsel %vm2957, %v2956, %v2955
    %v2959 = vrot.slane %v2826, 5
    %vm2960 = vcmask 1043459
    %v2961 = vsel %vm2960, %v2959, %v2958
    %v2962 = vrot.slane %v2827, 4
    %vm2963 = vcmask 1044484
    %v2964 = vsel %vm2963, %v2962, %v2961
    %v2965 = vrot.slane %v2828, 3
    %vm2966 = vcmask 1045509
    %v2967 = vsel %vm2966, %v2965, %v2964
    %v2968 = vrot.slane %v2829, 2
    %vm2969 = vcmask 1046534
    %v2970 = vsel %vm2969, %v2968, %v2967
    %v2971 = vrot.slane %v2830, 1
    %vm2972 = vcmask 1047559
    %v2973 = vsel %vm2972, %v2971, %v2970
    %v2974 = vrot.slane %v2832, 7
    %v2975 = vsel %vm2954, %v2974, %v2831
    %v2976 = vrot.slane %v2833, 6
    %v2977 = vsel %vm2957, %v2976, %v2975
    %v2978 = vrot.slane %v2834, 5
    %v2979 = vsel %vm2960, %v2978, %v2977
    %v2980 = vrot.slane %v2835, 4
    %v2981 = vsel %vm2963, %v2980, %v2979
    %v2982 = vrot.slane %v2836, 3
    %v2983 = vsel %vm2966, %v2982, %v2981
    %v2984 = vrot.slane %v2837, 2
    %v2985 = vsel %vm2969, %v2984, %v2983
    %v2986 = vrot.slane %v2838, 1
    %v2987 = vsel %vm2972, %v2986, %v2985
    %v2988 = vsel %vm2065, %v2973, 0
    %v2990 = vsel %vm2065, %v2987, 0
    %2992 = vmatprep.subr.mxu0 0.0
    %2993 = vmatpush1.msra.mxu0 %v2841
    %2994 = vmatprep.subr.mxu0 0.0
    %2995 = vmatpush1.msra.mxu0 %v2842
    %2996 = vmatprep.subr.mxu0 0.0
    %2997 = vmatpush1.msra.mxu0 %v2843
    %2998 = vmatprep.subr.mxu0 0.0
    %2999 = vmatpush1.msra.mxu0 %v2844
    %3000 = vmatprep.subr.mxu0 0.0
    %3001 = vmatpush1.msra.mxu0 %v2845
    %3002 = vmatprep.subr.mxu0 0.0
    %3003 = vmatpush1.msra.mxu0 %v2846
    %3004 = vmatprep.subr.mxu0 0.0
    %3005 = vmatpush1.msra.mxu0 %v2847
    %3006 = vmatprep.subr.mxu0 0.0
    %3007 = vmatpush1.msra.mxu0 %v2848
    %3008 = vmatprep.subr.mxu0 0.0
    %3009 = vmatpush1.msra.mxu0 0.0
    %3010 = vmatprep.subr.mxu0 0.0
    %3011 = vmatpush1.msra.mxu0 0.0
    %3012 = vmatprep.subr.mxu0 0.0
    %3013 = vmatpush1.msra.mxu0 0.0
    %3014 = vmatprep.subr.mxu0 0.0
    %3015 = vmatpush1.msra.mxu0 0.0
    %3016 = vmatprep.subr.mxu0 0.0
    %3017 = vmatpush1.msra.mxu0 0.0
    %3018 = vmatprep.subr.mxu0 0.0
    %3019 = vmatpush1.msra.mxu0 0.0
    %3020 = vmatprep.subr.mxu0 0.0
    %3021 = vmatpush1.msra.mxu0 0.0
    %3022 = vmatprep.subr.mxu0 0.0
    %3023 = vmatpush1.msra.mxu0 0.0
    %3024 = vmatprep.subr.mxu0 0.0
    %3025 = vmatpush1.msra.mxu0 0.0
    %3026 = vmatprep.subr.mxu0 0.0
    %3027 = vmatpush1.msra.mxu0 0.0
    %3028 = vmatprep.subr.mxu0 0.0
    %3029 = vmatpush1.msra.mxu0 0.0
    %3030 = vmatprep.subr.mxu0 0.0
    %3031 = vmatpush1.msra.mxu0 0.0
    %3032 = vmatprep.subr.mxu0 0.0
    %3033 = vmatpush1.msra.mxu0 0.0
    %3034 = vmatprep.subr.mxu0 0.0
    %3035 = vmatpush1.msra.mxu0 0.0
    %3036 = vmatprep.subr.mxu0 0.0
    %3037 = vmatpush1.msra.mxu0 0.0
    %3038 = vmatprep.subr.mxu0 0.0
    %3039 = vmatpush1.msra.mxu0 0.0
    %3040 = vmatprep.subr.mxu0 0.0
    %3041 = vmatpush1.msra.mxu0 0.0
    %3042 = vmatprep.subr.mxu0 0.0
    %3043 = vmatpush1.msra.mxu0 0.0
    %3044 = vmatprep.subr.mxu0 0.0
    %3045 = vmatpush1.msra.mxu0 0.0
    %3046 = vmatprep.subr.mxu0 0.0
    %3047 = vmatpush1.msra.mxu0 0.0
    %3048 = vmatprep.subr.mxu0 0.0
    %3049 = vmatpush1.msra.mxu0 0.0
    %3050 = vmatprep.subr.mxu0 0.0
    %3051 = vmatpush1.msra.mxu0 0.0
    %3052 = vmatprep.subr.mxu0 0.0
    %3053 = vmatpush1.msra.mxu0 0.0
    %3054 = vmatprep.subr.mxu0 0.0
    %3055 = vmatpush1.msra.mxu0 0.0
    %3056 = vmatprep.mubr.f32.mxu0 0.0
    %3057 = vmatmul.mubr.f32.gmra.mrb[0].mxu0 %v2988
    %v3058 = vpop.f32.mrb[0].mxu0
    %v3059 = vadd.f32 %v2929, %v3058
    %v3060 = vpop.f32.mrb[0].mxu0
    %3061 = vmatprep.mubr.f32.mxu0 0.0
    %3062 = vmatmul.mubr.f32.gmra.mrb[0].mxu0 %v2990
    %v3063 = vpop.f32.mrb[0].mxu0
    %v3064 = vadd.f32 %v2934, %v3063
    %v3065 = vpop.f32.mrb[0].mxu0
    %3066 = vdwg.mxu0
    %v3067 = vld [vmem:[%s8] sm:$0x1]
    %v3069 = vlaneseq
    %v3070 = vshrl.u32 %v3069, 7
    %v3071 = vsub.s32 0, %v3070
    %v3072 = vrot.slane %v3067, %v3071
    %v3074 = vadd.f32 %v3059, %v3072
    %v3075 = vadd.f32 %v3064, %v3072
    %v3076 = vlaneseq
    %v3077 = vand.u32 %v3076, 127
    %vm3078 = vcmp.lt.s32.totalorder %v3077, 96
    %v3079 = vsel %vm3078, 0.5, 1.0
    %v3080 = vsel %vm3078, 0.5, 0.0
    %v3081 = vld [vmem:[%s9] sm:$0xff]
    %v3082 = vld [vmem:[%s9 + $0x8] sm:$0xff]
    %v3083 = vld [vmem:[%s9 + $0x10] sm:$0xff]
    %v3084 = vld [vmem:[%s9 + $0x18] sm:$0xff]
    %v3086 = vsel %vm2032, 0.0, 0
    %3088 = vmatprep.subr.mxu0 0.0
    %3089 = vmatpush1.msra.mxu0 %v3081
    %3090 = vmatprep.subr.mxu0 0.0
    %3091 = vmatpush1.msra.mxu0 %v3082
    %3092 = vmatprep.subr.mxu0 0.0
    %3093 = vmatpush1.msra.mxu0 %v3083
    %3094 = vmatprep.subr.mxu0 0.0
    %3095 = vmatpush1.msra.mxu0 %v3084
    %3096 = vmatprep.subr.mxu0 0.0
    %3097 = vmatpush1.msra.mxu0 0.0
    %3098 = vmatprep.subr.mxu0 0.0
    %3099 = vmatpush1.msra.mxu0 0.0
    %3100 = vmatprep.subr.mxu0 0.0
    %3101 = vmatpush1.msra.mxu0 0.0
    %3102 = vmatprep.subr.mxu0 0.0
    %3103 = vmatpush1.msra.mxu0 0.0
    %3104 = vmatprep.subr.mxu0 0.0
    %3105 = vmatpush1.msra.mxu0 0.0
    %3106 = vmatprep.subr.mxu0 0.0
    %3107 = vmatpush1.msra.mxu0 0.0
    %3108 = vmatprep.subr.mxu0 0.0
    %3109 = vmatpush1.msra.mxu0 0.0
    %3110 = vmatprep.subr.mxu0 0.0
    %3111 = vmatpush1.msra.mxu0 0.0
    %3112 = vmatprep.subr.mxu0 0.0
    %3113 = vmatpush1.msra.mxu0 0.0
    %3114 = vmatprep.subr.mxu0 0.0
    %3115 = vmatpush1.msra.mxu0 0.0
    %3116 = vmatprep.subr.mxu0 0.0
    %3117 = vmatpush1.msra.mxu0 0.0
    %3118 = vmatprep.subr.mxu0 0.0
    %3119 = vmatpush1.msra.mxu0 0.0
    %3120 = vmatprep.subr.mxu0 0.0
    %3121 = vmatpush1.msra.mxu0 0.0
    %3122 = vmatprep.subr.mxu0 0.0
    %3123 = vmatpush1.msra.mxu0 0.0
    %3124 = vmatprep.subr.mxu0 0.0
    %3125 = vmatpush1.msra.mxu0 0.0
    %3126 = vmatprep.subr.mxu0 0.0
    %3127 = vmatpush1.msra.mxu0 0.0
    %3128 = vmatprep.subr.mxu0 0.0
    %3129 = vmatpush1.msra.mxu0 0.0
    %3130 = vmatprep.subr.mxu0 0.0
    %3131 = vmatpush1.msra.mxu0 0.0
    %3132 = vmatprep.subr.mxu0 0.0
    %3133 = vmatpush1.msra.mxu0 0.0
    %3134 = vmatprep.subr.mxu0 0.0
    %3135 = vmatpush1.msra.mxu0 0.0
    %3136 = vmatprep.subr.mxu0 0.0
    %3137 = vmatpush1.msra.mxu0 0.0
    %3138 = vmatprep.subr.mxu0 0.0
    %3139 = vmatpush1.msra.mxu0 0.0
    %3140 = vmatprep.subr.mxu0 0.0
    %3141 = vmatpush1.msra.mxu0 0.0
    %3142 = vmatprep.subr.mxu0 0.0
    %3143 = vmatpush1.msra.mxu0 0.0
    %3144 = vmatprep.subr.mxu0 0.0
    %3145 = vmatpush1.msra.mxu0 0.0
    %3146 = vmatprep.subr.mxu0 0.0
    %3147 = vmatpush1.msra.mxu0 0.0
    %3148 = vmatprep.subr.mxu0 0.0
    %3149 = vmatpush1.msra.mxu0 0.0
    %3150 = vmatprep.subr.mxu0 0.0
    %3151 = vmatpush1.msra.mxu0 0.0
    %3152 = vmatprep.mubr.f32.mxu0 0.0
    %3153 = vmatmul.mubr.f32.gmra.mrb[0].mxu0 %v3086
    %v3154 = vpop.f32.mrb[0].mxu0
    %v3155 = vadd.f32 0.0, %v3154
    %v3156 = vpop.f32.mrb[0].mxu0
    %3157 = vdwg.mxu0
    %v3158 = vadd.f32 %v3074, %v3155
    %v3159 = vmul.f32 %v3158, %v3079
    %v3160 = vtanh.pop %v3159
    %v3161 = vmul.f32 %v3160, %v3079
    %v3162 = vadd.f32 %v3161, %v3080
    %v3163 = vmul.f32 %v3162, 0.0
    %3165 = vrot.lane.b32.xlu0 %v3162, 32
    %v3166 = vpop.permute.xlu0 %3165
    %v3168 = vmul.f32 %v3162, %v3166
    %3170 = vrot.lane.b32.xlu0 %v3168, 32
    %v3171 = vpop.permute.xlu0 %3170
    %v3173 = vadd.f32 %v3163, %v3171
    %v3174 = vtanh.pop %v3173
    %3176 = vrot.lane.b32.xlu0 %v3174, 32
    %v3177 = vpop.permute.xlu0 %3176
    %v3179 = vmul.f32 %v3162, %v3177
    %3181 = vrot.lane.b32.xlu0 %v3179, 64
    %v3182 = vpop.permute.xlu0 %3181
    %v3183 = vsel %vm2032, %v3182, 0
    %3185 = vmatprep.subr.mxu0 0.0
    %3186 = vmatpush1.msra.mxu0 %v3081
    %3187 = vmatprep.subr.mxu0 0.0
    %3188 = vmatpush1.msra.mxu0 %v3082
    %3189 = vmatprep.subr.mxu0 0.0
    %3190 = vmatpush1.msra.mxu0 %v3083
    %3191 = vmatprep.subr.mxu0 0.0
    %3192 = vmatpush1.msra.mxu0 %v3084
    %3193 = vmatprep.subr.mxu0 0.0
    %3194 = vmatpush1.msra.mxu0 0.0
    %3195 = vmatprep.subr.mxu0 0.0
    %3196 = vmatpush1.msra.mxu0 0.0
    %3197 = vmatprep.subr.mxu0 0.0
    %3198 = vmatpush1.msra.mxu0 0.0
    %3199 = vmatprep.subr.mxu0 0.0
    %3200 = vmatpush1.msra.mxu0 0.0
    %3201 = vmatprep.subr.mxu0 0.0
    %3202 = vmatpush1.msra.mxu0 0.0
    %3203 = vmatprep.subr.mxu0 0.0
    %3204 = vmatpush1.msra.mxu0 0.0
    %3205 = vmatprep.subr.mxu0 0.0
    %3206 = vmatpush1.msra.mxu0 0.0
    %3207 = vmatprep.subr.mxu0 0.0
    %3208 = vmatpush1.msra.mxu0 0.0
    %3209 = vmatprep.subr.mxu0 0.0
    %3210 = vmatpush1.msra.mxu0 0.0
    %3211 = vmatprep.subr.mxu0 0.0
    %3212 = vmatpush1.msra.mxu0 0.0
    %3213 = vmatprep.subr.mxu0 0.0
    %3214 = vmatpush1.msra.mxu0 0.0
    %3215 = vmatprep.subr.mxu0 0.0
    %3216 = vmatpush1.msra.mxu0 0.0
    %3217 = vmatprep.subr.mxu0 0.0
    %3218 = vmatpush1.msra.mxu0 0.0
    %3219 = vmatprep.subr.mxu0 0.0
    %3220 = vmatpush1.msra.mxu0 0.0
    %3221 = vmatprep.subr.mxu0 0.0
    %3222 = vmatpush1.msra.mxu0 0.0
    %3223 = vmatprep.subr.mxu0 0.0
    %3224 = vmatpush1.msra.mxu0 0.0
    %3225 = vmatprep.subr.mxu0 0.0
    %3226 = vmatpush1.msra.mxu0 0.0
    %3227 = vmatprep.subr.mxu0 0.0
    %3228 = vmatpush1.msra.mxu0 0.0
    %3229 = vmatprep.subr.mxu0 0.0
    %3230 = vmatpush1.msra.mxu0 0.0
    %3231 = vmatprep.subr.mxu0 0.0
    %3232 = vmatpush1.msra.mxu0 0.0
    %3233 = vmatprep.subr.mxu0 0.0
    %3234 = vmatpush1.msra.mxu0 0.0
    %3235 = vmatprep.subr.mxu0 0.0
    %3236 = vmatpush1.msra.mxu0 0.0
    %3237 = vmatprep.subr.mxu0 0.0
    %3238 = vmatpush1.msra.mxu0 0.0
    %3239 = vmatprep.subr.mxu0 0.0
    %3240 = vmatpush1.msra.mxu0 0.0
    %3241 = vmatprep.subr.mxu0 0.0
    %3242 = vmatpush1.msra.mxu0 0.0
    %3243 = vmatprep.subr.mxu0 0.0
    %3244 = vmatpush1.msra.mxu0 0.0
    %3245 = vmatprep.subr.mxu0 0.0
    %3246 = vmatpush1.msra.mxu0 0.0
    %3247 = vmatprep.subr.mxu0 0.0
    %3248 = vmatpush1.msra.mxu0 0.0
    %3249 = vmatprep.mubr.f32.mxu0 0.0
    %3250 = vmatmul.mubr.f32.gmra.mrb[0].mxu0 %v3183
    %v3251 = vpop.f32.mrb[0].mxu0
    %v3252 = vadd.f32 0.0, %v3251
    %v3253 = vpop.f32.mrb[0].mxu0
    %3254 = vdwg.mxu0
    %v3256 = vrot.slane %v3252, 6
    %v3258 = vadd.f32 %v3074, %v3256
    %v3259 = vmul.f32 %v3258, %v3079
    %v3260 = vtanh.pop %v3259
    %v3261 = vmul.f32 %v3260, %v3079
    %v3262 = vadd.f32 %v3261, %v3080
    %v3264 = vrot.slane %v3173, 6
    %v3266 = vmul.f32 %v3262, %v3264
    %3268 = vrot.lane.b32.xlu0 %v3262, 32
    %v3269 = vpop.permute.xlu0 %3268
    %v3271 = vmul.f32 %v3262, %v3269
    %3273 = vrot.lane.b32.xlu0 %v3271, 32
    %v3274 = vpop.permute.xlu0 %3273
    %v3276 = vadd.f32 %v3266, %v3274
    %v3277 = vtanh.pop %v3276
    %3279 = vrot.lane.b32.xlu0 %v3277, 32
    %v3280 = vpop.permute.xlu0 %3279
    %v3282 = vmul.f32 %v3262, %v3280
    %v3284 = vrot.slane %v3282, 2
    %3285 = vrot.lane.b32.xlu0 %v3284, 64
    %v3286 = vpop.permute.xlu0 %3285
    %v3287 = vsel %vm2032, %v3286, 0
    %3289 = vmatprep.subr.mxu0 0.0
    %3290 = vmatpush1.msra.mxu0 %v3081
    %3291 = vmatprep.subr.mxu0 0.0
    %3292 = vmatpush1.msra.mxu0 %v3082
    %3293 = vmatprep.subr.mxu0 0.0
    %3294 = vmatpush1.msra.mxu0 %v3083
    %3295 = vmatprep.subr.mxu0 0.0
    %3296 = vmatpush1.msra.mxu0 %v3084
    %3297 = vmatprep.subr.mxu0 0.0
    %3298 = vmatpush1.msra.mxu0 0.0
    %3299 = vmatprep.subr.mxu0 0.0
    %3300 = vmatpush1.msra.mxu0 0.0
    %3301 = vmatprep.subr.mxu0 0.0
    %3302 = vmatpush1.msra.mxu0 0.0
    %3303 = vmatprep.subr.mxu0 0.0
    %3304 = vmatpush1.msra.mxu0 0.0
    %3305 = vmatprep.subr.mxu0 0.0
    %3306 = vmatpush1.msra.mxu0 0.0
    %3307 = vmatprep.subr.mxu0 0.0
    %3308 = vmatpush1.msra.mxu0 0.0
    %3309 = vmatprep.subr.mxu0 0.0
    %3310 = vmatpush1.msra.mxu0 0.0
    %3311 = vmatprep.subr.mxu0 0.0
    %3312 = vmatpush1.msra.mxu0 0.0
    %3313 = vmatprep.subr.mxu0 0.0
    %3314 = vmatpush1.msra.mxu0 0.0
    %3315 = vmatprep.subr.mxu0 0.0
    %3316 = vmatpush1.msra.mxu0 0.0
    %3317 = vmatprep.subr.mxu0 0.0
    %3318 = vmatpush1.msra.mxu0 0.0
    %3319 = vmatprep.subr.mxu0 0.0
    %3320 = vmatpush1.msra.mxu0 0.0
    %3321 = vmatprep.subr.mxu0 0.0
    %3322 = vmatpush1.msra.mxu0 0.0
    %3323 = vmatprep.subr.mxu0 0.0
    %3324 = vmatpush1.msra.mxu0 0.0
    %3325 = vmatprep.subr.mxu0 0.0
    %3326 = vmatpush1.msra.mxu0 0.0
    %3327 = vmatprep.subr.mxu0 0.0
    %3328 = vmatpush1.msra.mxu0 0.0
    %3329 = vmatprep.subr.mxu0 0.0
    %3330 = vmatpush1.msra.mxu0 0.0
    %3331 = vmatprep.subr.mxu0 0.0
    %3332 = vmatpush1.msra.mxu0 0.0
    %3333 = vmatprep.subr.mxu0 0.0
    %3334 = vmatpush1.msra.mxu0 0.0
    %3335 = vmatprep.subr.mxu0 0.0
    %3336 = vmatpush1.msra.mxu0 0.0
    %3337 = vmatprep.subr.mxu0 0.0
    %3338 = vmatpush1.msra.mxu0 0.0
    %3339 = vmatprep.subr.mxu0 0.0
    %3340 = vmatpush1.msra.mxu0 0.0
    %3341 = vmatprep.subr.mxu0 0.0
    %3342 = vmatpush1.msra.mxu0 0.0
    %3343 = vmatprep.subr.mxu0 0.0
    %3344 = vmatpush1.msra.mxu0 0.0
    %3345 = vmatprep.subr.mxu0 0.0
    %3346 = vmatpush1.msra.mxu0 0.0
    %3347 = vmatprep.subr.mxu0 0.0
    %3348 = vmatpush1.msra.mxu0 0.0
    %3349 = vmatprep.subr.mxu0 0.0
    %3350 = vmatpush1.msra.mxu0 0.0
    %3351 = vmatprep.subr.mxu0 0.0
    %3352 = vmatpush1.msra.mxu0 0.0
    %3353 = vmatprep.mubr.f32.mxu0 0.0
    %3354 = vmatmul.mubr.f32.gmra.mrb[0].mxu0 %v3287
    %v3355 = vpop.f32.mrb[0].mxu0
    %v3356 = vadd.f32 0.0, %v3355
    %v3357 = vpop.f32.mrb[0].mxu0
    %3358 = vdwg.mxu0
    %v3360 = vrot.slane %v3356, 4
    %v3362 = vadd.f32 %v3074, %v3360
    %v3363 = vmul.f32 %v3362, %v3079
    %v3364 = vtanh.pop %v3363
    %v3365 = vmul.f32 %v3364, %v3079
    %v3366 = vadd.f32 %v3365, %v3080
    %v3368 = vrot.slane %v3276, 6
    %v3370 = vmul.f32 %v3366, %v3368
    %3372 = vrot.lane.b32.xlu0 %v3366, 32
    %v3373 = vpop.permute.xlu0 %3372
    %v3375 = vmul.f32 %v3366, %v3373
    %3377 = vrot.lane.b32.xlu0 %v3375, 32
    %v3378 = vpop.permute.xlu0 %3377
    %v3380 = vadd.f32 %v3370, %v3378
    %v3381 = vtanh.pop %v3380
    %3383 = vrot.lane.b32.xlu0 %v3381, 32
    %v3384 = vpop.permute.xlu0 %3383
    %v3386 = vmul.f32 %v3366, %v3384
    %v3388 = vrot.slane %v3386, 4
    %3389 = vrot.lane.b32.xlu0 %v3388, 64
    %v3390 = vpop.permute.xlu0 %3389
    %v3391 = vsel %vm2032, %v3390, 0
    %3393 = vmatprep.subr.mxu0 0.0
    %3394 = vmatpush1.msra.mxu0 %v3081
    %3395 = vmatprep.subr.mxu0 0.0
    %3396 = vmatpush1.msra.mxu0 %v3082
    %3397 = vmatprep.subr.mxu0 0.0
    %3398 = vmatpush1.msra.mxu0 %v3083
    %3399 = vmatprep.subr.mxu0 0.0
    %3400 = vmatpush1.msra.mxu0 %v3084
    %3401 = vmatprep.subr.mxu0 0.0
    %3402 = vmatpush1.msra.mxu0 0.0
    %3403 = vmatprep.subr.mxu0 0.0
    %3404 = vmatpush1.msra.mxu0 0.0
    %3405 = vmatprep.subr.mxu0 0.0
    %3406 = vmatpush1.msra.mxu0 0.0
    %3407 = vmatprep.subr.mxu0 0.0
    %3408 = vmatpush1.msra.mxu0 0.0
    %3409 = vmatprep.subr.mxu0 0.0
    %3410 = vmatpush1.msra.mxu0 0.0
    %3411 = vmatprep.subr.mxu0 0.0
    %3412 = vmatpush1.msra.mxu0 0.0
    %3413 = vmatprep.subr.mxu0 0.0
    %3414 = vmatpush1.msra.mxu0 0.0
    %3415 = vmatprep.subr.mxu0 0.0
    %3416 = vmatpush1.msra.mxu0 0.0
    %3417 = vmatprep.subr.mxu0 0.0
    %3418 = vmatpush1.msra.mxu0 0.0
    %3419 = vmatprep.subr.mxu0 0.0
    %3420 = vmatpush1.msra.mxu0 0.0
    %3421 = vmatprep.subr.mxu0 0.0
    %3422 = vmatpush1.msra.mxu0 0.0
    %3423 = vmatprep.subr.mxu0 0.0
    %3424 = vmatpush1.msra.mxu0 0.0
    %3425 = vmatprep.subr.mxu0 0.0
    %3426 = vmatpush1.msra.mxu0 0.0
    %3427 = vmatprep.subr.mxu0 0.0
    %3428 = vmatpush1.msra.mxu0 0.0
    %3429 = vmatprep.subr.mxu0 0.0
    %3430 = vmatpush1.msra.mxu0 0.0
    %3431 = vmatprep.subr.mxu0 0.0
    %3432 = vmatpush1.msra.mxu0 0.0
    %3433 = vmatprep.subr.mxu0 0.0
    %3434 = vmatpush1.msra.mxu0 0.0
    %3435 = vmatprep.subr.mxu0 0.0
    %3436 = vmatpush1.msra.mxu0 0.0
    %3437 = vmatprep.subr.mxu0 0.0
    %3438 = vmatpush1.msra.mxu0 0.0
    %3439 = vmatprep.subr.mxu0 0.0
    %3440 = vmatpush1.msra.mxu0 0.0
    %3441 = vmatprep.subr.mxu0 0.0
    %3442 = vmatpush1.msra.mxu0 0.0
    %3443 = vmatprep.subr.mxu0 0.0
    %3444 = vmatpush1.msra.mxu0 0.0
    %3445 = vmatprep.subr.mxu0 0.0
    %3446 = vmatpush1.msra.mxu0 0.0
    %3447 = vmatprep.subr.mxu0 0.0
    %3448 = vmatpush1.msra.mxu0 0.0
    %3449 = vmatprep.subr.mxu0 0.0
    %3450 = vmatpush1.msra.mxu0 0.0
    %3451 = vmatprep.subr.mxu0 0.0
    %3452 = vmatpush1.msra.mxu0 0.0
    %3453 = vmatprep.subr.mxu0 0.0
    %3454 = vmatpush1.msra.mxu0 0.0
    %3455 = vmatprep.subr.mxu0 0.0
    %3456 = vmatpush1.msra.mxu0 0.0
    %3457 = vmatprep.mubr.f32.mxu0 0.0
    %3458 = vmatmul.mubr.f32.gmra.mrb[0].mxu0 %v3391
    %v3459 = vpop.f32.mrb[0].mxu0
    %v3460 = vadd.f32 0.0, %v3459
    %v3461 = vpop.f32.mrb[0].mxu0
    %3462 = vdwg.mxu0
    %v3464 = vrot.slane %v3460, 2
    %v3466 = vadd.f32 %v3074, %v3464
    %v3467 = vmul.f32 %v3466, %v3079
    %v3468 = vtanh.pop %v3467
    %v3469 = vmul.f32 %v3468, %v3079
    %v3470 = vadd.f32 %v3469, %v3080
    %v3472 = vrot.slane %v3380, 6
    %v3474 = vmul.f32 %v3470, %v3472
    %3476 = vrot.lane.b32.xlu0 %v3470, 32
    %v3477 = vpop.permute.xlu0 %3476
    %v3479 = vmul.f32 %v3470, %v3477
    %3481 = vrot.lane.b32.xlu0 %v3479, 32
    %v3482 = vpop.permute.xlu0 %3481
    %v3484 = vadd.f32 %v3474, %v3482
    %v3485 = vtanh.pop %v3484
    %3487 = vrot.lane.b32.xlu0 %v3485, 32
    %v3488 = vpop.permute.xlu0 %3487
    %v3490 = vmul.f32 %v3470, %v3488
    %v3492 = vrot.slane %v3490, 6
    %3493 = vrot.lane.b32.xlu0 %v3492, 64
    %v3494 = vpop.permute.xlu0 %3493
    %v3495 = vsel %vm2032, %v3494, 0
    %3497 = vmatprep.subr.mxu0 0.0
    %3498 = vmatpush1.msra.mxu0 %v3081
    %3499 = vmatprep.subr.mxu0 0.0
    %3500 = vmatpush1.msra.mxu0 %v3082
    %3501 = vmatprep.subr.mxu0 0.0
    %3502 = vmatpush1.msra.mxu0 %v3083
    %3503 = vmatprep.subr.mxu0 0.0
    %3504 = vmatpush1.msra.mxu0 %v3084
    %3505 = vmatprep.subr.mxu0 0.0
    %3506 = vmatpush1.msra.mxu0 0.0
    %3507 = vmatprep.subr.mxu0 0.0
    %3508 = vmatpush1.msra.mxu0 0.0
    %3509 = vmatprep.subr.mxu0 0.0
    %3510 = vmatpush1.msra.mxu0 0.0
    %3511 = vmatprep.subr.mxu0 0.0
    %3512 = vmatpush1.msra.mxu0 0.0
    %3513 = vmatprep.subr.mxu0 0.0
    %3514 = vmatpush1.msra.mxu0 0.0
    %3515 = vmatprep.subr.mxu0 0.0
    %3516 = vmatpush1.msra.mxu0 0.0
    %3517 = vmatprep.subr.mxu0 0.0
    %3518 = vmatpush1.msra.mxu0 0.0
    %3519 = vmatprep.subr.mxu0 0.0
    %3520 = vmatpush1.msra.mxu0 0.0
    %3521 = vmatprep.subr.mxu0 0.0
    %3522 = vmatpush1.msra.mxu0 0.0
    %3523 = vmatprep.subr.mxu0 0.0
    %3524 = vmatpush1.msra.mxu0 0.0
    %3525 = vmatprep.subr.mxu0 0.0
    %3526 = vmatpush1.msra.mxu0 0.0
    %3527 = vmatprep.subr.mxu0 0.0
    %3528 = vmatpush1.msra.mxu0 0.0
    %3529 = vmatprep.subr.mxu0 0.0
    %3530 = vmatpush1.msra.mxu0 0.0
    %3531 = vmatprep.subr.mxu0 0.0
    %3532 = vmatpush1.msra.mxu0 0.0
    %3533 = vmatprep.subr.mxu0 0.0
    %3534 = vmatpush1.msra.mxu0 0.0
    %3535 = vmatprep.subr.mxu0 0.0
    %3536 = vmatpush1.msra.mxu0 0.0
    %3537 = vmatprep.subr.mxu0 0.0
    %3538 = vmatpush1.msra.mxu0 0.0
    %3539 = vmatprep.subr.mxu0 0.0
    %3540 = vmatpush1.msra.mxu0 0.0
    %3541 = vmatprep.subr.mxu0 0.0
    %3542 = vmatpush1.msra.mxu0 0.0
    %3543 = vmatprep.subr.mxu0 0.0
    %3544 = vmatpush1.msra.mxu0 0.0
    %3545 = vmatprep.subr.mxu0 0.0
    %3546 = vmatpush1.msra.mxu0 0.0
    %3547 = vmatprep.subr.mxu0 0.0
    %3548 = vmatpush1.msra.mxu0 0.0
    %3549 = vmatprep.subr.mxu0 0.0
    %3550 = vmatpush1.msra.mxu0 0.0
    %3551 = vmatprep.subr.mxu0 0.0
    %3552 = vmatpush1.msra.mxu0 0.0
    %3553 = vmatprep.subr.mxu0 0.0
    %3554 = vmatpush1.msra.mxu0 0.0
    %3555 = vmatprep.subr.mxu0 0.0
    %3556 = vmatpush1.msra.mxu0 0.0
    %3557 = vmatprep.subr.mxu0 0.0
    %3558 = vmatpush1.msra.mxu0 0.0
    %3559 = vmatprep.subr.mxu0 0.0
    %3560 = vmatpush1.msra.mxu0 0.0
    %3561 = vmatprep.mubr.f32.mxu0 0.0
    %3562 = vmatmul.mubr.f32.gmra.mrb[0].mxu0 %v3495
    %v3563 = vpop.f32.mrb[0].mxu0
    %v3564 = vadd.f32 0.0, %v3563
    %v3565 = vpop.f32.mrb[0].mxu0
    %3566 = vdwg.mxu0
    %v3567 = vadd.f32 %v3075, %v3564
    %v3568 = vmul.f32 %v3567, %v3079
    %v3569 = vtanh.pop %v3568
    %v3570 = vmul.f32 %v3569, %v3079
    %v3571 = vadd.f32 %v3570, %v3080
    %v3573 = vrot.slane %v3484, 6
    %v3575 = vmul.f32 %v3571, %v3573
    %3577 = vrot.lane.b32.xlu0 %v3571, 32
    %v3578 = vpop.permute.xlu0 %3577
    %v3580 = vmul.f32 %v3571, %v3578
    %3582 = vrot.lane.b32.xlu0 %v3580, 32
    %v3583 = vpop.permute.xlu0 %3582
    %v3585 = vadd.f32 %v3575, %v3583
    %v3586 = vtanh.pop %v3585
    %3588 = vrot.lane.b32.xlu0 %v3586, 32
    %v3589 = vpop.permute.xlu0 %3588
    %v3591 = vmul.f32 %v3571, %v3589
    %3593 = vrot.lane.b32.xlu0 %v3591, 64
    %v3594 = vpop.permute.xlu0 %3593
    %v3595 = vsel %vm2032, %v3594, 0
    %3597 = vmatprep.subr.mxu0 0.0
    %3598 = vmatpush1.msra.mxu0 %v3081
    %3599 = vmatprep.subr.mxu0 0.0
    %3600 = vmatpush1.msra.mxu0 %v3082
    %3601 = vmatprep.subr.mxu0 0.0
    %3602 = vmatpush1.msra.mxu0 %v3083
    %3603 = vmatprep.subr.mxu0 0.0
    %3604 = vmatpush1.msra.mxu0 %v3084
    %3605 = vmatprep.subr.mxu0 0.0
    %3606 = vmatpush1.msra.mxu0 0.0
    %3607 = vmatprep.subr.mxu0 0.0
    %3608 = vmatpush1.msra.mxu0 0.0
    %3609 = vmatprep.subr.mxu0 0.0
    %3610 = vmatpush1.msra.mxu0 0.0
    %3611 = vmatprep.subr.mxu0 0.0
    %3612 = vmatpush1.msra.mxu0 0.0
    %3613 = vmatprep.subr.mxu0 0.0
    %3614 = vmatpush1.msra.mxu0 0.0
    %3615 = vmatprep.subr.mxu0 0.0
    %3616 = vmatpush1.msra.mxu0 0.0
    %3617 = vmatprep.subr.mxu0 0.0
    %3618 = vmatpush1.msra.mxu0 0.0
    %3619 = vmatprep.subr.mxu0 0.0
    %3620 = vmatpush1.msra.mxu0 0.0
    %3621 = vmatprep.subr.mxu0 0.0
    %3622 = vmatpush1.msra.mxu0 0.0
    %3623 = vmatprep.subr.mxu0 0.0
    %3624 = vmatpush1.msra.mxu0 0.0
    %3625 = vmatprep.subr.mxu0 0.0
    %3626 = vmatpush1.msra.mxu0 0.0
    %3627 = vmatprep.subr.mxu0 0.0
    %3628 = vmatpush1.msra.mxu0 0.0
    %3629 = vmatprep.subr.mxu0 0.0
    %3630 = vmatpush1.msra.mxu0 0.0
    %3631 = vmatprep.subr.mxu0 0.0
    %3632 = vmatpush1.msra.mxu0 0.0
    %3633 = vmatprep.subr.mxu0 0.0
    %3634 = vmatpush1.msra.mxu0 0.0
    %3635 = vmatprep.subr.mxu0 0.0
    %3636 = vmatpush1.msra.mxu0 0.0
    %3637 = vmatprep.subr.mxu0 0.0
    %3638 = vmatpush1.msra.mxu0 0.0
    %3639 = vmatprep.subr.mxu0 0.0
    %3640 = vmatpush1.msra.mxu0 0.0
    %3641 = vmatprep.subr.mxu0 0.0
    %3642 = vmatpush1.msra.mxu0 0.0
    %3643 = vmatprep.subr.mxu0 0.0
    %3644 = vmatpush1.msra.mxu0 0.0
    %3645 = vmatprep.subr.mxu0 0.0
    %3646 = vmatpush1.msra.mxu0 0.0
    %3647 = vmatprep.subr.mxu0 0.0
    %3648 = vmatpush1.msra.mxu0 0.0
    %3649 = vmatprep.subr.mxu0 0.0
    %3650 = vmatpush1.msra.mxu0 0.0
    %3651 = vmatprep.subr.mxu0 0.0
    %3652 = vmatpush1.msra.mxu0 0.0
    %3653 = vmatprep.subr.mxu0 0.0
    %3654 = vmatpush1.msra.mxu0 0.0
    %3655 = vmatprep.subr.mxu0 0.0
    %3656 = vmatpush1.msra.mxu0 0.0
    %3657 = vmatprep.subr.mxu0 0.0
    %3658 = vmatpush1.msra.mxu0 0.0
    %3659 = vmatprep.subr.mxu0 0.0
    %3660 = vmatpush1.msra.mxu0 0.0
    %3661 = vmatprep.mubr.f32.mxu0 0.0
    %3662 = vmatmul.mubr.f32.gmra.mrb[0].mxu0 %v3595
    %v3663 = vpop.f32.mrb[0].mxu0
    %v3664 = vadd.f32 0.0, %v3663
    %v3665 = vpop.f32.mrb[0].mxu0
    %3666 = vdwg.mxu0
    %v3668 = vrot.slane %v3664, 6
    %v3670 = vadd.f32 %v3075, %v3668
    %v3671 = vmul.f32 %v3670, %v3079
    %v3672 = vtanh.pop %v3671
    %v3673 = vmul.f32 %v3672, %v3079
    %v3674 = vadd.f32 %v3673, %v3080
    %v3676 = vrot.slane %v3585, 6
    %v3678 = vmul.f32 %v3674, %v3676
    %3680 = vrot.lane.b32.xlu0 %v3674, 32
    %v3681 = vpop.permute.xlu0 %3680
    %v3683 = vmul.f32 %v3674, %v3681
    %3685 = vrot.lane.b32.xlu0 %v3683, 32
    %v3686 = vpop.permute.xlu0 %3685
    %v3688 = vadd.f32 %v3678, %v3686
    %v3689 = vtanh.pop %v3688
    %3691 = vrot.lane.b32.xlu0 %v3689, 32
    %v3692 = vpop.permute.xlu0 %3691
    %v3694 = vmul.f32 %v3674, %v3692
    %v3696 = vrot.slane %v3694, 2
    %3697 = vrot.lane.b32.xlu0 %v3696, 64
    %v3698 = vpop.permute.xlu0 %3697
    %v3699 = vsel %vm2032, %v3698, 0
    %3701 = vmatprep.subr.mxu0 0.0
    %3702 = vmatpush1.msra.mxu0 %v3081
    %3703 = vmatprep.subr.mxu0 0.0
    %3704 = vmatpush1.msra.mxu0 %v3082
    %3705 = vmatprep.subr.mxu0 0.0
    %3706 = vmatpush1.msra.mxu0 %v3083
    %3707 = vmatprep.subr.mxu0 0.0
    %3708 = vmatpush1.msra.mxu0 %v3084
    %3709 = vmatprep.subr.mxu0 0.0
    %3710 = vmatpush1.msra.mxu0 0.0
    %3711 = vmatprep.subr.mxu0 0.0
    %3712 = vmatpush1.msra.mxu0 0.0
    %3713 = vmatprep.subr.mxu0 0.0
    %3714 = vmatpush1.msra.mxu0 0.0
    %3715 = vmatprep.subr.mxu0 0.0
    %3716 = vmatpush1.msra.mxu0 0.0
    %3717 = vmatprep.subr.mxu0 0.0
    %3718 = vmatpush1.msra.mxu0 0.0
    %3719 = vmatprep.subr.mxu0 0.0
    %3720 = vmatpush1.msra.mxu0 0.0
    %3721 = vmatprep.subr.mxu0 0.0
    %3722 = vmatpush1.msra.mxu0 0.0
    %3723 = vmatprep.subr.mxu0 0.0
    %3724 = vmatpush1.msra.mxu0 0.0
    %3725 = vmatprep.subr.mxu0 0.0
    %3726 = vmatpush1.msra.mxu0 0.0
    %3727 = vmatprep.subr.mxu0 0.0
    %3728 = vmatpush1.msra.mxu0 0.0
    %3729 = vmatprep.subr.mxu0 0.0
    %3730 = vmatpush1.msra.mxu0 0.0
    %3731 = vmatprep.subr.mxu0 0.0
    %3732 = vmatpush1.msra.mxu0 0.0
    %3733 = vmatprep.subr.mxu0 0.0
    %3734 = vmatpush1.msra.mxu0 0.0
    %3735 = vmatprep.subr.mxu0 0.0
    %3736 = vmatpush1.msra.mxu0 0.0
    %3737 = vmatprep.subr.mxu0 0.0
    %3738 = vmatpush1.msra.mxu0 0.0
    %3739 = vmatprep.subr.mxu0 0.0
    %3740 = vmatpush1.msra.mxu0 0.0
    %3741 = vmatprep.subr.mxu0 0.0
    %3742 = vmatpush1.msra.mxu0 0.0
    %3743 = vmatprep.subr.mxu0 0.0
    %3744 = vmatpush1.msra.mxu0 0.0
    %3745 = vmatprep.subr.mxu0 0.0
    %3746 = vmatpush1.msra.mxu0 0.0
    %3747 = vmatprep.subr.mxu0 0.0
    %3748 = vmatpush1.msra.mxu0 0.0
    %3749 = vmatprep.subr.mxu0 0.0
    %3750 = vmatpush1.msra.mxu0 0.0
    %3751 = vmatprep.subr.mxu0 0.0
    %3752 = vmatpush1.msra.mxu0 0.0
    %3753 = vmatprep.subr.mxu0 0.0
    %3754 = vmatpush1.msra.mxu0 0.0
    %3755 = vmatprep.subr.mxu0 0.0
    %3756 = vmatpush1.msra.mxu0 0.0
    %3757 = vmatprep.subr.mxu0 0.0
    %3758 = vmatpush1.msra.mxu0 0.0
    %3759 = vmatprep.subr.mxu0 0.0
    %3760 = vmatpush1.msra.mxu0 0.0
    %3761 = vmatprep.subr.mxu0 0.0
    %3762 = vmatpush1.msra.mxu0 0.0
    %3763 = vmatprep.subr.mxu0 0.0
    %3764 = vmatpush1.msra.mxu0 0.0
    %3765 = vmatprep.mubr.f32.mxu0 0.0
    %3766 = vmatmul.mubr.f32.gmra.mrb[0].mxu0 %v3699
    %v3767 = vpop.f32.mrb[0].mxu0
    %v3768 = vadd.f32 0.0, %v3767
    %v3769 = vpop.f32.mrb[0].mxu0
    %3770 = vdwg.mxu0
    %v3772 = vrot.slane %v3768, 4
    %v3774 = vadd.f32 %v3075, %v3772
    %v3775 = vmul.f32 %v3774, %v3079
    %v3776 = vtanh.pop %v3775
    %v3777 = vmul.f32 %v3776, %v3079
    %v3778 = vadd.f32 %v3777, %v3080
    %v3780 = vrot.slane %v3688, 6
    %v3782 = vmul.f32 %v3778, %v3780
    %3784 = vrot.lane.b32.xlu0 %v3778, 32
    %v3785 = vpop.permute.xlu0 %3784
    %v3787 = vmul.f32 %v3778, %v3785
    %3789 = vrot.lane.b32.xlu0 %v3787, 32
    %v3790 = vpop.permute.xlu0 %3789
    %v3792 = vadd.f32 %v3782, %v3790
    %v3793 = vtanh.pop %v3792
    %3795 = vrot.lane.b32.xlu0 %v3793, 32
    %v3796 = vpop.permute.xlu0 %3795
    %v3798 = vmul.f32 %v3778, %v3796
    %v3800 = vrot.slane %v3798, 4
    %3801 = vrot.lane.b32.xlu0 %v3800, 64
    %v3802 = vpop.permute.xlu0 %3801
    %v3803 = vsel %vm2032, %v3802, 0
    %3805 = vmatprep.subr.mxu0 0.0
    %3806 = vmatpush1.msra.mxu0 %v3081
    %3807 = vmatprep.subr.mxu0 0.0
    %3808 = vmatpush1.msra.mxu0 %v3082
    %3809 = vmatprep.subr.mxu0 0.0
    %3810 = vmatpush1.msra.mxu0 %v3083
    %3811 = vmatprep.subr.mxu0 0.0
    %3812 = vmatpush1.msra.mxu0 %v3084
    %3813 = vmatprep.subr.mxu0 0.0
    %3814 = vmatpush1.msra.mxu0 0.0
    %3815 = vmatprep.subr.mxu0 0.0
    %3816 = vmatpush1.msra.mxu0 0.0
    %3817 = vmatprep.subr.mxu0 0.0
    %3818 = vmatpush1.msra.mxu0 0.0
    %3819 = vmatprep.subr.mxu0 0.0
    %3820 = vmatpush1.msra.mxu0 0.0
    %3821 = vmatprep.subr.mxu0 0.0
    %3822 = vmatpush1.msra.mxu0 0.0
    %3823 = vmatprep.subr.mxu0 0.0
    %3824 = vmatpush1.msra.mxu0 0.0
    %3825 = vmatprep.subr.mxu0 0.0
    %3826 = vmatpush1.msra.mxu0 0.0
    %3827 = vmatprep.subr.mxu0 0.0
    %3828 = vmatpush1.msra.mxu0 0.0
    %3829 = vmatprep.subr.mxu0 0.0
    %3830 = vmatpush1.msra.mxu0 0.0
    %3831 = vmatprep.subr.mxu0 0.0
    %3832 = vmatpush1.msra.mxu0 0.0
    %3833 = vmatprep.subr.mxu0 0.0
    %3834 = vmatpush1.msra.mxu0 0.0
    %3835 = vmatprep.subr.mxu0 0.0
    %3836 = vmatpush1.msra.mxu0 0.0
    %3837 = vmatprep.subr.mxu0 0.0
    %3838 = vmatpush1.msra.mxu0 0.0
    %3839 = vmatprep.subr.mxu0 0.0
    %3840 = vmatpush1.msra.mxu0 0.0
    %3841 = vmatprep.subr.mxu0 0.0
    %3842 = vmatpush1.msra.mxu0 0.0
    %3843 = vmatprep.subr.mxu0 0.0
    %3844 = vmatpush1.msra.mxu0 0.0
    %3845 = vmatprep.subr.mxu0 0.0
    %3846 = vmatpush1.msra.mxu0 0.0
    %3847 = vmatprep.subr.mxu0 0.0
    %3848 = vmatpush1.msra.mxu0 0.0
    %3849 = vmatprep.subr.mxu0 0.0
    %3850 = vmatpush1.msra.mxu0 0.0
    %3851 = vmatprep.subr.mxu0 0.0
    %3852 = vmatpush1.msra.mxu0 0.0
    %3853 = vmatprep.subr.mxu0 0.0
    %3854 = vmatpush1.msra.mxu0 0.0
    %3855 = vmatprep.subr.mxu0 0.0
    %3856 = vmatpush1.msra.mxu0 0.0
    %3857 = vmatprep.subr.mxu0 0.0
    %3858 = vmatpush1.msra.mxu0 0.0
    %3859 = vmatprep.subr.mxu0 0.0
    %3860 = vmatpush1.msra.mxu0 0.0
    %3861 = vmatprep.subr.mxu0 0.0
    %3862 = vmatpush1.msra.mxu0 0.0
    %3863 = vmatprep.subr.mxu0 0.0
    %3864 = vmatpush1.msra.mxu0 0.0
    %3865 = vmatprep.subr.mxu0 0.0
    %3866 = vmatpush1.msra.mxu0 0.0
    %3867 = vmatprep.subr.mxu0 0.0
    %3868 = vmatpush1.msra.mxu0 0.0
    %3869 = vmatprep.mubr.f32.mxu0 0.0
    %3870 = vmatmul.mubr.f32.gmra.mrb[0].mxu0 %v3803
    %v3871 = vpop.f32.mrb[0].mxu0
    %v3872 = vadd.f32 0.0, %v3871
    %v3873 = vpop.f32.mrb[0].mxu0
    %3874 = vdwg.mxu0
    %v3876 = vrot.slane %v3872, 2
    %v3878 = vadd.f32 %v3075, %v3876
    %v3879 = vmul.f32 %v3878, %v3079
    %v3880 = vtanh.pop %v3879
    %v3881 = vmul.f32 %v3880, %v3079
    %v3882 = vadd.f32 %v3881, %v3080
    %v3884 = vrot.slane %v3792, 6
    %v3886 = vmul.f32 %v3882, %v3884
    %3888 = vrot.lane.b32.xlu0 %v3882, 32
    %v3889 = vpop.permute.xlu0 %3888
    %v3891 = vmul.f32 %v3882, %v3889
    %3893 = vrot.lane.b32.xlu0 %v3891, 32
    %v3894 = vpop.permute.xlu0 %3893
    %v3896 = vadd.f32 %v3886, %v3894
    %v3897 = vtanh.pop %v3896
    %3899 = vrot.lane.b32.xlu0 %v3897, 32
    %v3900 = vpop.permute.xlu0 %3899
    %v3902 = vmul.f32 %v3882, %v3900
    %vm3903 = vcmask 1041408
    %v3904 = vsel %vm3903, %v3179, %v3282
    %v3905 = vsel %vm1323, %v3904, %v3386
    %vm3906 = vcmask 1045504
    %v3907 = vsel %vm3906, %v3905, %v3490
    %v3908 = vsel %vm3903, %v3591, %v3694
    %v3909 = vsel %vm1323, %v3908, %v3798
    %v3910 = vsel %vm3906, %v3909, %v3902
    %v3911 = vld [vmem:[%s10] sm:$0xff]
    %v3912 = vld [vmem:[%s10 + $0x8] sm:$0xff]
    %v3913 = vld [vmem:[%s10 + $0x10] sm:$0xff]
    %v3914 = vld [vmem:[%s10 + $0x18] sm:$0xff]
    %v3915 = vld [vmem:[%s12] sm:$0x1]
    %v3917 = vlaneseq
    %v3918 = vshrl.u32 %v3917, 7
    %v3919 = vsub.s32 0, %v3918
    %v3920 = vrot.slane %v3915, %v3919
    %3924 = vrot.lane.b32.xlu0 %v3907, 64
    %v3925 = vpop.permute.xlu0 %3924
    %3926 = vrot.lane.b32.xlu0 %v3910, 64
    %v3927 = vpop.permute.xlu0 %3926
    %v3928 = vsel %vm2032, %v3925, 0
    %v3930 = vsel %vm2032, %v3927, 0
    %3932 = vmatprep.subr.mxu0 0.0
    %3933 = vmatpush1.msra.mxu0 %v3911
    %3934 = vmatprep.subr.mxu0 0.0
    %3935 = vmatpush1.msra.mxu0 %v3912
    %3936 = vmatprep.subr.mxu0 0.0
    %3937 = vmatpush1.msra.mxu0 %v3913
    %3938 = vmatprep.subr.mxu0 0.0
    %3939 = vmatpush1.msra.mxu0 %v3914
    %3940 = vmatprep.subr.mxu0 0.0
    %3941 = vmatpush1.msra.mxu0 0.0
    %3942 = vmatprep.subr.mxu0 0.0
    %3943 = vmatpush1.msra.mxu0 0.0
    %3944 = vmatprep.subr.mxu0 0.0
    %3945 = vmatpush1.msra.mxu0 0.0
    %3946 = vmatprep.subr.mxu0 0.0
    %3947 = vmatpush1.msra.mxu0 0.0
    %3948 = vmatprep.subr.mxu0 0.0
    %3949 = vmatpush1.msra.mxu0 0.0
    %3950 = vmatprep.subr.mxu0 0.0
    %3951 = vmatpush1.msra.mxu0 0.0
    %3952 = vmatprep.subr.mxu0 0.0
    %3953 = vmatpush1.msra.mxu0 0.0
    %3954 = vmatprep.subr.mxu0 0.0
    %3955 = vmatpush1.msra.mxu0 0.0
    %3956 = vmatprep.subr.mxu0 0.0
    %3957 = vmatpush1.msra.mxu0 0.0
    %3958 = vmatprep.subr.mxu0 0.0
    %3959 = vmatpush1.msra.mxu0 0.0
    %3960 = vmatprep.subr.mxu0 0.0
    %3961 = vmatpush1.msra.mxu0 0.0
    %3962 = vmatprep.subr.mxu0 0.0
    %3963 = vmatpush1.msra.mxu0 0.0
    %3964 = vmatprep.subr.mxu0 0.0
    %3965 = vmatpush1.msra.mxu0 0.0
    %3966 = vmatprep.subr.mxu0 0.0
    %3967 = vmatpush1.msra.mxu0 0.0
    %3968 = vmatprep.subr.mxu0 0.0
    %3969 = vmatpush1.msra.mxu0 0.0
    %3970 = vmatprep.subr.mxu0 0.0
    %3971 = vmatpush1.msra.mxu0 0.0
    %3972 = vmatprep.subr.mxu0 0.0
    %3973 = vmatpush1.msra.mxu0 0.0
    %3974 = vmatprep.subr.mxu0 0.0
    %3975 = vmatpush1.msra.mxu0 0.0
    %3976 = vmatprep.subr.mxu0 0.0
    %3977 = vmatpush1.msra.mxu0 0.0
    %3978 = vmatprep.subr.mxu0 0.0
    %3979 = vmatpush1.msra.mxu0 0.0
    %3980 = vmatprep.subr.mxu0 0.0
    %3981 = vmatpush1.msra.mxu0 0.0
    %3982 = vmatprep.subr.mxu0 0.0
    %3983 = vmatpush1.msra.mxu0 0.0
    %3984 = vmatprep.subr.mxu0 0.0
    %3985 = vmatpush1.msra.mxu0 0.0
    %3986 = vmatprep.subr.mxu0 0.0
    %3987 = vmatpush1.msra.mxu0 0.0
    %3988 = vmatprep.subr.mxu0 0.0
    %3989 = vmatpush1.msra.mxu0 0.0
    %3990 = vmatprep.subr.mxu0 0.0
    %3991 = vmatpush1.msra.mxu0 0.0
    %3992 = vmatprep.subr.mxu0 0.0
    %3993 = vmatpush1.msra.mxu0 0.0
    %3994 = vmatprep.subr.mxu0 0.0
    %3995 = vmatpush1.msra.mxu0 0.0
    %3996 = vmatprep.mubr.f32.mxu0 0.0
    %3997 = vmatmul.mubr.f32.gmra.mrb[0].mxu0 %v3928
    %v3998 = vpop.f32.mrb[0].mxu0
    %v3999 = vadd.f32 %v3920, %v3998
    %v4000 = vpop.f32.mrb[0].mxu0
    %4001 = vmatprep.mubr.f32.mxu0 0.0
    %4002 = vmatmul.mubr.f32.gmra.mrb[0].mxu0 %v3930
    %v4003 = vpop.f32.mrb[0].mxu0
    %v4004 = vadd.f32 %v3920, %v4003
    %v4005 = vpop.f32.mrb[0].mxu0
    %4006 = vdwg.mxu0
    %v4007 = vld [vmem:[%s11] sm:$0xff]
    %v4008 = vld [vmem:[%s11 + $0x8] sm:$0xff]
    %v4009 = vld [vmem:[%s11 + $0x10] sm:$0xff]
    %v4010 = vld [vmem:[%s11 + $0x18] sm:$0xff]
    %4011 = vmatprep.subr.mxu0 0.0
    %4012 = vmatpush1.msra.mxu0 %v4007
    %4013 = vmatprep.subr.mxu0 0.0
    %4014 = vmatpush1.msra.mxu0 %v4008
    %4015 = vmatprep.subr.mxu0 0.0
    %4016 = vmatpush1.msra.mxu0 %v4009
    %4017 = vmatprep.subr.mxu0 0.0
    %4018 = vmatpush1.msra.mxu0 %v4010
    %4019 = vmatprep.subr.mxu0 0.0
    %4020 = vmatpush1.msra.mxu0 0.0
    %4021 = vmatprep.subr.mxu0 0.0
    %4022 = vmatpush1.msra.mxu0 0.0
    %4023 = vmatprep.subr.mxu0 0.0
    %4024 = vmatpush1.msra.mxu0 0.0
    %4025 = vmatprep.subr.mxu0 0.0
    %4026 = vmatpush1.msra.mxu0 0.0
    %4027 = vmatprep.subr.mxu0 0.0
    %4028 = vmatpush1.msra.mxu0 0.0
    %4029 = vmatprep.subr.mxu0 0.0
    %4030 = vmatpush1.msra.mxu0 0.0
    %4031 = vmatprep.subr.mxu0 0.0
    %4032 = vmatpush1.msra.mxu0 0.0
    %4033 = vmatprep.subr.mxu0 0.0
    %4034 = vmatpush1.msra.mxu0 0.0
    %4035 = vmatprep.subr.mxu0 0.0
    %4036 = vmatpush1.msra.mxu0 0.0
    %4037 = vmatprep.subr.mxu0 0.0
    %4038 = vmatpush1.msra.mxu0 0.0
    %4039 = vmatprep.subr.mxu0 0.0
    %4040 = vmatpush1.msra.mxu0 0.0
    %4041 = vmatprep.subr.mxu0 0.0
    %4042 = vmatpush1.msra.mxu0 0.0
    %4043 = vmatprep.subr.mxu0 0.0
    %4044 = vmatpush1.msra.mxu0 0.0
    %4045 = vmatprep.subr.mxu0 0.0
    %4046 = vmatpush1.msra.mxu0 0.0
    %4047 = vmatprep.subr.mxu0 0.0
    %4048 = vmatpush1.msra.mxu0 0.0
    %4049 = vmatprep.subr.mxu0 0.0
    %4050 = vmatpush1.msra.mxu0 0.0
    %4051 = vmatprep.subr.mxu0 0.0
    %4052 = vmatpush1.msra.mxu0 0.0
    %4053 = vmatprep.subr.mxu0 0.0
    %4054 = vmatpush1.msra.mxu0 0.0
    %4055 = vmatprep.subr.mxu0 0.0
    %4056 = vmatpush1.msra.mxu0 0.0
    %4057 = vmatprep.subr.mxu0 0.0
    %4058 = vmatpush1.msra.mxu0 0.0
    %4059 = vmatprep.subr.mxu0 0.0
    %4060 = vmatpush1.msra.mxu0 0.0
    %4061 = vmatprep.subr.mxu0 0.0
    %4062 = vmatpush1.msra.mxu0 0.0
    %4063 = vmatprep.subr.mxu0 0.0
    %4064 = vmatpush1.msra.mxu0 0.0
    %4065 = vmatprep.subr.mxu0 0.0
    %4066 = vmatpush1.msra.mxu0 0.0
    %4067 = vmatprep.subr.mxu0 0.0
    %4068 = vmatpush1.msra.mxu0 0.0
    %4069 = vmatprep.subr.mxu0 0.0
    %4070 = vmatpush1.msra.mxu0 0.0
    %4071 = vmatprep.subr.mxu0 0.0
    %4072 = vmatpush1.msra.mxu0 0.0
    %4073 = vmatprep.subr.mxu0 0.0
    %4074 = vmatpush1.msra.mxu0 0.0
    %4075 = vmatprep.mubr.f32.mxu0 0.0
    %4076 = vmatmul.mubr.f32.gmra.mrb[0].mxu0 %v3086
    %v4077 = vpop.f32.mrb[0].mxu0
    %v4078 = vadd.f32 0.0, %v4077
    %v4079 = vpop.f32.mrb[0].mxu0
    %4080 = vdwg.mxu0
    %v4081 = vadd.f32 %v3999, %v4078
    %v4082 = vmul.f32 %v4081, %v3079
    %v4083 = vtanh.pop %v4082
    %v4084 = vmul.f32 %v4083, %v3079
    %v4085 = vadd.f32 %v4084, %v3080
    %v4086 = vmul.f32 %v4085, 0.0
    %4088 = vrot.lane.b32.xlu0 %v4085, 32
    %v4089 = vpop.permute.xlu0 %4088
    %v4091 = vmul.f32 %v4085, %v4089
    %4093 = vrot.lane.b32.xlu0 %v4091, 32
    %v4094 = vpop.permute.xlu0 %4093
    %v4096 = vadd.f32 %v4086, %v4094
    %v4097 = vtanh.pop %v4096
    %4099 = vrot.lane.b32.xlu0 %v4097, 32
    %v4100 = vpop.permute.xlu0 %4099
    %v4102 = vmul.f32 %v4085, %v4100
    %4104 = vrot.lane.b32.xlu0 %v4102, 64
    %v4105 = vpop.permute.xlu0 %4104
    %v4106 = vsel %vm2032, %v4105, 0
    %4108 = vmatprep.subr.mxu0 0.0
    %4109 = vmatpush1.msra.mxu0 %v4007
    %4110 = vmatprep.subr.mxu0 0.0
    %4111 = vmatpush1.msra.mxu0 %v4008
    %4112 = vmatprep.subr.mxu0 0.0
    %4113 = vmatpush1.msra.mxu0 %v4009
    %4114 = vmatprep.subr.mxu0 0.0
    %4115 = vmatpush1.msra.mxu0 %v4010
    %4116 = vmatprep.subr.mxu0 0.0
    %4117 = vmatpush1.msra.mxu0 0.0
    %4118 = vmatprep.subr.mxu0 0.0
    %4119 = vmatpush1.msra.mxu0 0.0
    %4120 = vmatprep.subr.mxu0 0.0
    %4121 = vmatpush1.msra.mxu0 0.0
    %4122 = vmatprep.subr.mxu0 0.0
    %4123 = vmatpush1.msra.mxu0 0.0
    %4124 = vmatprep.subr.mxu0 0.0
    %4125 = vmatpush1.msra.mxu0 0.0
    %4126 = vmatprep.subr.mxu0 0.0
    %4127 = vmatpush1.msra.mxu0 0.0
    %4128 = vmatprep.subr.mxu0 0.0
    %4129 = vmatpush1.msra.mxu0 0.0
    %4130 = vmatprep.subr.mxu0 0.0
    %4131 = vmatpush1.msra.mxu0 0.0
    %4132 = vmatprep.subr.mxu0 0.0
    %4133 = vmatpush1.msra.mxu0 0.0
    %4134 = vmatprep.subr.mxu0 0.0
    %4135 = vmatpush1.msra.mxu0 0.0
    %4136 = vmatprep.subr.mxu0 0.0
    %4137 = vmatpush1.msra.mxu0 0.0
    %4138 = vmatprep.subr.mxu0 0.0
    %4139 = vmatpush1.msra.mxu0 0.0
    %4140 = vmatprep.subr.mxu0 0.0
    %4141 = vmatpush1.msra.mxu0 0.0
    %4142 = vmatprep.subr.mxu0 0.0
    %4143 = vmatpush1.msra.mxu0 0.0
    %4144 = vmatprep.subr.mxu0 0.0
    %4145 = vmatpush1.msra.mxu0 0.0
    %4146 = vmatprep.subr.mxu0 0.0
    %4147 = vmatpush1.msra.mxu0 0.0
    %4148 = vmatprep.subr.mxu0 0.0
    %4149 = vmatpush1.msra.mxu0 0.0
    %4150 = vmatprep.subr.mxu0 0.0
    %4151 = vmatpush1.msra.mxu0 0.0
    %4152 = vmatprep.subr.mxu0 0.0
    %4153 = vmatpush1.msra.mxu0 0.0
    %4154 = vmatprep.subr.mxu0 0.0
    %4155 = vmatpush1.msra.mxu0 0.0
    %4156 = vmatprep.subr.mxu0 0.0
    %4157 = vmatpush1.msra.mxu0 0.0
    %4158 = vmatprep.subr.mxu0 0.0
    %4159 = vmatpush1.msra.mxu0 0.0
    %4160 = vmatprep.subr.mxu0 0.0
    %4161 = vmatpush1.msra.mxu0 0.0
    %4162 = vmatprep.subr.mxu0 0.0
    %4163 = vmatpush1.msra.mxu0 0.0
    %4164 = vmatprep.subr.mxu0 0.0
    %4165 = vmatpush1.msra.mxu0 0.0
    %4166 = vmatprep.subr.mxu0 0.0
    %4167 = vmatpush1.msra.mxu0 0.0
    %4168 = vmatprep.subr.mxu0 0.0
    %4169 = vmatpush1.msra.mxu0 0.0
    %4170 = vmatprep.subr.mxu0 0.0
    %4171 = vmatpush1.msra.mxu0 0.0
    %4172 = vmatprep.mubr.f32.mxu0 0.0
    %4173 = vmatmul.mubr.f32.gmra.mrb[0].mxu0 %v4106
    %v4174 = vpop.f32.mrb[0].mxu0
    %v4175 = vadd.f32 0.0, %v4174
    %v4176 = vpop.f32.mrb[0].mxu0
    %4177 = vdwg.mxu0
    %v4179 = vrot.slane %v4175, 6
    %v4181 = vadd.f32 %v3999, %v4179
    %v4182 = vmul.f32 %v4181, %v3079
    %v4183 = vtanh.pop %v4182
    %v4184 = vmul.f32 %v4183, %v3079
    %v4185 = vadd.f32 %v4184, %v3080
    %v4187 = vrot.slane %v4096, 6
    %v4189 = vmul.f32 %v4185, %v4187
    %4191 = vrot.lane.b32.xlu0 %v4185, 32
    %v4192 = vpop.permute.xlu0 %4191
    %v4194 = vmul.f32 %v4185, %v4192
    %4196 = vrot.lane.b32.xlu0 %v4194, 32
    %v4197 = vpop.permute.xlu0 %4196
    %v4199 = vadd.f32 %v4189, %v4197
    %v4200 = vtanh.pop %v4199
    %4202 = vrot.lane.b32.xlu0 %v4200, 32
    %v4203 = vpop.permute.xlu0 %4202
    %v4205 = vmul.f32 %v4185, %v4203
    %v4207 = vrot.slane %v4205, 2
    %4208 = vrot.lane.b32.xlu0 %v4207, 64
    %v4209 = vpop.permute.xlu0 %4208
    %v4210 = vsel %vm2032, %v4209, 0
    %4212 = vmatprep.subr.mxu0 0.0
    %4213 = vmatpush1.msra.mxu0 %v4007
    %4214 = vmatprep.subr.mxu0 0.0
    %4215 = vmatpush1.msra.mxu0 %v4008
    %4216 = vmatprep.subr.mxu0 0.0
    %4217 = vmatpush1.msra.mxu0 %v4009
    %4218 = vmatprep.subr.mxu0 0.0
    %4219 = vmatpush1.msra.mxu0 %v4010
    %4220 = vmatprep.subr.mxu0 0.0
    %4221 = vmatpush1.msra.mxu0 0.0
    %4222 = vmatprep.subr.mxu0 0.0
    %4223 = vmatpush1.msra.mxu0 0.0
    %4224 = vmatprep.subr.mxu0 0.0
    %4225 = vmatpush1.msra.mxu0 0.0
    %4226 = vmatprep.subr.mxu0 0.0
    %4227 = vmatpush1.msra.mxu0 0.0
    %4228 = vmatprep.subr.mxu0 0.0
    %4229 = vmatpush1.msra.mxu0 0.0
    %4230 = vmatprep.subr.mxu0 0.0
    %4231 = vmatpush1.msra.mxu0 0.0
    %4232 = vmatprep.subr.mxu0 0.0
    %4233 = vmatpush1.msra.mxu0 0.0
    %4234 = vmatprep.subr.mxu0 0.0
    %4235 = vmatpush1.msra.mxu0 0.0
    %4236 = vmatprep.subr.mxu0 0.0
    %4237 = vmatpush1.msra.mxu0 0.0
    %4238 = vmatprep.subr.mxu0 0.0
    %4239 = vmatpush1.msra.mxu0 0.0
    %4240 = vmatprep.subr.mxu0 0.0
    %4241 = vmatpush1.msra.mxu0 0.0
    %4242 = vmatprep.subr.mxu0 0.0
    %4243 = vmatpush1.msra.mxu0 0.0
    %4244 = vmatprep.subr.mxu0 0.0
    %4245 = vmatpush1.msra.mxu0 0.0
    %4246 = vmatprep.subr.mxu0 0.0
    %4247 = vmatpush1.msra.mxu0 0.0
    %4248 = vmatprep.subr.mxu0 0.0
    %4249 = vmatpush1.msra.mxu0 0.0
    %4250 = vmatprep.subr.mxu0 0.0
    %4251 = vmatpush1.msra.mxu0 0.0
    %4252 = vmatprep.subr.mxu0 0.0
    %4253 = vmatpush1.msra.mxu0 0.0
    %4254 = vmatprep.subr.mxu0 0.0
    %4255 = vmatpush1.msra.mxu0 0.0
    %4256 = vmatprep.subr.mxu0 0.0
    %4257 = vmatpush1.msra.mxu0 0.0
    %4258 = vmatprep.subr.mxu0 0.0
    %4259 = vmatpush1.msra.mxu0 0.0
    %4260 = vmatprep.subr.mxu0 0.0
    %4261 = vmatpush1.msra.mxu0 0.0
    %4262 = vmatprep.subr.mxu0 0.0
    %4263 = vmatpush1.msra.mxu0 0.0
    %4264 = vmatprep.subr.mxu0 0.0
    %4265 = vmatpush1.msra.mxu0 0.0
    %4266 = vmatprep.subr.mxu0 0.0
    %4267 = vmatpush1.msra.mxu0 0.0
    %4268 = vmatprep.subr.mxu0 0.0
    %4269 = vmatpush1.msra.mxu0 0.0
    %4270 = vmatprep.subr.mxu0 0.0
    %4271 = vmatpush1.msra.mxu0 0.0
    %4272 = vmatprep.subr.mxu0 0.0
    %4273 = vmatpush1.msra.mxu0 0.0
    %4274 = vmatprep.subr.mxu0 0.0
    %4275 = vmatpush1.msra.mxu0 0.0
    %4276 = vmatprep.mubr.f32.mxu0 0.0
    %4277 = vmatmul.mubr.f32.gmra.mrb[0].mxu0 %v4210
    %v4278 = vpop.f32.mrb[0].mxu0
    %v4279 = vadd.f32 0.0, %v4278
    %v4280 = vpop.f32.mrb[0].mxu0
    %4281 = vdwg.mxu0
    %v4283 = vrot.slane %v4279, 4
    %v4285 = vadd.f32 %v3999, %v4283
    %v4286 = vmul.f32 %v4285, %v3079
    %v4287 = vtanh.pop %v4286
    %v4288 = vmul.f32 %v4287, %v3079
    %v4289 = vadd.f32 %v4288, %v3080
    %v4291 = vrot.slane %v4199, 6
    %v4293 = vmul.f32 %v4289, %v4291
    %4295 = vrot.lane.b32.xlu0 %v4289, 32
    %v4296 = vpop.permute.xlu0 %4295
    %v4298 = vmul.f32 %v4289, %v4296
    %4300 = vrot.lane.b32.xlu0 %v4298, 32
    %v4301 = vpop.permute.xlu0 %4300
    %v4303 = vadd.f32 %v4293, %v4301
    %v4304 = vtanh.pop %v4303
    %4306 = vrot.lane.b32.xlu0 %v4304, 32
    %v4307 = vpop.permute.xlu0 %4306
    %v4309 = vmul.f32 %v4289, %v4307
    %v4311 = vrot.slane %v4309, 4
    %4312 = vrot.lane.b32.xlu0 %v4311, 64
    %v4313 = vpop.permute.xlu0 %4312
    %v4314 = vsel %vm2032, %v4313, 0
    %4316 = vmatprep.subr.mxu0 0.0
    %4317 = vmatpush1.msra.mxu0 %v4007
    %4318 = vmatprep.subr.mxu0 0.0
    %4319 = vmatpush1.msra.mxu0 %v4008
    %4320 = vmatprep.subr.mxu0 0.0
    %4321 = vmatpush1.msra.mxu0 %v4009
    %4322 = vmatprep.subr.mxu0 0.0
    %4323 = vmatpush1.msra.mxu0 %v4010
    %4324 = vmatprep.subr.mxu0 0.0
    %4325 = vmatpush1.msra.mxu0 0.0
    %4326 = vmatprep.subr.mxu0 0.0
    %4327 = vmatpush1.msra.mxu0 0.0
    %4328 = vmatprep.subr.mxu0 0.0
    %4329 = vmatpush1.msra.mxu0 0.0
    %4330 = vmatprep.subr.mxu0 0.0
    %4331 = vmatpush1.msra.mxu0 0.0
    %4332 = vmatprep.subr.mxu0 0.0
    %4333 = vmatpush1.msra.mxu0 0.0
    %4334 = vmatprep.subr.mxu0 0.0
    %4335 = vmatpush1.msra.mxu0 0.0
    %4336 = vmatprep.subr.mxu0 0.0
    %4337 = vmatpush1.msra.mxu0 0.0
    %4338 = vmatprep.subr.mxu0 0.0
    %4339 = vmatpush1.msra.mxu0 0.0
    %4340 = vmatprep.subr.mxu0 0.0
    %4341 = vmatpush1.msra.mxu0 0.0
    %4342 = vmatprep.subr.mxu0 0.0
    %4343 = vmatpush1.msra.mxu0 0.0
    %4344 = vmatprep.subr.mxu0 0.0
    %4345 = vmatpush1.msra.mxu0 0.0
    %4346 = vmatprep.subr.mxu0 0.0
    %4347 = vmatpush1.msra.mxu0 0.0
    %4348 = vmatprep.subr.mxu0 0.0
    %4349 = vmatpush1.msra.mxu0 0.0
    %4350 = vmatprep.subr.mxu0 0.0
    %4351 = vmatpush1.msra.mxu0 0.0
    %4352 = vmatprep.subr.mxu0 0.0
    %4353 = vmatpush1.msra.mxu0 0.0
    %4354 = vmatprep.subr.mxu0 0.0
    %4355 = vmatpush1.msra.mxu0 0.0
    %4356 = vmatprep.subr.mxu0 0.0
    %4357 = vmatpush1.msra.mxu0 0.0
    %4358 = vmatprep.subr.mxu0 0.0
    %4359 = vmatpush1.msra.mxu0 0.0
    %4360 = vmatprep.subr.mxu0 0.0
    %4361 = vmatpush1.msra.mxu0 0.0
    %4362 = vmatprep.subr.mxu0 0.0
    %4363 = vmatpush1.msra.mxu0 0.0
    %4364 = vmatprep.subr.mxu0 0.0
    %4365 = vmatpush1.msra.mxu0 0.0
    %4366 = vmatprep.subr.mxu0 0.0
    %4367 = vmatpush1.msra.mxu0 0.0
    %4368 = vmatprep.subr.mxu0 0.0
    %4369 = vmatpush1.msra.mxu0 0.0
    %4370 = vmatprep.subr.mxu0 0.0
    %4371 = vmatpush1.msra.mxu0 0.0
    %4372 = vmatprep.subr.mxu0 0.0
    %4373 = vmatpush1.msra.mxu0 0.0
    %4374 = vmatprep.subr.mxu0 0.0
    %4375 = vmatpush1.msra.mxu0 0.0
    %4376 = vmatprep.subr.mxu0 0.0
    %4377 = vmatpush1.msra.mxu0 0.0
    %4378 = vmatprep.subr.mxu0 0.0
    %4379 = vmatpush1.msra.mxu0 0.0
    %4380 = vmatprep.mubr.f32.mxu0 0.0
    %4381 = vmatmul.mubr.f32.gmra.mrb[0].mxu0 %v4314
    %v4382 = vpop.f32.mrb[0].mxu0
    %v4383 = vadd.f32 0.0, %v4382
    %v4384 = vpop.f32.mrb[0].mxu0
    %4385 = vdwg.mxu0
    %v4387 = vrot.slane %v4383, 2
    %v4389 = vadd.f32 %v3999, %v4387
    %v4390 = vmul.f32 %v4389, %v3079
    %v4391 = vtanh.pop %v4390
    %v4392 = vmul.f32 %v4391, %v3079
    %v4393 = vadd.f32 %v4392, %v3080
    %v4395 = vrot.slane %v4303, 6
    %v4397 = vmul.f32 %v4393, %v4395
    %4399 = vrot.lane.b32.xlu0 %v4393, 32
    %v4400 = vpop.permute.xlu0 %4399
    %v4402 = vmul.f32 %v4393, %v4400
    %4404 = vrot.lane.b32.xlu0 %v4402, 32
    %v4405 = vpop.permute.xlu0 %4404
    %v4407 = vadd.f32 %v4397, %v4405
    %v4408 = vtanh.pop %v4407
    %4410 = vrot.lane.b32.xlu0 %v4408, 32
    %v4411 = vpop.permute.xlu0 %4410
    %v4413 = vmul.f32 %v4393, %v4411
    %v4415 = vrot.slane %v4413, 6
    %4416 = vrot.lane.b32.xlu0 %v4415, 64
    %v4417 = vpop.permute.xlu0 %4416
    %v4418 = vsel %vm2032, %v4417, 0
    %4420 = vmatprep.subr.mxu0 0.0
    %4421 = vmatpush1.msra.mxu0 %v4007
    %4422 = vmatprep.subr.mxu0 0.0
    %4423 = vmatpush1.msra.mxu0 %v4008
    %4424 = vmatprep.subr.mxu0 0.0
    %4425 = vmatpush1.msra.mxu0 %v4009
    %4426 = vmatprep.subr.mxu0 0.0
    %4427 = vmatpush1.msra.mxu0 %v4010
    %4428 = vmatprep.subr.mxu0 0.0
    %4429 = vmatpush1.msra.mxu0 0.0
    %4430 = vmatprep.subr.mxu0 0.0
    %4431 = vmatpush1.msra.mxu0 0.0
    %4432 = vmatprep.subr.mxu0 0.0
    %4433 = vmatpush1.msra.mxu0 0.0
    %4434 = vmatprep.subr.mxu0 0.0
    %4435 = vmatpush1.msra.mxu0 0.0
    %4436 = vmatprep.subr.mxu0 0.0
    %4437 = vmatpush1.msra.mxu0 0.0
    %4438 = vmatprep.subr.mxu0 0.0
    %4439 = vmatpush1.msra.mxu0 0.0
    %4440 = vmatprep.subr.mxu0 0.0
    %4441 = vmatpush1.msra.mxu0 0.0
    %4442 = vmatprep.subr.mxu0 0.0
    %4443 = vmatpush1.msra.mxu0 0.0
    %4444 = vmatprep.subr.mxu0 0.0
    %4445 = vmatpush1.msra.mxu0 0.0
    %4446 = vmatprep.subr.mxu0 0.0
    %4447 = vmatpush1.msra.mxu0 0.0
    %4448 = vmatprep.subr.mxu0 0.0
    %4449 = vmatpush1.msra.mxu0 0.0
    %4450 = vmatprep.subr.mxu0 0.0
    %4451 = vmatpush1.msra.mxu0 0.0
    %4452 = vmatprep.subr.mxu0 0.0
    %4453 = vmatpush1.msra.mxu0 0.0
    %4454 = vmatprep.subr.mxu0 0.0
    %4455 = vmatpush1.msra.mxu0 0.0
    %4456 = vmatprep.subr.mxu0 0.0
    %4457 = vmatpush1.msra.mxu0 0.0
    %4458 = vmatprep.subr.mxu0 0.0
    %4459 = vmatpush1.msra.mxu0 0.0
    %4460 = vmatprep.subr.mxu0 0.0
    %4461 = vmatpush1.msra.mxu0 0.0
    %4462 = vmatprep.subr.mxu0 0.0
    %4463 = vmatpush1.msra.mxu0 0.0
    %4464 = vmatprep.subr.mxu0 0.0
    %4465 = vmatpush1.msra.mxu0 0.0
    %4466 = vmatprep.subr.mxu0 0.0
    %4467 = vmatpush1.msra.mxu0 0.0
    %4468 = vmatprep.subr.mxu0 0.0
    %4469 = vmatpush1.msra.mxu0 0.0
    %4470 = vmatprep.subr.mxu0 0.0
    %4471 = vmatpush1.msra.mxu0 0.0
    %4472 = vmatprep.subr.mxu0 0.0
    %4473 = vmatpush1.msra.mxu0 0.0
    %4474 = vmatprep.subr.mxu0 0.0
    %4475 = vmatpush1.msra.mxu0 0.0
    %4476 = vmatprep.subr.mxu0 0.0
    %4477 = vmatpush1.msra.mxu0 0.0
    %4478 = vmatprep.subr.mxu0 0.0
    %4479 = vmatpush1.msra.mxu0 0.0
    %4480 = vmatprep.subr.mxu0 0.0
    %4481 = vmatpush1.msra.mxu0 0.0
    %4482 = vmatprep.subr.mxu0 0.0
    %4483 = vmatpush1.msra.mxu0 0.0
    %4484 = vmatprep.mubr.f32.mxu0 0.0
    %4485 = vmatmul.mubr.f32.gmra.mrb[0].mxu0 %v4418
    %v4486 = vpop.f32.mrb[0].mxu0
    %v4487 = vadd.f32 0.0, %v4486
    %v4488 = vpop.f32.mrb[0].mxu0
    %4489 = vdwg.mxu0
    %v4490 = vadd.f32 %v4004, %v4487
    %v4491 = vmul.f32 %v4490, %v3079
    %v4492 = vtanh.pop %v4491
    %v4493 = vmul.f32 %v4492, %v3079
    %v4494 = vadd.f32 %v4493, %v3080
    %v4496 = vrot.slane %v4407, 6
    %v4498 = vmul.f32 %v4494, %v4496
    %4500 = vrot.lane.b32.xlu0 %v4494, 32
    %v4501 = vpop.permute.xlu0 %4500
    %v4503 = vmul.f32 %v4494, %v4501
    %4505 = vrot.lane.b32.xlu0 %v4503, 32
    %v4506 = vpop.permute.xlu0 %4505
    %v4508 = vadd.f32 %v4498, %v4506
    %v4509 = vtanh.pop %v4508
    %4511 = vrot.lane.b32.xlu0 %v4509, 32
    %v4512 = vpop.permute.xlu0 %4511
    %v4514 = vmul.f32 %v4494, %v4512
    %4516 = vrot.lane.b32.xlu0 %v4514, 64
    %v4517 = vpop.permute.xlu0 %4516
    %v4518 = vsel %vm2032, %v4517, 0
    %4520 = vmatprep.subr.mxu0 0.0
    %4521 = vmatpush1.msra.mxu0 %v4007
    %4522 = vmatprep.subr.mxu0 0.0
    %4523 = vmatpush1.msra.mxu0 %v4008
    %4524 = vmatprep.subr.mxu0 0.0
    %4525 = vmatpush1.msra.mxu0 %v4009
    %4526 = vmatprep.subr.mxu0 0.0
    %4527 = vmatpush1.msra.mxu0 %v4010
    %4528 = vmatprep.subr.mxu0 0.0
    %4529 = vmatpush1.msra.mxu0 0.0
    %4530 = vmatprep.subr.mxu0 0.0
    %4531 = vmatpush1.msra.mxu0 0.0
    %4532 = vmatprep.subr.mxu0 0.0
    %4533 = vmatpush1.msra.mxu0 0.0
    %4534 = vmatprep.subr.mxu0 0.0
    %4535 = vmatpush1.msra.mxu0 0.0
    %4536 = vmatprep.subr.mxu0 0.0
    %4537 = vmatpush1.msra.mxu0 0.0
    %4538 = vmatprep.subr.mxu0 0.0
    %4539 = vmatpush1.msra.mxu0 0.0
    %4540 = vmatprep.subr.mxu0 0.0
    %4541 = vmatpush1.msra.mxu0 0.0
    %4542 = vmatprep.subr.mxu0 0.0
    %4543 = vmatpush1.msra.mxu0 0.0
    %4544 = vmatprep.subr.mxu0 0.0
    %4545 = vmatpush1.msra.mxu0 0.0
    %4546 = vmatprep.subr.mxu0 0.0
    %4547 = vmatpush1.msra.mxu0 0.0
    %4548 = vmatprep.subr.mxu0 0.0
    %4549 = vmatpush1.msra.mxu0 0.0
    %4550 = vmatprep.subr.mxu0 0.0
    %4551 = vmatpush1.msra.mxu0 0.0
    %4552 = vmatprep.subr.mxu0 0.0
    %4553 = vmatpush1.msra.mxu0 0.0
    %4554 = vmatprep.subr.mxu0 0.0
    %4555 = vmatpush1.msra.mxu0 0.0
    %4556 = vmatprep.subr.mxu0 0.0
    %4557 = vmatpush1.msra.mxu0 0.0
    %4558 = vmatprep.subr.mxu0 0.0
    %4559 = vmatpush1.msra.mxu0 0.0
    %4560 = vmatprep.subr.mxu0 0.0
    %4561 = vmatpush1.msra.mxu0 0.0
    %4562 = vmatprep.subr.mxu0 0.0
    %4563 = vmatpush1.msra.mxu0 0.0
    %4564 = vmatprep.subr.mxu0 0.0
    %4565 = vmatpush1.msra.mxu0 0.0
    %4566 = vmatprep.subr.mxu0 0.0
    %4567 = vmatpush1.msra.mxu0 0.0
    %4568 = vmatprep.subr.mxu0 0.0
    %4569 = vmatpush1.msra.mxu0 0.0
    %4570 = vmatprep.subr.mxu0 0.0
    %4571 = vmatpush1.msra.mxu0 0.0
    %4572 = vmatprep.subr.mxu0 0.0
    %4573 = vmatpush1.msra.mxu0 0.0
    %4574 = vmatprep.subr.mxu0 0.0
    %4575 = vmatpush1.msra.mxu0 0.0
    %4576 = vmatprep.subr.mxu0 0.0
    %4577 = vmatpush1.msra.mxu0 0.0
    %4578 = vmatprep.subr.mxu0 0.0
    %4579 = vmatpush1.msra.mxu0 0.0
    %4580 = vmatprep.subr.mxu0 0.0
    %4581 = vmatpush1.msra.mxu0 0.0
    %4582 = vmatprep.subr.mxu0 0.0
    %4583 = vmatpush1.msra.mxu0 0.0
    %4584 = vmatprep.mubr.f32.mxu0 0.0
    %4585 = vmatmul.mubr.f32.gmra.mrb[0].mxu0 %v4518
    %v4586 = vpop.f32.mrb[0].mxu0
    %v4587 = vadd.f32 0.0, %v4586
    %v4588 = vpop.f32.mrb[0].mxu0
    %4589 = vdwg.mxu0
    %v4591 = vrot.slane %v4587, 6
    %v4593 = vadd.f32 %v4004, %v4591
    %v4594 = vmul.f32 %v4593, %v3079
    %v4595 = vtanh.pop %v4594
    %v4596 = vmul.f32 %v4595, %v3079
    %v4597 = vadd.f32 %v4596, %v3080
    %v4599 = vrot.slane %v4508, 6
    %v4601 = vmul.f32 %v4597, %v4599
    %4603 = vrot.lane.b32.xlu0 %v4597, 32
    %v4604 = vpop.permute.xlu0 %4603
    %v4606 = vmul.f32 %v4597, %v4604
    %4608 = vrot.lane.b32.xlu0 %v4606, 32
    %v4609 = vpop.permute.xlu0 %4608
    %v4611 = vadd.f32 %v4601, %v4609
    %v4612 = vtanh.pop %v4611
    %4614 = vrot.lane.b32.xlu0 %v4612, 32
    %v4615 = vpop.permute.xlu0 %4614
    %v4617 = vmul.f32 %v4597, %v4615
    %v4619 = vrot.slane %v4617, 2
    %4620 = vrot.lane.b32.xlu0 %v4619, 64
    %v4621 = vpop.permute.xlu0 %4620
    %v4622 = vsel %vm2032, %v4621, 0
    %4624 = vmatprep.subr.mxu0 0.0
    %4625 = vmatpush1.msra.mxu0 %v4007
    %4626 = vmatprep.subr.mxu0 0.0
    %4627 = vmatpush1.msra.mxu0 %v4008
    %4628 = vmatprep.subr.mxu0 0.0
    %4629 = vmatpush1.msra.mxu0 %v4009
    %4630 = vmatprep.subr.mxu0 0.0
    %4631 = vmatpush1.msra.mxu0 %v4010
    %4632 = vmatprep.subr.mxu0 0.0
    %4633 = vmatpush1.msra.mxu0 0.0
    %4634 = vmatprep.subr.mxu0 0.0
    %4635 = vmatpush1.msra.mxu0 0.0
    %4636 = vmatprep.subr.mxu0 0.0
    %4637 = vmatpush1.msra.mxu0 0.0
    %4638 = vmatprep.subr.mxu0 0.0
    %4639 = vmatpush1.msra.mxu0 0.0
    %4640 = vmatprep.subr.mxu0 0.0
    %4641 = vmatpush1.msra.mxu0 0.0
    %4642 = vmatprep.subr.mxu0 0.0
    %4643 = vmatpush1.msra.mxu0 0.0
    %4644 = vmatprep.subr.mxu0 0.0
    %4645 = vmatpush1.msra.mxu0 0.0
    %4646 = vmatprep.subr.mxu0 0.0
    %4647 = vmatpush1.msra.mxu0 0.0
    %4648 = vmatprep.subr.mxu0 0.0
    %4649 = vmatpush1.msra.mxu0 0.0
    %4650 = vmatprep.subr.mxu0 0.0
    %4651 = vmatpush1.msra.mxu0 0.0
    %4652 = vmatprep.subr.mxu0 0.0
    %4653 = vmatpush1.msra.mxu0 0.0
    %4654 = vmatprep.subr.mxu0 0.0
    %4655 = vmatpush1.msra.mxu0 0.0
    %4656 = vmatprep.subr.mxu0 0.0
    %4657 = vmatpush1.msra.mxu0 0.0
    %4658 = vmatprep.subr.mxu0 0.0
    %4659 = vmatpush1.msra.mxu0 0.0
    %4660 = vmatprep.subr.mxu0 0.0
    %4661 = vmatpush1.msra.mxu0 0.0
    %4662 = vmatprep.subr.mxu0 0.0
    %4663 = vmatpush1.msra.mxu0 0.0
    %4664 = vmatprep.subr.mxu0 0.0
    %4665 = vmatpush1.msra.mxu0 0.0
    %4666 = vmatprep.subr.mxu0 0.0
    %4667 = vmatpush1.msra.mxu0 0.0
    %4668 = vmatprep.subr.mxu0 0.0
    %4669 = vmatpush1.msra.mxu0 0.0
    %4670 = vmatprep.subr.mxu0 0.0
    %4671 = vmatpush1.msra.mxu0 0.0
    %4672 = vmatprep.subr.mxu0 0.0
    %4673 = vmatpush1.msra.mxu0 0.0
    %4674 = vmatprep.subr.mxu0 0.0
    %4675 = vmatpush1.msra.mxu0 0.0
    %4676 = vmatprep.subr.mxu0 0.0
    %4677 = vmatpush1.msra.mxu0 0.0
    %4678 = vmatprep.subr.mxu0 0.0
    %4679 = vmatpush1.msra.mxu0 0.0
    %4680 = vmatprep.subr.mxu0 0.0
    %4681 = vmatpush1.msra.mxu0 0.0
    %4682 = vmatprep.subr.mxu0 0.0
    %4683 = vmatpush1.msra.mxu0 0.0
    %4684 = vmatprep.subr.mxu0 0.0
    %4685 = vmatpush1.msra.mxu0 0.0
    %4686 = vmatprep.subr.mxu0 0.0
    %4687 = vmatpush1.msra.mxu0 0.0
    %4688 = vmatprep.mubr.f32.mxu0 0.0
    %4689 = vmatmul.mubr.f32.gmra.mrb[0].mxu0 %v4622
    %v4690 = vpop.f32.mrb[0].mxu0
    %v4691 = vadd.f32 0.0, %v4690
    %v4692 = vpop.f32.mrb[0].mxu0
    %4693 = vdwg.mxu0
    %v4695 = vrot.slane %v4691, 4
    %v4697 = vadd.f32 %v4004, %v4695
    %v4698 = vmul.f32 %v4697, %v3079
    %v4699 = vtanh.pop %v4698
    %v4700 = vmul.f32 %v4699, %v3079
    %v4701 = vadd.f32 %v4700, %v3080
    %v4703 = vrot.slane %v4611, 6
    %v4705 = vmul.f32 %v4701, %v4703
    %4707 = vrot.lane.b32.xlu0 %v4701, 32
    %v4708 = vpop.permute.xlu0 %4707
    %v4710 = vmul.f32 %v4701, %v4708
    %4712 = vrot.lane.b32.xlu0 %v4710, 32
    %v4713 = vpop.permute.xlu0 %4712
    %v4715 = vadd.f32 %v4705, %v4713
    %v4716 = vtanh.pop %v4715
    %4718 = vrot.lane.b32.xlu0 %v4716, 32
    %v4719 = vpop.permute.xlu0 %4718
    %v4721 = vmul.f32 %v4701, %v4719
    %v4723 = vrot.slane %v4721, 4
    %4724 = vrot.lane.b32.xlu0 %v4723, 64
    %v4725 = vpop.permute.xlu0 %4724
    %v4726 = vsel %vm2032, %v4725, 0
    %4728 = vmatprep.subr.mxu0 0.0
    %4729 = vmatpush1.msra.mxu0 %v4007
    %4730 = vmatprep.subr.mxu0 0.0
    %4731 = vmatpush1.msra.mxu0 %v4008
    %4732 = vmatprep.subr.mxu0 0.0
    %4733 = vmatpush1.msra.mxu0 %v4009
    %4734 = vmatprep.subr.mxu0 0.0
    %4735 = vmatpush1.msra.mxu0 %v4010
    %4736 = vmatprep.subr.mxu0 0.0
    %4737 = vmatpush1.msra.mxu0 0.0
    %4738 = vmatprep.subr.mxu0 0.0
    %4739 = vmatpush1.msra.mxu0 0.0
    %4740 = vmatprep.subr.mxu0 0.0
    %4741 = vmatpush1.msra.mxu0 0.0
    %4742 = vmatprep.subr.mxu0 0.0
    %4743 = vmatpush1.msra.mxu0 0.0
    %4744 = vmatprep.subr.mxu0 0.0
    %4745 = vmatpush1.msra.mxu0 0.0
    %4746 = vmatprep.subr.mxu0 0.0
    %4747 = vmatpush1.msra.mxu0 0.0
    %4748 = vmatprep.subr.mxu0 0.0
    %4749 = vmatpush1.msra.mxu0 0.0
    %4750 = vmatprep.subr.mxu0 0.0
    %4751 = vmatpush1.msra.mxu0 0.0
    %4752 = vmatprep.subr.mxu0 0.0
    %4753 = vmatpush1.msra.mxu0 0.0
    %4754 = vmatprep.subr.mxu0 0.0
    %4755 = vmatpush1.msra.mxu0 0.0
    %4756 = vmatprep.subr.mxu0 0.0
    %4757 = vmatpush1.msra.mxu0 0.0
    %4758 = vmatprep.subr.mxu0 0.0
    %4759 = vmatpush1.msra.mxu0 0.0
    %4760 = vmatprep.subr.mxu0 0.0
    %4761 = vmatpush1.msra.mxu0 0.0
    %4762 = vmatprep.subr.mxu0 0.0
    %4763 = vmatpush1.msra.mxu0 0.0
    %4764 = vmatprep.subr.mxu0 0.0
    %4765 = vmatpush1.msra.mxu0 0.0
    %4766 = vmatprep.subr.mxu0 0.0
    %4767 = vmatpush1.msra.mxu0 0.0
    %4768 = vmatprep.subr.mxu0 0.0
    %4769 = vmatpush1.msra.mxu0 0.0
    %4770 = vmatprep.subr.mxu0 0.0
    %4771 = vmatpush1.msra.mxu0 0.0
    %4772 = vmatprep.subr.mxu0 0.0
    %4773 = vmatpush1.msra.mxu0 0.0
    %4774 = vmatprep.subr.mxu0 0.0
    %4775 = vmatpush1.msra.mxu0 0.0
    %4776 = vmatprep.subr.mxu0 0.0
    %4777 = vmatpush1.msra.mxu0 0.0
    %4778 = vmatprep.subr.mxu0 0.0
    %4779 = vmatpush1.msra.mxu0 0.0
    %4780 = vmatprep.subr.mxu0 0.0
    %4781 = vmatpush1.msra.mxu0 0.0
    %4782 = vmatprep.subr.mxu0 0.0
    %4783 = vmatpush1.msra.mxu0 0.0
    %4784 = vmatprep.subr.mxu0 0.0
    %4785 = vmatpush1.msra.mxu0 0.0
    %4786 = vmatprep.subr.mxu0 0.0
    %4787 = vmatpush1.msra.mxu0 0.0
    %4788 = vmatprep.subr.mxu0 0.0
    %4789 = vmatpush1.msra.mxu0 0.0
    %4790 = vmatprep.subr.mxu0 0.0
    %4791 = vmatpush1.msra.mxu0 0.0
    %4792 = vmatprep.mubr.f32.mxu0 0.0
    %4793 = vmatmul.mubr.f32.gmra.mrb[0].mxu0 %v4726
    %v4794 = vpop.f32.mrb[0].mxu0
    %v4795 = vadd.f32 0.0, %v4794
    %v4796 = vpop.f32.mrb[0].mxu0
    %4797 = vdwg.mxu0
    %v4799 = vrot.slane %v4795, 2
    %v4801 = vadd.f32 %v4004, %v4799
    %v4802 = vmul.f32 %v4801, %v3079
    %v4803 = vtanh.pop %v4802
    %v4804 = vmul.f32 %v4803, %v3079
    %v4805 = vadd.f32 %v4804, %v3080
    %v4807 = vrot.slane %v4715, 6
    %v4809 = vmul.f32 %v4805, %v4807
    %4811 = vrot.lane.b32.xlu0 %v4805, 32
    %v4812 = vpop.permute.xlu0 %4811
    %v4814 = vmul.f32 %v4805, %v4812
    %4816 = vrot.lane.b32.xlu0 %v4814, 32
    %v4817 = vpop.permute.xlu0 %4816
    %v4819 = vadd.f32 %v4809, %v4817
    %v4820 = vtanh.pop %v4819
    %4822 = vrot.lane.b32.xlu0 %v4820, 32
    %v4823 = vpop.permute.xlu0 %4822
    %v4825 = vmul.f32 %v4805, %v4823
    %v4826 = vsel %vm3903, %v4102, %v4205
    %v4827 = vsel %vm1323, %v4826, %v4309
    %v4828 = vsel %vm3906, %v4827, %v4413
    %v4829 = vsel %vm3903, %v4514, %v4617
    %v4830 = vsel %vm1323, %v4829, %v4721
    %v4831 = vsel %vm3906, %v4830, %v4825
    %v4832 = vld [vmem:[%s13] sm:$0xff]
    %v4833 = vld [vmem:[%s13 + $0x8] sm:$0xff]
    %v4834 = vld [vmem:[%s13 + $0x10] sm:$0xff]
    %v4835 = vld [vmem:[%s13 + $0x18] sm:$0xff]
    %v4836 = vld [vmem:[%s15] sm:$0x1]
    %v4838 = vlaneseq
    %v4839 = vshrl.u32 %v4838, 7
    %v4840 = vsub.s32 0, %v4839
    %v4841 = vrot.slane %v4836, %v4840
    %4845 = vrot.lane.b32.xlu0 %v4828, 64
    %v4846 = vpop.permute.xlu0 %4845
    %4847 = vrot.lane.b32.xlu0 %v4831, 64
    %v4848 = vpop.permute.xlu0 %4847
    %v4849 = vsel %vm2032, %v4846, 0
    %v4851 = vsel %vm2032, %v4848, 0
    %4853 = vmatprep.subr.mxu0 0.0
    %4854 = vmatpush1.msra.mxu0 %v4832
    %4855 = vmatprep.subr.mxu0 0.0
    %4856 = vmatpush1.msra.mxu0 %v4833
    %4857 = vmatprep.subr.mxu0 0.0
    %4858 = vmatpush1.msra.mxu0 %v4834
    %4859 = vmatprep.subr.mxu0 0.0
    %4860 = vmatpush1.msra.mxu0 %v4835
    %4861 = vmatprep.subr.mxu0 0.0
    %4862 = vmatpush1.msra.mxu0 0.0
    %4863 = vmatprep.subr.mxu0 0.0
    %4864 = vmatpush1.msra.mxu0 0.0
    %4865 = vmatprep.subr.mxu0 0.0
    %4866 = vmatpush1.msra.mxu0 0.0
    %4867 = vmatprep.subr.mxu0 0.0
    %4868 = vmatpush1.msra.mxu0 0.0
    %4869 = vmatprep.subr.mxu0 0.0
    %4870 = vmatpush1.msra.mxu0 0.0
    %4871 = vmatprep.subr.mxu0 0.0
    %4872 = vmatpush1.msra.mxu0 0.0
    %4873 = vmatprep.subr.mxu0 0.0
    %4874 = vmatpush1.msra.mxu0 0.0
    %4875 = vmatprep.subr.mxu0 0.0
    %4876 = vmatpush1.msra.mxu0 0.0
    %4877 = vmatprep.subr.mxu0 0.0
    %4878 = vmatpush1.msra.mxu0 0.0
    %4879 = vmatprep.subr.mxu0 0.0
    %4880 = vmatpush1.msra.mxu0 0.0
    %4881 = vmatprep.subr.mxu0 0.0
    %4882 = vmatpush1.msra.mxu0 0.0
    %4883 = vmatprep.subr.mxu0 0.0
    %4884 = vmatpush1.msra.mxu0 0.0
    %4885 = vmatprep.subr.mxu0 0.0
    %4886 = vmatpush1.msra.mxu0 0.0
    %4887 = vmatprep.subr.mxu0 0.0
    %4888 = vmatpush1.msra.mxu0 0.0
    %4889 = vmatprep.subr.mxu0 0.0
    %4890 = vmatpush1.msra.mxu0 0.0
    %4891 = vmatprep.subr.mxu0 0.0
    %4892 = vmatpush1.msra.mxu0 0.0
    %4893 = vmatprep.subr.mxu0 0.0
    %4894 = vmatpush1.msra.mxu0 0.0
    %4895 = vmatprep.subr.mxu0 0.0
    %4896 = vmatpush1.msra.mxu0 0.0
    %4897 = vmatprep.subr.mxu0 0.0
    %4898 = vmatpush1.msra.mxu0 0.0
    %4899 = vmatprep.subr.mxu0 0.0
    %4900 = vmatpush1.msra.mxu0 0.0
    %4901 = vmatprep.subr.mxu0 0.0
    %4902 = vmatpush1.msra.mxu0 0.0
    %4903 = vmatprep.subr.mxu0 0.0
    %4904 = vmatpush1.msra.mxu0 0.0
    %4905 = vmatprep.subr.mxu0 0.0
    %4906 = vmatpush1.msra.mxu0 0.0
    %4907 = vmatprep.subr.mxu0 0.0
    %4908 = vmatpush1.msra.mxu0 0.0
    %4909 = vmatprep.subr.mxu0 0.0
    %4910 = vmatpush1.msra.mxu0 0.0
    %4911 = vmatprep.subr.mxu0 0.0
    %4912 = vmatpush1.msra.mxu0 0.0
    %4913 = vmatprep.subr.mxu0 0.0
    %4914 = vmatpush1.msra.mxu0 0.0
    %4915 = vmatprep.subr.mxu0 0.0
    %4916 = vmatpush1.msra.mxu0 0.0
    %4917 = vmatprep.mubr.f32.mxu0 0.0
    %4918 = vmatmul.mubr.f32.gmra.mrb[0].mxu0 %v4849
    %v4919 = vpop.f32.mrb[0].mxu0
    %v4920 = vadd.f32 %v4841, %v4919
    %v4921 = vpop.f32.mrb[0].mxu0
    %4922 = vmatprep.mubr.f32.mxu0 0.0
    %4923 = vmatmul.mubr.f32.gmra.mrb[0].mxu0 %v4851
    %v4924 = vpop.f32.mrb[0].mxu0
    %v4925 = vadd.f32 %v4841, %v4924
    %v4926 = vpop.f32.mrb[0].mxu0
    %4927 = vdwg.mxu0
    %v4928 = vld [vmem:[%s14] sm:$0xff]
    %v4929 = vld [vmem:[%s14 + $0x8] sm:$0xff]
    %v4930 = vld [vmem:[%s14 + $0x10] sm:$0xff]
    %v4931 = vld [vmem:[%s14 + $0x18] sm:$0xff]
    %4932 = vmatprep.subr.mxu0 0.0
    %4933 = vmatpush1.msra.mxu0 %v4928
    %4934 = vmatprep.subr.mxu0 0.0
    %4935 = vmatpush1.msra.mxu0 %v4929
    %4936 = vmatprep.subr.mxu0 0.0
    %4937 = vmatpush1.msra.mxu0 %v4930
    %4938 = vmatprep.subr.mxu0 0.0
    %4939 = vmatpush1.msra.mxu0 %v4931
    %4940 = vmatprep.subr.mxu0 0.0
    %4941 = vmatpush1.msra.mxu0 0.0
    %4942 = vmatprep.subr.mxu0 0.0
    %4943 = vmatpush1.msra.mxu0 0.0
    %4944 = vmatprep.subr.mxu0 0.0
    %4945 = vmatpush1.msra.mxu0 0.0
    %4946 = vmatprep.subr.mxu0 0.0
    %4947 = vmatpush1.msra.mxu0 0.0
    %4948 = vmatprep.subr.mxu0 0.0
    %4949 = vmatpush1.msra.mxu0 0.0
    %4950 = vmatprep.subr.mxu0 0.0
    %4951 = vmatpush1.msra.mxu0 0.0
    %4952 = vmatprep.subr.mxu0 0.0
    %4953 = vmatpush1.msra.mxu0 0.0
    %4954 = vmatprep.subr.mxu0 0.0
    %4955 = vmatpush1.msra.mxu0 0.0
    %4956 = vmatprep.subr.mxu0 0.0
    %4957 = vmatpush1.msra.mxu0 0.0
    %4958 = vmatprep.subr.mxu0 0.0
    %4959 = vmatpush1.msra.mxu0 0.0
    %4960 = vmatprep.subr.mxu0 0.0
    %4961 = vmatpush1.msra.mxu0 0.0
    %4962 = vmatprep.subr.mxu0 0.0
    %4963 = vmatpush1.msra.mxu0 0.0
    %4964 = vmatprep.subr.mxu0 0.0
    %4965 = vmatpush1.msra.mxu0 0.0
    %4966 = vmatprep.subr.mxu0 0.0
    %4967 = vmatpush1.msra.mxu0 0.0
    %4968 = vmatprep.subr.mxu0 0.0
    %4969 = vmatpush1.msra.mxu0 0.0
    %4970 = vmatprep.subr.mxu0 0.0
    %4971 = vmatpush1.msra.mxu0 0.0
    %4972 = vmatprep.subr.mxu0 0.0
    %4973 = vmatpush1.msra.mxu0 0.0
    %4974 = vmatprep.subr.mxu0 0.0
    %4975 = vmatpush1.msra.mxu0 0.0
    %4976 = vmatprep.subr.mxu0 0.0
    %4977 = vmatpush1.msra.mxu0 0.0
    %4978 = vmatprep.subr.mxu0 0.0
    %4979 = vmatpush1.msra.mxu0 0.0
    %4980 = vmatprep.subr.mxu0 0.0
    %4981 = vmatpush1.msra.mxu0 0.0
    %4982 = vmatprep.subr.mxu0 0.0
    %4983 = vmatpush1.msra.mxu0 0.0
    %4984 = vmatprep.subr.mxu0 0.0
    %4985 = vmatpush1.msra.mxu0 0.0
    %4986 = vmatprep.subr.mxu0 0.0
    %4987 = vmatpush1.msra.mxu0 0.0
    %4988 = vmatprep.subr.mxu0 0.0
    %4989 = vmatpush1.msra.mxu0 0.0
    %4990 = vmatprep.subr.mxu0 0.0
    %4991 = vmatpush1.msra.mxu0 0.0
    %4992 = vmatprep.subr.mxu0 0.0
    %4993 = vmatpush1.msra.mxu0 0.0
    %4994 = vmatprep.subr.mxu0 0.0
    %4995 = vmatpush1.msra.mxu0 0.0
    %4996 = vmatprep.mubr.f32.mxu0 0.0
    %4997 = vmatmul.mubr.f32.gmra.mrb[0].mxu0 %v3086
    %v4998 = vpop.f32.mrb[0].mxu0
    %v4999 = vadd.f32 0.0, %v4998
    %v5000 = vpop.f32.mrb[0].mxu0
    %5001 = vdwg.mxu0
    %v5002 = vadd.f32 %v4920, %v4999
    %v5003 = vmul.f32 %v5002, %v3079
    %v5004 = vtanh.pop %v5003
    %v5005 = vmul.f32 %v5004, %v3079
    %v5006 = vadd.f32 %v5005, %v3080
    %v5007 = vmul.f32 %v5006, 0.0
    %5009 = vrot.lane.b32.xlu0 %v5006, 32
    %v5010 = vpop.permute.xlu0 %5009
    %v5012 = vmul.f32 %v5006, %v5010
    %5014 = vrot.lane.b32.xlu0 %v5012, 32
    %v5015 = vpop.permute.xlu0 %5014
    %v5017 = vadd.f32 %v5007, %v5015
    %v5018 = vtanh.pop %v5017
    %5020 = vrot.lane.b32.xlu0 %v5018, 32
    %v5021 = vpop.permute.xlu0 %5020
    %v5023 = vmul.f32 %v5006, %v5021
    %5025 = vrot.lane.b32.xlu0 %v5023, 64
    %v5026 = vpop.permute.xlu0 %5025
    %v5027 = vsel %vm2032, %v5026, 0
    %5029 = vmatprep.subr.mxu0 0.0
    %5030 = vmatpush1.msra.mxu0 %v4928
    %5031 = vmatprep.subr.mxu0 0.0
    %5032 = vmatpush1.msra.mxu0 %v4929
    %5033 = vmatprep.subr.mxu0 0.0
    %5034 = vmatpush1.msra.mxu0 %v4930
    %5035 = vmatprep.subr.mxu0 0.0
    %5036 = vmatpush1.msra.mxu0 %v4931
    %5037 = vmatprep.subr.mxu0 0.0
    %5038 = vmatpush1.msra.mxu0 0.0
    %5039 = vmatprep.subr.mxu0 0.0
    %5040 = vmatpush1.msra.mxu0 0.0
    %5041 = vmatprep.subr.mxu0 0.0
    %5042 = vmatpush1.msra.mxu0 0.0
    %5043 = vmatprep.subr.mxu0 0.0
    %5044 = vmatpush1.msra.mxu0 0.0
    %5045 = vmatprep.subr.mxu0 0.0
    %5046 = vmatpush1.msra.mxu0 0.0
    %5047 = vmatprep.subr.mxu0 0.0
    %5048 = vmatpush1.msra.mxu0 0.0
    %5049 = vmatprep.subr.mxu0 0.0
    %5050 = vmatpush1.msra.mxu0 0.0
    %5051 = vmatprep.subr.mxu0 0.0
    %5052 = vmatpush1.msra.mxu0 0.0
    %5053 = vmatprep.subr.mxu0 0.0
    %5054 = vmatpush1.msra.mxu0 0.0
    %5055 = vmatprep.subr.mxu0 0.0
    %5056 = vmatpush1.msra.mxu0 0.0
    %5057 = vmatprep.subr.mxu0 0.0
    %5058 = vmatpush1.msra.mxu0 0.0
    %5059 = vmatprep.subr.mxu0 0.0
    %5060 = vmatpush1.msra.mxu0 0.0
    %5061 = vmatprep.subr.mxu0 0.0
    %5062 = vmatpush1.msra.mxu0 0.0
    %5063 = vmatprep.subr.mxu0 0.0
    %5064 = vmatpush1.msra.mxu0 0.0
    %5065 = vmatprep.subr.mxu0 0.0
    %5066 = vmatpush1.msra.mxu0 0.0
    %5067 = vmatprep.subr.mxu0 0.0
    %5068 = vmatpush1.msra.mxu0 0.0
    %5069 = vmatprep.subr.mxu0 0.0
    %5070 = vmatpush1.msra.mxu0 0.0
    %5071 = vmatprep.subr.mxu0 0.0
    %5072 = vmatpush1.msra.mxu0 0.0
    %5073 = vmatprep.subr.mxu0 0.0
    %5074 = vmatpush1.msra.mxu0 0.0
    %5075 = vmatprep.subr.mxu0 0.0
    %5076 = vmatpush1.msra.mxu0 0.0
    %5077 = vmatprep.subr.mxu0 0.0
    %5078 = vmatpush1.msra.mxu0 0.0
    %5079 = vmatprep.subr.mxu0 0.0
    %5080 = vmatpush1.msra.mxu0 0.0
    %5081 = vmatprep.subr.mxu0 0.0
    %5082 = vmatpush1.msra.mxu0 0.0
    %5083 = vmatprep.subr.mxu0 0.0
    %5084 = vmatpush1.msra.mxu0 0.0
    %5085 = vmatprep.subr.mxu0 0.0
    %5086 = vmatpush1.msra.mxu0 0.0
    %5087 = vmatprep.subr.mxu0 0.0
    %5088 = vmatpush1.msra.mxu0 0.0
    %5089 = vmatprep.subr.mxu0 0.0
    %5090 = vmatpush1.msra.mxu0 0.0
    %5091 = vmatprep.subr.mxu0 0.0
    %5092 = vmatpush1.msra.mxu0 0.0
    %5093 = vmatprep.mubr.f32.mxu0 0.0
    %5094 = vmatmul.mubr.f32.gmra.mrb[0].mxu0 %v5027
    %v5095 = vpop.f32.mrb[0].mxu0
    %v5096 = vadd.f32 0.0, %v5095
    %v5097 = vpop.f32.mrb[0].mxu0
    %5098 = vdwg.mxu0
    %v5100 = vrot.slane %v5096, 6
    %v5102 = vadd.f32 %v4920, %v5100
    %v5103 = vmul.f32 %v5102, %v3079
    %v5104 = vtanh.pop %v5103
    %v5105 = vmul.f32 %v5104, %v3079
    %v5106 = vadd.f32 %v5105, %v3080
    %v5108 = vrot.slane %v5017, 6
    %v5110 = vmul.f32 %v5106, %v5108
    %5112 = vrot.lane.b32.xlu0 %v5106, 32
    %v5113 = vpop.permute.xlu0 %5112
    %v5115 = vmul.f32 %v5106, %v5113
    %5117 = vrot.lane.b32.xlu0 %v5115, 32
    %v5118 = vpop.permute.xlu0 %5117
    %v5120 = vadd.f32 %v5110, %v5118
    %v5121 = vtanh.pop %v5120
    %5123 = vrot.lane.b32.xlu0 %v5121, 32
    %v5124 = vpop.permute.xlu0 %5123
    %v5126 = vmul.f32 %v5106, %v5124
    %v5128 = vrot.slane %v5126, 2
    %5129 = vrot.lane.b32.xlu0 %v5128, 64
    %v5130 = vpop.permute.xlu0 %5129
    %v5131 = vsel %vm2032, %v5130, 0
    %5133 = vmatprep.subr.mxu0 0.0
    %5134 = vmatpush1.msra.mxu0 %v4928
    %5135 = vmatprep.subr.mxu0 0.0
    %5136 = vmatpush1.msra.mxu0 %v4929
    %5137 = vmatprep.subr.mxu0 0.0
    %5138 = vmatpush1.msra.mxu0 %v4930
    %5139 = vmatprep.subr.mxu0 0.0
    %5140 = vmatpush1.msra.mxu0 %v4931
    %5141 = vmatprep.subr.mxu0 0.0
    %5142 = vmatpush1.msra.mxu0 0.0
    %5143 = vmatprep.subr.mxu0 0.0
    %5144 = vmatpush1.msra.mxu0 0.0
    %5145 = vmatprep.subr.mxu0 0.0
    %5146 = vmatpush1.msra.mxu0 0.0
    %5147 = vmatprep.subr.mxu0 0.0
    %5148 = vmatpush1.msra.mxu0 0.0
    %5149 = vmatprep.subr.mxu0 0.0
    %5150 = vmatpush1.msra.mxu0 0.0
    %5151 = vmatprep.subr.mxu0 0.0
    %5152 = vmatpush1.msra.mxu0 0.0
    %5153 = vmatprep.subr.mxu0 0.0
    %5154 = vmatpush1.msra.mxu0 0.0
    %5155 = vmatprep.subr.mxu0 0.0
    %5156 = vmatpush1.msra.mxu0 0.0
    %5157 = vmatprep.subr.mxu0 0.0
    %5158 = vmatpush1.msra.mxu0 0.0
    %5159 = vmatprep.subr.mxu0 0.0
    %5160 = vmatpush1.msra.mxu0 0.0
    %5161 = vmatprep.subr.mxu0 0.0
    %5162 = vmatpush1.msra.mxu0 0.0
    %5163 = vmatprep.subr.mxu0 0.0
    %5164 = vmatpush1.msra.mxu0 0.0
    %5165 = vmatprep.subr.mxu0 0.0
    %5166 = vmatpush1.msra.mxu0 0.0
    %5167 = vmatprep.subr.mxu0 0.0
    %5168 = vmatpush1.msra.mxu0 0.0
    %5169 = vmatprep.subr.mxu0 0.0
    %5170 = vmatpush1.msra.mxu0 0.0
    %5171 = vmatprep.subr.mxu0 0.0
    %5172 = vmatpush1.msra.mxu0 0.0
    %5173 = vmatprep.subr.mxu0 0.0
    %5174 = vmatpush1.msra.mxu0 0.0
    %5175 = vmatprep.subr.mxu0 0.0
    %5176 = vmatpush1.msra.mxu0 0.0
    %5177 = vmatprep.subr.mxu0 0.0
    %5178 = vmatpush1.msra.mxu0 0.0
    %5179 = vmatprep.subr.mxu0 0.0
    %5180 = vmatpush1.msra.mxu0 0.0
    %5181 = vmatprep.subr.mxu0 0.0
    %5182 = vmatpush1.msra.mxu0 0.0
    %5183 = vmatprep.subr.mxu0 0.0
    %5184 = vmatpush1.msra.mxu0 0.0
    %5185 = vmatprep.subr.mxu0 0.0
    %5186 = vmatpush1.msra.mxu0 0.0
    %5187 = vmatprep.subr.mxu0 0.0
    %5188 = vmatpush1.msra.mxu0 0.0
    %5189 = vmatprep.subr.mxu0 0.0
    %5190 = vmatpush1.msra.mxu0 0.0
    %5191 = vmatprep.subr.mxu0 0.0
    %5192 = vmatpush1.msra.mxu0 0.0
    %5193 = vmatprep.subr.mxu0 0.0
    %5194 = vmatpush1.msra.mxu0 0.0
    %5195 = vmatprep.subr.mxu0 0.0
    %5196 = vmatpush1.msra.mxu0 0.0
    %5197 = vmatprep.mubr.f32.mxu0 0.0
    %5198 = vmatmul.mubr.f32.gmra.mrb[0].mxu0 %v5131
    %v5199 = vpop.f32.mrb[0].mxu0
    %v5200 = vadd.f32 0.0, %v5199
    %v5201 = vpop.f32.mrb[0].mxu0
    %5202 = vdwg.mxu0
    %v5204 = vrot.slane %v5200, 4
    %v5206 = vadd.f32 %v4920, %v5204
    %v5207 = vmul.f32 %v5206, %v3079
    %v5208 = vtanh.pop %v5207
    %v5209 = vmul.f32 %v5208, %v3079
    %v5210 = vadd.f32 %v5209, %v3080
    %v5212 = vrot.slane %v5120, 6
    %v5214 = vmul.f32 %v5210, %v5212
    %5216 = vrot.lane.b32.xlu0 %v5210, 32
    %v5217 = vpop.permute.xlu0 %5216
    %v5219 = vmul.f32 %v5210, %v5217
    %5221 = vrot.lane.b32.xlu0 %v5219, 32
    %v5222 = vpop.permute.xlu0 %5221
    %v5224 = vadd.f32 %v5214, %v5222
    %v5225 = vtanh.pop %v5224
    %5227 = vrot.lane.b32.xlu0 %v5225, 32
    %v5228 = vpop.permute.xlu0 %5227
    %v5230 = vmul.f32 %v5210, %v5228
    %v5232 = vrot.slane %v5230, 4
    %5233 = vrot.lane.b32.xlu0 %v5232, 64
    %v5234 = vpop.permute.xlu0 %5233
    %v5235 = vsel %vm2032, %v5234, 0
    %5237 = vmatprep.subr.mxu0 0.0
    %5238 = vmatpush1.msra.mxu0 %v4928
    %5239 = vmatprep.subr.mxu0 0.0
    %5240 = vmatpush1.msra.mxu0 %v4929
    %5241 = vmatprep.subr.mxu0 0.0
    %5242 = vmatpush1.msra.mxu0 %v4930
    %5243 = vmatprep.subr.mxu0 0.0
    %5244 = vmatpush1.msra.mxu0 %v4931
    %5245 = vmatprep.subr.mxu0 0.0
    %5246 = vmatpush1.msra.mxu0 0.0
    %5247 = vmatprep.subr.mxu0 0.0
    %5248 = vmatpush1.msra.mxu0 0.0
    %5249 = vmatprep.subr.mxu0 0.0
    %5250 = vmatpush1.msra.mxu0 0.0
    %5251 = vmatprep.subr.mxu0 0.0
    %5252 = vmatpush1.msra.mxu0 0.0
    %5253 = vmatprep.subr.mxu0 0.0
    %5254 = vmatpush1.msra.mxu0 0.0
    %5255 = vmatprep.subr.mxu0 0.0
    %5256 = vmatpush1.msra.mxu0 0.0
    %5257 = vmatprep.subr.mxu0 0.0
    %5258 = vmatpush1.msra.mxu0 0.0
    %5259 = vmatprep.subr.mxu0 0.0
    %5260 = vmatpush1.msra.mxu0 0.0
    %5261 = vmatprep.subr.mxu0 0.0
    %5262 = vmatpush1.msra.mxu0 0.0
    %5263 = vmatprep.subr.mxu0 0.0
    %5264 = vmatpush1.msra.mxu0 0.0
    %5265 = vmatprep.subr.mxu0 0.0
    %5266 = vmatpush1.msra.mxu0 0.0
    %5267 = vmatprep.subr.mxu0 0.0
    %5268 = vmatpush1.msra.mxu0 0.0
    %5269 = vmatprep.subr.mxu0 0.0
    %5270 = vmatpush1.msra.mxu0 0.0
    %5271 = vmatprep.subr.mxu0 0.0
    %5272 = vmatpush1.msra.mxu0 0.0
    %5273 = vmatprep.subr.mxu0 0.0
    %5274 = vmatpush1.msra.mxu0 0.0
    %5275 = vmatprep.subr.mxu0 0.0
    %5276 = vmatpush1.msra.mxu0 0.0
    %5277 = vmatprep.subr.mxu0 0.0
    %5278 = vmatpush1.msra.mxu0 0.0
    %5279 = vmatprep.subr.mxu0 0.0
    %5280 = vmatpush1.msra.mxu0 0.0
    %5281 = vmatprep.subr.mxu0 0.0
    %5282 = vmatpush1.msra.mxu0 0.0
    %5283 = vmatprep.subr.mxu0 0.0
    %5284 = vmatpush1.msra.mxu0 0.0
    %5285 = vmatprep.subr.mxu0 0.0
    %5286 = vmatpush1.msra.mxu0 0.0
    %5287 = vmatprep.subr.mxu0 0.0
    %5288 = vmatpush1.msra.mxu0 0.0
    %5289 = vmatprep.subr.mxu0 0.0
    %5290 = vmatpush1.msra.mxu0 0.0
    %5291 = vmatprep.subr.mxu0 0.0
    %5292 = vmatpush1.msra.mxu0 0.0
    %5293 = vmatprep.subr.mxu0 0.0
    %5294 = vmatpush1.msra.mxu0 0.0
    %5295 = vmatprep.subr.mxu0 0.0
    %5296 = vmatpush1.msra.mxu0 0.0
    %5297 = vmatprep.subr.mxu0 0.0
    %5298 = vmatpush1.msra.mxu0 0.0
    %5299 = vmatprep.subr.mxu0 0.0
    %5300 = vmatpush1.msra.mxu0 0.0
    %5301 = vmatprep.mubr.f32.mxu0 0.0
    %5302 = vmatmul.mubr.f32.gmra.mrb[0].mxu0 %v5235
    %v5303 = vpop.f32.mrb[0].mxu0
    %v5304 = vadd.f32 0.0, %v5303
    %v5305 = vpop.f32.mrb[0].mxu0
    %5306 = vdwg.mxu0
    %v5308 = vrot.slane %v5304, 2
    %v5310 = vadd.f32 %v4920, %v5308
    %v5311 = vmul.f32 %v5310, %v3079
    %v5312 = vtanh.pop %v5311
    %v5313 = vmul.f32 %v5312, %v3079
    %v5314 = vadd.f32 %v5313, %v3080
    %v5316 = vrot.slane %v5224, 6
    %v5318 = vmul.f32 %v5314, %v5316
    %5320 = vrot.lane.b32.xlu0 %v5314, 32
    %v5321 = vpop.permute.xlu0 %5320
    %v5323 = vmul.f32 %v5314, %v5321
    %5325 = vrot.lane.b32.xlu0 %v5323, 32
    %v5326 = vpop.permute.xlu0 %5325
    %v5328 = vadd.f32 %v5318, %v5326
    %v5329 = vtanh.pop %v5328
    %5331 = vrot.lane.b32.xlu0 %v5329, 32
    %v5332 = vpop.permute.xlu0 %5331
    %v5334 = vmul.f32 %v5314, %v5332
    %v5336 = vrot.slane %v5334, 6
    %5337 = vrot.lane.b32.xlu0 %v5336, 64
    %v5338 = vpop.permute.xlu0 %5337
    %v5339 = vsel %vm2032, %v5338, 0
    %5341 = vmatprep.subr.mxu0 0.0
    %5342 = vmatpush1.msra.mxu0 %v4928
    %5343 = vmatprep.subr.mxu0 0.0
    %5344 = vmatpush1.msra.mxu0 %v4929
    %5345 = vmatprep.subr.mxu0 0.0
    %5346 = vmatpush1.msra.mxu0 %v4930
    %5347 = vmatprep.subr.mxu0 0.0
    %5348 = vmatpush1.msra.mxu0 %v4931
    %5349 = vmatprep.subr.mxu0 0.0
    %5350 = vmatpush1.msra.mxu0 0.0
    %5351 = vmatprep.subr.mxu0 0.0
    %5352 = vmatpush1.msra.mxu0 0.0
    %5353 = vmatprep.subr.mxu0 0.0
    %5354 = vmatpush1.msra.mxu0 0.0
    %5355 = vmatprep.subr.mxu0 0.0
    %5356 = vmatpush1.msra.mxu0 0.0
    %5357 = vmatprep.subr.mxu0 0.0
    %5358 = vmatpush1.msra.mxu0 0.0
    %5359 = vmatprep.subr.mxu0 0.0
    %5360 = vmatpush1.msra.mxu0 0.0
    %5361 = vmatprep.subr.mxu0 0.0
    %5362 = vmatpush1.msra.mxu0 0.0
    %5363 = vmatprep.subr.mxu0 0.0
    %5364 = vmatpush1.msra.mxu0 0.0
    %5365 = vmatprep.subr.mxu0 0.0
    %5366 = vmatpush1.msra.mxu0 0.0
    %5367 = vmatprep.subr.mxu0 0.0
    %5368 = vmatpush1.msra.mxu0 0.0
    %5369 = vmatprep.subr.mxu0 0.0
    %5370 = vmatpush1.msra.mxu0 0.0
    %5371 = vmatprep.subr.mxu0 0.0
    %5372 = vmatpush1.msra.mxu0 0.0
    %5373 = vmatprep.subr.mxu0 0.0
    %5374 = vmatpush1.msra.mxu0 0.0
    %5375 = vmatprep.subr.mxu0 0.0
    %5376 = vmatpush1.msra.mxu0 0.0
    %5377 = vmatprep.subr.mxu0 0.0
    %5378 = vmatpush1.msra.mxu0 0.0
    %5379 = vmatprep.subr.mxu0 0.0
    %5380 = vmatpush1.msra.mxu0 0.0
    %5381 = vmatprep.subr.mxu0 0.0
    %5382 = vmatpush1.msra.mxu0 0.0
    %5383 = vmatprep.subr.mxu0 0.0
    %5384 = vmatpush1.msra.mxu0 0.0
    %5385 = vmatprep.subr.mxu0 0.0
    %5386 = vmatpush1.msra.mxu0 0.0
    %5387 = vmatprep.subr.mxu0 0.0
    %5388 = vmatpush1.msra.mxu0 0.0
    %5389 = vmatprep.subr.mxu0 0.0
    %5390 = vmatpush1.msra.mxu0 0.0
    %5391 = vmatprep.subr.mxu0 0.0
    %5392 = vmatpush1.msra.mxu0 0.0
    %5393 = vmatprep.subr.mxu0 0.0
    %5394 = vmatpush1.msra.mxu0 0.0
    %5395 = vmatprep.subr.mxu0 0.0
    %5396 = vmatpush1.msra.mxu0 0.0
    %5397 = vmatprep.subr.mxu0 0.0
    %5398 = vmatpush1.msra.mxu0 0.0
    %5399 = vmatprep.subr.mxu0 0.0
    %5400 = vmatpush1.msra.mxu0 0.0
    %5401 = vmatprep.subr.mxu0 0.0
    %5402 = vmatpush1.msra.mxu0 0.0
    %5403 = vmatprep.subr.mxu0 0.0
    %5404 = vmatpush1.msra.mxu0 0.0
    %5405 = vmatprep.mubr.f32.mxu0 0.0
    %5406 = vmatmul.mubr.f32.gmra.mrb[0].mxu0 %v5339
    %v5407 = vpop.f32.mrb[0].mxu0
    %v5408 = vadd.f32 0.0, %v5407
    %v5409 = vpop.f32.mrb[0].mxu0
    %5410 = vdwg.mxu0
    %v5411 = vadd.f32 %v4925, %v5408
    %v5412 = vmul.f32 %v5411, %v3079
    %v5413 = vtanh.pop %v5412
    %v5414 = vmul.f32 %v5413, %v3079
    %v5415 = vadd.f32 %v5414, %v3080
    %v5417 = vrot.slane %v5328, 6
    %v5419 = vmul.f32 %v5415, %v5417
    %5421 = vrot.lane.b32.xlu0 %v5415, 32
    %v5422 = vpop.permute.xlu0 %5421
    %v5424 = vmul.f32 %v5415, %v5422
    %5426 = vrot.lane.b32.xlu0 %v5424, 32
    %v5427 = vpop.permute.xlu0 %5426
    %v5429 = vadd.f32 %v5419, %v5427
    %v5430 = vtanh.pop %v5429
    %5432 = vrot.lane.b32.xlu0 %v5430, 32
    %v5433 = vpop.permute.xlu0 %5432
    %v5435 = vmul.f32 %v5415, %v5433
    %5437 = vrot.lane.b32.xlu0 %v5435, 64
    %v5438 = vpop.permute.xlu0 %5437
    %v5439 = vsel %vm2032, %v5438, 0
    %5441 = vmatprep.subr.mxu0 0.0
    %5442 = vmatpush1.msra.mxu0 %v4928
    %5443 = vmatprep.subr.mxu0 0.0
    %5444 = vmatpush1.msra.mxu0 %v4929
    %5445 = vmatprep.subr.mxu0 0.0
    %5446 = vmatpush1.msra.mxu0 %v4930
    %5447 = vmatprep.subr.mxu0 0.0
    %5448 = vmatpush1.msra.mxu0 %v4931
    %5449 = vmatprep.subr.mxu0 0.0
    %5450 = vmatpush1.msra.mxu0 0.0
    %5451 = vmatprep.subr.mxu0 0.0
    %5452 = vmatpush1.msra.mxu0 0.0
    %5453 = vmatprep.subr.mxu0 0.0
    %5454 = vmatpush1.msra.mxu0 0.0
    %5455 = vmatprep.subr.mxu0 0.0
    %5456 = vmatpush1.msra.mxu0 0.0
    %5457 = vmatprep.subr.mxu0 0.0
    %5458 = vmatpush1.msra.mxu0 0.0
    %5459 = vmatprep.subr.mxu0 0.0
    %5460 = vmatpush1.msra.mxu0 0.0
    %5461 = vmatprep.subr.mxu0 0.0
    %5462 = vmatpush1.msra.mxu0 0.0
    %5463 = vmatprep.subr.mxu0 0.0
    %5464 = vmatpush1.msra.mxu0 0.0
    %5465 = vmatprep.subr.mxu0 0.0
    %5466 = vmatpush1.msra.mxu0 0.0
    %5467 = vmatprep.subr.mxu0 0.0
    %5468 = vmatpush1.msra.mxu0 0.0
    %5469 = vmatprep.subr.mxu0 0.0
    %5470 = vmatpush1.msra.mxu0 0.0
    %5471 = vmatprep.subr.mxu0 0.0
    %5472 = vmatpush1.msra.mxu0 0.0
    %5473 = vmatprep.subr.mxu0 0.0
    %5474 = vmatpush1.msra.mxu0 0.0
    %5475 = vmatprep.subr.mxu0 0.0
    %5476 = vmatpush1.msra.mxu0 0.0
    %5477 = vmatprep.subr.mxu0 0.0
    %5478 = vmatpush1.msra.mxu0 0.0
    %5479 = vmatprep.subr.mxu0 0.0
    %5480 = vmatpush1.msra.mxu0 0.0
    %5481 = vmatprep.subr.mxu0 0.0
    %5482 = vmatpush1.msra.mxu0 0.0
    %5483 = vmatprep.subr.mxu0 0.0
    %5484 = vmatpush1.msra.mxu0 0.0
    %5485 = vmatprep.subr.mxu0 0.0
    %5486 = vmatpush1.msra.mxu0 0.0
    %5487 = vmatprep.subr.mxu0 0.0
    %5488 = vmatpush1.msra.mxu0 0.0
    %5489 = vmatprep.subr.mxu0 0.0
    %5490 = vmatpush1.msra.mxu0 0.0
    %5491 = vmatprep.subr.mxu0 0.0
    %5492 = vmatpush1.msra.mxu0 0.0
    %5493 = vmatprep.subr.mxu0 0.0
    %5494 = vmatpush1.msra.mxu0 0.0
    %5495 = vmatprep.subr.mxu0 0.0
    %5496 = vmatpush1.msra.mxu0 0.0
    %5497 = vmatprep.subr.mxu0 0.0
    %5498 = vmatpush1.msra.mxu0 0.0
    %5499 = vmatprep.subr.mxu0 0.0
    %5500 = vmatpush1.msra.mxu0 0.0
    %5501 = vmatprep.subr.mxu0 0.0
    %5502 = vmatpush1.msra.mxu0 0.0
    %5503 = vmatprep.subr.mxu0 0.0
    %5504 = vmatpush1.msra.mxu0 0.0
    %5505 = vmatprep.mubr.f32.mxu0 0.0
    %5506 = vmatmul.mubr.f32.gmra.mrb[0].mxu0 %v5439
    %v5507 = vpop.f32.mrb[0].mxu0
    %v5508 = vadd.f32 0.0, %v5507
    %v5509 = vpop.f32.mrb[0].mxu0
    %5510 = vdwg.mxu0
    %v5512 = vrot.slane %v5508, 6
    %v5514 = vadd.f32 %v4925, %v5512
    %v5515 = vmul.f32 %v5514, %v3079
    %v5516 = vtanh.pop %v5515
    %v5517 = vmul.f32 %v5516, %v3079
    %v5518 = vadd.f32 %v5517, %v3080
    %v5520 = vrot.slane %v5429, 6
    %v5522 = vmul.f32 %v5518, %v5520
    %5524 = vrot.lane.b32.xlu0 %v5518, 32
    %v5525 = vpop.permute.xlu0 %5524
    %v5527 = vmul.f32 %v5518, %v5525
    %5529 = vrot.lane.b32.xlu0 %v5527, 32
    %v5530 = vpop.permute.xlu0 %5529
    %v5532 = vadd.f32 %v5522, %v5530
    %v5533 = vtanh.pop %v5532
    %5535 = vrot.lane.b32.xlu0 %v5533, 32
    %v5536 = vpop.permute.xlu0 %5535
    %v5538 = vmul.f32 %v5518, %v5536
    %v5540 = vrot.slane %v5538, 2
    %5541 = vrot.lane.b32.xlu0 %v5540, 64
    %v5542 = vpop.permute.xlu0 %5541
    %v5543 = vsel %vm2032, %v5542, 0
    %5545 = vmatprep.subr.mxu0 0.0
    %5546 = vmatpush1.msra.mxu0 %v4928
    %5547 = vmatprep.subr.mxu0 0.0
    %5548 = vmatpush1.msra.mxu0 %v4929
    %5549 = vmatprep.subr.mxu0 0.0
    %5550 = vmatpush1.msra.mxu0 %v4930
    %5551 = vmatprep.subr.mxu0 0.0
    %5552 = vmatpush1.msra.mxu0 %v4931
    %5553 = vmatprep.subr.mxu0 0.0
    %5554 = vmatpush1.msra.mxu0 0.0
    %5555 = vmatprep.subr.mxu0 0.0
    %5556 = vmatpush1.msra.mxu0 0.0
    %5557 = vmatprep.subr.mxu0 0.0
    %5558 = vmatpush1.msra.mxu0 0.0
    %5559 = vmatprep.subr.mxu0 0.0
    %5560 = vmatpush1.msra.mxu0 0.0
    %5561 = vmatprep.subr.mxu0 0.0
    %5562 = vmatpush1.msra.mxu0 0.0
    %5563 = vmatprep.subr.mxu0 0.0
    %5564 = vmatpush1.msra.mxu0 0.0
    %5565 = vmatprep.subr.mxu0 0.0
    %5566 = vmatpush1.msra.mxu0 0.0
    %5567 = vmatprep.subr.mxu0 0.0
    %5568 = vmatpush1.msra.mxu0 0.0
    %5569 = vmatprep.subr.mxu0 0.0
    %5570 = vmatpush1.msra.mxu0 0.0
    %5571 = vmatprep.subr.mxu0 0.0
    %5572 = vmatpush1.msra.mxu0 0.0
    %5573 = vmatprep.subr.mxu0 0.0
    %5574 = vmatpush1.msra.mxu0 0.0
    %5575 = vmatprep.subr.mxu0 0.0
    %5576 = vmatpush1.msra.mxu0 0.0
    %5577 = vmatprep.subr.mxu0 0.0
    %5578 = vmatpush1.msra.mxu0 0.0
    %5579 = vmatprep.subr.mxu0 0.0
    %5580 = vmatpush1.msra.mxu0 0.0
    %5581 = vmatprep.subr.mxu0 0.0
    %5582 = vmatpush1.msra.mxu0 0.0
    %5583 = vmatprep.subr.mxu0 0.0
    %5584 = vmatpush1.msra.mxu0 0.0
    %5585 = vmatprep.subr.mxu0 0.0
    %5586 = vmatpush1.msra.mxu0 0.0
    %5587 = vmatprep.subr.mxu0 0.0
    %5588 = vmatpush1.msra.mxu0 0.0
    %5589 = vmatprep.subr.mxu0 0.0
    %5590 = vmatpush1.msra.mxu0 0.0
    %5591 = vmatprep.subr.mxu0 0.0
    %5592 = vmatpush1.msra.mxu0 0.0
    %5593 = vmatprep.subr.mxu0 0.0
    %5594 = vmatpush1.msra.mxu0 0.0
    %5595 = vmatprep.subr.mxu0 0.0
    %5596 = vmatpush1.msra.mxu0 0.0
    %5597 = vmatprep.subr.mxu0 0.0
    %5598 = vmatpush1.msra.mxu0 0.0
    %5599 = vmatprep.subr.mxu0 0.0
    %5600 = vmatpush1.msra.mxu0 0.0
    %5601 = vmatprep.subr.mxu0 0.0
    %5602 = vmatpush1.msra.mxu0 0.0
    %5603 = vmatprep.subr.mxu0 0.0
    %5604 = vmatpush1.msra.mxu0 0.0
    %5605 = vmatprep.subr.mxu0 0.0
    %5606 = vmatpush1.msra.mxu0 0.0
    %5607 = vmatprep.subr.mxu0 0.0
    %5608 = vmatpush1.msra.mxu0 0.0
    %5609 = vmatprep.mubr.f32.mxu0 0.0
    %5610 = vmatmul.mubr.f32.gmra.mrb[0].mxu0 %v5543
    %v5611 = vpop.f32.mrb[0].mxu0
    %v5612 = vadd.f32 0.0, %v5611
    %v5613 = vpop.f32.mrb[0].mxu0
    %5614 = vdwg.mxu0
    %v5616 = vrot.slane %v5612, 4
    %v5618 = vadd.f32 %v4925, %v5616
    %v5619 = vmul.f32 %v5618, %v3079
    %v5620 = vtanh.pop %v5619
    %v5621 = vmul.f32 %v5620, %v3079
    %v5622 = vadd.f32 %v5621, %v3080
    %v5624 = vrot.slane %v5532, 6
    %v5626 = vmul.f32 %v5622, %v5624
    %5628 = vrot.lane.b32.xlu0 %v5622, 32
    %v5629 = vpop.permute.xlu0 %5628
    %v5631 = vmul.f32 %v5622, %v5629
    %5633 = vrot.lane.b32.xlu0 %v5631, 32
    %v5634 = vpop.permute.xlu0 %5633
    %v5636 = vadd.f32 %v5626, %v5634
    %v5637 = vtanh.pop %v5636
    %5639 = vrot.lane.b32.xlu0 %v5637, 32
    %v5640 = vpop.permute.xlu0 %5639
    %v5642 = vmul.f32 %v5622, %v5640
    %v5644 = vrot.slane %v5642, 4
    %5645 = vrot.lane.b32.xlu0 %v5644, 64
    %v5646 = vpop.permute.xlu0 %5645
    %v5647 = vsel %vm2032, %v5646, 0
    %5649 = vmatprep.subr.mxu0 0.0
    %5650 = vmatpush1.msra.mxu0 %v4928
    %5651 = vmatprep.subr.mxu0 0.0
    %5652 = vmatpush1.msra.mxu0 %v4929
    %5653 = vmatprep.subr.mxu0 0.0
    %5654 = vmatpush1.msra.mxu0 %v4930
    %5655 = vmatprep.subr.mxu0 0.0
    %5656 = vmatpush1.msra.mxu0 %v4931
    %5657 = vmatprep.subr.mxu0 0.0
    %5658 = vmatpush1.msra.mxu0 0.0
    %5659 = vmatprep.subr.mxu0 0.0
    %5660 = vmatpush1.msra.mxu0 0.0
    %5661 = vmatprep.subr.mxu0 0.0
    %5662 = vmatpush1.msra.mxu0 0.0
    %5663 = vmatprep.subr.mxu0 0.0
    %5664 = vmatpush1.msra.mxu0 0.0
    %5665 = vmatprep.subr.mxu0 0.0
    %5666 = vmatpush1.msra.mxu0 0.0
    %5667 = vmatprep.subr.mxu0 0.0
    %5668 = vmatpush1.msra.mxu0 0.0
    %5669 = vmatprep.subr.mxu0 0.0
    %5670 = vmatpush1.msra.mxu0 0.0
    %5671 = vmatprep.subr.mxu0 0.0
    %5672 = vmatpush1.msra.mxu0 0.0
    %5673 = vmatprep.subr.mxu0 0.0
    %5674 = vmatpush1.msra.mxu0 0.0
    %5675 = vmatprep.subr.mxu0 0.0
    %5676 = vmatpush1.msra.mxu0 0.0
    %5677 = vmatprep.subr.mxu0 0.0
    %5678 = vmatpush1.msra.mxu0 0.0
    %5679 = vmatprep.subr.mxu0 0.0
    %5680 = vmatpush1.msra.mxu0 0.0
    %5681 = vmatprep.subr.mxu0 0.0
    %5682 = vmatpush1.msra.mxu0 0.0
    %5683 = vmatprep.subr.mxu0 0.0
    %5684 = vmatpush1.msra.mxu0 0.0
    %5685 = vmatprep.subr.mxu0 0.0
    %5686 = vmatpush1.msra.mxu0 0.0
    %5687 = vmatprep.subr.mxu0 0.0
    %5688 = vmatpush1.msra.mxu0 0.0
    %5689 = vmatprep.subr.mxu0 0.0
    %5690 = vmatpush1.msra.mxu0 0.0
    %5691 = vmatprep.subr.mxu0 0.0
    %5692 = vmatpush1.msra.mxu0 0.0
    %5693 = vmatprep.subr.mxu0 0.0
    %5694 = vmatpush1.msra.mxu0 0.0
    %5695 = vmatprep.subr.mxu0 0.0
    %5696 = vmatpush1.msra.mxu0 0.0
    %5697 = vmatprep.subr.mxu0 0.0
    %5698 = vmatpush1.msra.mxu0 0.0
    %5699 = vmatprep.subr.mxu0 0.0
    %5700 = vmatpush1.msra.mxu0 0.0
    %5701 = vmatprep.subr.mxu0 0.0
    %5702 = vmatpush1.msra.mxu0 0.0
    %5703 = vmatprep.subr.mxu0 0.0
    %5704 = vmatpush1.msra.mxu0 0.0
    %5705 = vmatprep.subr.mxu0 0.0
    %5706 = vmatpush1.msra.mxu0 0.0
    %5707 = vmatprep.subr.mxu0 0.0
    %5708 = vmatpush1.msra.mxu0 0.0
    %5709 = vmatprep.subr.mxu0 0.0
    %5710 = vmatpush1.msra.mxu0 0.0
    %5711 = vmatprep.subr.mxu0 0.0
    %5712 = vmatpush1.msra.mxu0 0.0
    %5713 = vmatprep.mubr.f32.mxu0 0.0
    %5714 = vmatmul.mubr.f32.gmra.mrb[0].mxu0 %v5647
    %v5715 = vpop.f32.mrb[0].mxu0
    %v5716 = vadd.f32 0.0, %v5715
    %v5717 = vpop.f32.mrb[0].mxu0
    %5718 = vdwg.mxu0
    %v5720 = vrot.slane %v5716, 2
    %v5722 = vadd.f32 %v4925, %v5720
    %v5723 = vmul.f32 %v5722, %v3079
    %v5724 = vtanh.pop %v5723
    %v5725 = vmul.f32 %v5724, %v3079
    %v5726 = vadd.f32 %v5725, %v3080
    %v5728 = vrot.slane %v5636, 6
    %v5730 = vmul.f32 %v5726, %v5728
    %5732 = vrot.lane.b32.xlu0 %v5726, 32
    %v5733 = vpop.permute.xlu0 %5732
    %v5735 = vmul.f32 %v5726, %v5733
    %5737 = vrot.lane.b32.xlu0 %v5735, 32
    %v5738 = vpop.permute.xlu0 %5737
    %v5740 = vadd.f32 %v5730, %v5738
    %v5741 = vtanh.pop %v5740
    %5743 = vrot.lane.b32.xlu0 %v5741, 32
    %v5744 = vpop.permute.xlu0 %5743
    %v5746 = vmul.f32 %v5726, %v5744
    %v5747 = vld [vmem:[%s16] sm:$0xff]
    %v5748 = vld [vmem:[%s16 + $0x8] sm:$0xff]
    %v5749 = vld [vmem:[%s16 + $0x10] sm:$0xff]
    %v5750 = vld [vmem:[%s16 + $0x18] sm:$0xff]
    %v5751 = vld [vmem:[%s17] sm:$0x1]
    %v5753 = vlaneseq
    %v5754 = vshrl.u32 %v5753, 7
    %v5755 = vsub.s32 0, %v5754
    %v5756 = vrot.slane %v5751, %v5755
    %v5759 = vrot.slane %v5746, 6
    %5760 = vrot.lane.b32.xlu0 %v5759, 64
    %v5761 = vpop.permute.xlu0 %5760
    %v5762 = vsel %vm2032, %v5761, 0
    %5764 = vmatprep.subr.mxu0 0.0
    %5765 = vmatpush1.msra.mxu0 %v5747
    %5766 = vmatprep.subr.mxu0 0.0
    %5767 = vmatpush1.msra.mxu0 %v5748
    %5768 = vmatprep.subr.mxu0 0.0
    %5769 = vmatpush1.msra.mxu0 %v5749
    %5770 = vmatprep.subr.mxu0 0.0
    %5771 = vmatpush1.msra.mxu0 %v5750
    %5772 = vmatprep.subr.mxu0 0.0
    %5773 = vmatpush1.msra.mxu0 0.0
    %5774 = vmatprep.subr.mxu0 0.0
    %5775 = vmatpush1.msra.mxu0 0.0
    %5776 = vmatprep.subr.mxu0 0.0
    %5777 = vmatpush1.msra.mxu0 0.0
    %5778 = vmatprep.subr.mxu0 0.0
    %5779 = vmatpush1.msra.mxu0 0.0
    %5780 = vmatprep.subr.mxu0 0.0
    %5781 = vmatpush1.msra.mxu0 0.0
    %5782 = vmatprep.subr.mxu0 0.0
    %5783 = vmatpush1.msra.mxu0 0.0
    %5784 = vmatprep.subr.mxu0 0.0
    %5785 = vmatpush1.msra.mxu0 0.0
    %5786 = vmatprep.subr.mxu0 0.0
    %5787 = vmatpush1.msra.mxu0 0.0
    %5788 = vmatprep.subr.mxu0 0.0
    %5789 = vmatpush1.msra.mxu0 0.0
    %5790 = vmatprep.subr.mxu0 0.0
    %5791 = vmatpush1.msra.mxu0 0.0
    %5792 = vmatprep.subr.mxu0 0.0
    %5793 = vmatpush1.msra.mxu0 0.0
    %5794 = vmatprep.subr.mxu0 0.0
    %5795 = vmatpush1.msra.mxu0 0.0
    %5796 = vmatprep.subr.mxu0 0.0
    %5797 = vmatpush1.msra.mxu0 0.0
    %5798 = vmatprep.subr.mxu0 0.0
    %5799 = vmatpush1.msra.mxu0 0.0
    %5800 = vmatprep.subr.mxu0 0.0
    %5801 = vmatpush1.msra.mxu0 0.0
    %5802 = vmatprep.subr.mxu0 0.0
    %5803 = vmatpush1.msra.mxu0 0.0
    %5804 = vmatprep.subr.mxu0 0.0
    %5805 = vmatpush1.msra.mxu0 0.0
    %5806 = vmatprep.subr.mxu0 0.0
    %5807 = vmatpush1.msra.mxu0 0.0
    %5808 = vmatprep.subr.mxu0 0.0
    %5809 = vmatpush1.msra.mxu0 0.0
    %5810 = vmatprep.subr.mxu0 0.0
    %5811 = vmatpush1.msra.mxu0 0.0
    %5812 = vmatprep.subr.mxu0 0.0
    %5813 = vmatpush1.msra.mxu0 0.0
    %5814 = vmatprep.subr.mxu0 0.0
    %5815 = vmatpush1.msra.mxu0 0.0
    %5816 = vmatprep.subr.mxu0 0.0
    %5817 = vmatpush1.msra.mxu0 0.0
    %5818 = vmatprep.subr.mxu0 0.0
    %5819 = vmatpush1.msra.mxu0 0.0
    %5820 = vmatprep.subr.mxu0 0.0
    %5821 = vmatpush1.msra.mxu0 0.0
    %5822 = vmatprep.subr.mxu0 0.0
    %5823 = vmatpush1.msra.mxu0 0.0
    %5824 = vmatprep.subr.mxu0 0.0
    %5825 = vmatpush1.msra.mxu0 0.0
    %5826 = vmatprep.subr.mxu0 0.0
    %5827 = vmatpush1.msra.mxu0 0.0
    %5828 = vmatprep.mubr.f32.mxu0 0.0
    %5829 = vmatmul.mubr.f32.gmra.mrb[0].mxu0 %v5762
    %v5830 = vpop.f32.mrb[0].mxu0
    %v5831 = vadd.f32 %v5756, %v5830
    %v5832 = vpop.f32.mrb[0].mxu0
    %5833 = vdwg.mxu0
    %vm5834 = vcmask 238592
    %5835 = vst.msk [vmem:[#allocation2] sm:$0x3] %vm5834, %v5831
    // Predicated region
    $region74: #{cnn_lstm_forward.1} parent=1 // pred_check
      _
    $region75: #{cnn_lstm_forward.1} parent=1 // pred_check_branch
      %5837 = sbr.rel (0) target = $region77
    $region76: #{cnn_lstm_forward.1} parent=1 // pred_region
      %s5839 = ssub.s32 32, 32
      %5840 = vsyncadd [#allocation3], %s5839
      %s5842 = sshll.u32 [#allocation2], 4
      %s5843 = int_to_ptr.vmem [resolvable:$true] %s5842
      %5845 = dma.vmem_to_hbm [thread:$0]  %s5843, 32, %s18, [#allocation3]
    $region77: #{cnn_lstm_forward.1} parent=1 // pred_fallthru
      _
    // Predicated region
    $region78: #{cnn_lstm_forward.1} parent=1 // pred_check
      _
    $region79: #{cnn_lstm_forward.1} parent=1 // pred_check_branch
      %5847 = sbr.rel (0) target = $region81
    $region80: #{cnn_lstm_forward.1} parent=1 // pred_region
      %5848 = dma.done [#allocation3], 32
    $region81: #{cnn_lstm_forward.1} parent=1 // pred_fallthru
      _
    %5849 = vsyncpa [#allocation3], 1

</llo_original>
